<compile_context>
chip_gen: v5e
topology: v5e:2x2
jax: 0.10.0
libtpu: 0.0.40
codegen_flags: <defaults>
</compile_context>

<pallas_src>
import functools

import numpy as np
import jax
import jax.numpy as jnp
from jax import lax
from jax.experimental import pallas as pl
from jax.experimental.pallas import tpu as pltpu

LANE = 128  # TPU lane width; output channels are padded to a multiple of this.


def _round_up(x, m):
    return ((x + m - 1) // m) * m


def _pad_last(a, target, value=0.0):
    pad = target - a.shape[-1]
    if pad == 0:
        return a
    cfg = [(0, 0)] * (a.ndim - 1) + [(0, pad)]
    return jnp.pad(a, cfg, constant_values=value)


def _vmem_limit_bytes():
    """~80% of physical VMEM (64 MiB v7x / 128 MiB v5e,v6e); safe fallback."""
    try:
        cap = int(pltpu.get_tpu_info().vmem_capacity_bytes)
        if cap <= 0:
            raise ValueError("bad vmem capacity")
    except Exception:
        cap = 64 * 1024 * 1024
    return max(32 * 1024 * 1024, min(int(cap * 0.8), 112 * 1024 * 1024))


def _pick_cout_tile(coutp):
    # 256-wide N keeps the 256x256 MXU (v6e/v7x) full; on v5e Mosaic splits
    # it into two 128-wide passes at no extra cost.
    for t in (256, 128):
        if coutp % t == 0:
            return t
    return coutp


def _pick_row_tile(H, Wp, max_rows=2048):
    """Largest divisor TH of H with TH*Wp <= max_rows and sublane-friendly."""
    for th in range(H, 0, -1):
        if H % th:
            continue
        rows = th * Wp
        if rows <= max_rows and (rows % 8 == 0 or th == H):
            return th
    return H  # fallback: single row block (block == full array dims)


# ----------------------------------------------------------------------------
# Plain-JAX / host glue: adaptive average pool (PyTorch bin semantics) and
# bilinear (align_corners=False) upsample matrices.
# ----------------------------------------------------------------------------
def adaptive_avg_pool_nhwc(x, out_size):
    """x: (B, H, W, C) -> (B, out_size, out_size, C), PyTorch AdaptiveAvgPool2d."""
    B, H, W, C = x.shape

    def bins(n_in, n_out):
        starts = [(i * n_in) // n_out for i in range(n_out)]
        ends = [-(-((i + 1) * n_in) // n_out) for i in range(n_out)]
        return starts, ends

    hs, he = bins(H, out_size)
    ws, we = bins(W, out_size)
    rows = []
    for i in range(out_size):
        cols = []
        for j in range(out_size):
            patch = x[:, hs[i]:he[i], ws[j]:we[j], :]
            cols.append(jnp.mean(patch, axis=(1, 2)))  # (B, C)
        rows.append(jnp.stack(cols, axis=1))           # (B, out, C)
    return jnp.stack(rows, axis=1)                     # (B, out, out, C)


def bilinear_matrix(out_size, in_size):
    """Interpolation matrix (out_size, in_size), bilinear, align_corners=False."""
    m = np.zeros((out_size, in_size), dtype=np.float32)
    scale = in_size / out_size
    for o in range(out_size):
        src = scale * (o + 0.5) - 0.5
        if src < 0.0:
            src = 0.0
        i0 = int(np.floor(src))
        if i0 > in_size - 1:
            i0 = in_size - 1
        lam = src - i0
        i1 = min(i0 + 1, in_size - 1)
        m[o, i0] += 1.0 - lam
        m[o, i1] += lam
    return m


def _halo_blocks(feat, TH, NH):
    """(B, H, W, C) -> (B, NH, (TH+3)*(W+2), C).

    Zero-pads the image by one row/column of conv padding (plus one slack row
    at the bottom so every in-kernel tap slice stays in bounds), then stacks
    overlapping TH+3-row blocks and flattens rows x padded-width so each 3x3
    tap becomes a contiguous flat slice of the block.
    """
    B, H, W, C = feat.shape
    p = jnp.pad(feat, ((0, 0), (1, 2), (1, 1), (0, 0)))   # (B, H+3, W+2, C)
    blocks = [lax.slice_in_dim(p, hb * TH, hb * TH + TH + 3, axis=1)
              for hb in range(NH)]
    stacked = jnp.stack(blocks, axis=1)                    # (B, NH, TH+3, W+2, C)
    return stacked.reshape(B, NH, (TH + 3) * (W + 2), C)


# ----------------------------------------------------------------------------
# Pallas kernel 1: ALL pyramid stages' 1x1 conv + folded-BN + ReLU in one call.
# Grid over stages; each step: (Mpad, Cin)bf16 @ (Cin, CoutP)bf16 -> f32 -> bf16.
# ----------------------------------------------------------------------------
def _stage_pointwise_kernel(x_ref, w_ref, scale_ref, shift_ref, o_ref):
    y = jnp.dot(x_ref[...], w_ref[...], preferred_element_type=jnp.float32)
    y = y * scale_ref[...] + shift_ref[...]
    o_ref[...] = jnp.maximum(y, 0.0).astype(o_ref.dtype)


def merged_stage_pointwise(x_stack, w_stack, scale_stack, shift_stack):
    n_stages, mpad, cin = x_stack.shape
    coutp = w_stack.shape[-1]
    return pl.pallas_call(
        _stage_pointwise_kernel,
        out_shape=jax.ShapeDtypeStruct((n_stages, mpad, coutp), jnp.bfloat16),
        grid=(n_stages,),
        in_specs=[
            pl.BlockSpec((None, mpad, cin), lambda s: (s, 0, 0)),
            pl.BlockSpec((None, cin, coutp), lambda s: (s, 0, 0)),
            pl.BlockSpec((None, 1, coutp), lambda s: (s, 0, 0)),
            pl.BlockSpec((None, 1, coutp), lambda s: (s, 0, 0)),
        ],
        out_specs=pl.BlockSpec((None, mpad, coutp), lambda s: (s, 0, 0)),
        compiler_params=pltpu.CompilerParams(
            dimension_semantics=("parallel",)),
    )(x_stack, w_stack, scale_stack, shift_stack)


# ----------------------------------------------------------------------------
# Pallas kernel 2: bottleneck 3x3 conv (pad=1, no bias) + folded-BN + ReLU.
#
# Grid (B, row_blocks, cout_tiles, n_k); innermost axis is a split-K reduction
# over Cout-wide channel chunks (backbone chunks + stage features) into a VMEM
# f32 accumulator.  Each tap (dy, dx) is a contiguous static slice of the
# halo-blocked activation ref (offset dy*Wp + dx) fed to one bf16 MXU matmul;
# zero-padding for the conv border is baked into the layout, so no masks/rolls.
# ----------------------------------------------------------------------------
def _bneck_kernel(a_ref, w_ref, scale_ref, shift_ref, o_ref, acc_ref, *,
                  wp, m_rows):
    k = pl.program_id(3)

    @pl.when(k == 0)
    def _init():
        acc_ref[...] = jnp.zeros_like(acc_ref)

    # Fused 9-tap accumulation: taps gathered into one local f32 value,
    # a single accumulator update per reduction step.
    z = None
    for dy in range(3):
        for dx in range(3):
            t = dy * 3 + dx
            lhs = a_ref[pl.ds(dy * wp + dx, m_rows), :]          # (m_rows, Ck) bf16
            p = jnp.dot(lhs, w_ref[t],                           # bf16 x bf16 -> f32
                        preferred_element_type=jnp.float32)
            z = p if z is None else z + p
    acc_ref[...] += z

    @pl.when(k == pl.num_programs(3) - 1)
    def _finish():
        y = acc_ref[...] * scale_ref[...] + shift_ref[...]
        o_ref[...] = jnp.maximum(y, 0.0).astype(o_ref.dtype)


def bottleneck_conv3x3_bn_relu(x_nhwc, stage_feats, w_hwio, scale, shift):
    """3x3 conv (pad=1) + BN + ReLU over concat([x] + stage_feats) without
    materializing the channel concatenation.

    x_nhwc      : (B, H, W, Cin) bf16 backbone feature map.
    stage_feats : list of (B, H, W, Cout) bf16 upsampled stage features.
    w_hwio      : (3, 3, Cin + n*Cout, Cout) f32.
    """
    B, H, W, cin = x_nhwc.shape
    cout = w_hwio.shape[-1]
    coutp = _round_up(cout, LANE)
    n_stages = len(stage_feats)
    Wp = W + 2

    n_tile = _pick_cout_tile(coutp)
    nct = coutp // n_tile

    ck = cout                               # reduction-chunk channel width
    n_back = -(-cin // ck)                  # backbone split into ck-wide chunks
    n_k = n_back + n_stages

    TH = _pick_row_tile(H, Wp)
    NH = H // TH
    m_rows = TH * Wp                        # output rows per block (padded width)
    flat_in = (TH + 3) * Wp                 # halo'd input rows per block

    # ---- halo-blocked bf16 activation stack: (n_k, B, NH, flat_in, ck) ------
    pieces = []
    for j in range(n_back):
        pieces.append(_pad_last(x_nhwc[..., j * ck:(j + 1) * ck], ck))
    pieces += list(stage_feats)
    act = jnp.stack([_halo_blocks(p, TH, NH) for p in pieces], axis=0)

    # ---- matching weight chunks: (n_k, 9, ck, coutp) bf16 -------------------
    w = _pad_last(w_hwio, coutp)            # (3, 3, Ctot, coutp)
    w_chunks = []
    off = 0
    for j in range(n_back):
        cj = min(ck, cin - j * ck)
        wj = w[:, :, off:off + cj, :]
        if cj < ck:
            wj = jnp.pad(wj, ((0, 0), (0, 0), (0, ck - cj), (0, 0)))
        w_chunks.append(wj)
        off += cj
    for _ in range(n_stages):
        w_chunks.append(w[:, :, off:off + ck, :])
        off += ck
    w_stack = jnp.stack(w_chunks, axis=0).reshape(n_k, 9, ck, coutp)
    w_stack = w_stack.astype(jnp.bfloat16)

    scale_p = _pad_last(scale[None, :], coutp, 1.0)
    shift_p = _pad_last(shift[None, :], coutp, 0.0)

    kernel = functools.partial(_bneck_kernel, wp=Wp, m_rows=m_rows)

    out = pl.pallas_call(
        kernel,
        out_shape=jax.ShapeDtypeStruct((B, H * Wp, coutp), jnp.float32),
        grid=(B, NH, nct, n_k),
        in_specs=[
            # activation chunk: changes every k step -> pipelined DMAs
            pl.BlockSpec((None, None, None, flat_in, ck),
                         lambda b, hb, n, k: (k, b, hb, 0, 0)),
            # weight chunk for this (cout tile, k) pair
            pl.BlockSpec((None, 9, ck, n_tile),
                         lambda b, hb, n, k: (k, 0, 0, n)),
            pl.BlockSpec((1, n_tile), lambda b, hb, n, k: (0, n)),
            pl.BlockSpec((1, n_tile), lambda b, hb, n, k: (0, n)),
        ],
        out_specs=pl.BlockSpec((None, m_rows, n_tile),
                               lambda b, hb, n, k: (b, hb, n)),
        scratch_shapes=[pltpu.VMEM((m_rows, n_tile), jnp.float32)],
        compiler_params=pltpu.CompilerParams(
            dimension_semantics=("parallel", "parallel", "parallel", "arbitrary"),
            vmem_limit_bytes=_vmem_limit_bytes()),
    )(act, w_stack, scale_p, shift_p)

    # drop the two padded-width garbage columns and the Cout lane padding
    return out.reshape(B, H, Wp, coutp)[:, :, :W, :cout]


# ----------------------------------------------------------------------------
# Parameter init (deterministic) with BN folded into per-channel scale/shift.
# ----------------------------------------------------------------------------
def init_params(key, cin, cout, pool_sizes):
    n = len(pool_sizes)
    ctot = cin + n * cout
    keys = jax.random.split(key, 2 * n + 2)

    def bn_fold(k, c):
        kg, kb, km, kv = jax.random.split(k, 4)
        gamma = 1.0 + 0.05 * jax.random.normal(kg, (c,), jnp.float32)
        beta = 0.05 * jax.random.normal(kb, (c,), jnp.float32)
        mean = 0.05 * jax.random.normal(km, (c,), jnp.float32)
        var = 1.0 + 0.1 * jnp.abs(jax.random.normal(kv, (c,), jnp.float32))
        scale = gamma / jnp.sqrt(var + 1e-5)
        shift = beta - mean * scale
        return scale, shift

    stages = []
    for i in range(n):
        w = jax.random.normal(keys[2 * i], (cin, cout), jnp.float32) * (2.0 / cin) ** 0.5
        sc, sh = bn_fold(keys[2 * i + 1], cout)
        stages.append(dict(w=w, scale=sc, shift=sh))

    w_hwio = jax.random.normal(keys[2 * n], (3, 3, ctot, cout), jnp.float32)
    w_hwio = w_hwio * (2.0 / (9 * ctot)) ** 0.5
    b_sc, b_sh = bn_fold(keys[2 * n + 1], cout)
    return dict(stages=stages, bneck_w_hwio=w_hwio,
                bneck_scale=b_sc, bneck_shift=b_sh)


# ----------------------------------------------------------------------------
# Forward pass (Pallas kernels) and a pure-JAX reference for sanity checking.
# ----------------------------------------------------------------------------
def ppm_forward(x_nchw, params, pool_sizes):
    x = jnp.transpose(x_nchw, (0, 2, 3, 1))                    # NCHW -> NHWC, f32
    B, H, W, cin = x.shape
    cout = params['stages'][0]['w'].shape[1]
    coutp = _round_up(cout, LANE)

    # --- pyramid stages: adaptive pool (XLA glue) -> one merged pallas call.
    sizes = [max(s, 2) for s in pool_sizes]                    # matches the module
    rows = [B * s * s for s in sizes]
    mpad = _round_up(max(rows), 8)

    pooled = []
    for s, r in zip(sizes, rows):
        p = adaptive_avg_pool_nhwc(x, s).reshape(r, cin)
        pooled.append(jnp.pad(p, ((0, mpad - r), (0, 0))))
    x_stack = jnp.stack(pooled).astype(jnp.bfloat16)           # (S, Mpad, Cin)
    w_stack = jnp.stack([_pad_last(st['w'], coutp)
                         for st in params['stages']]).astype(jnp.bfloat16)
    scale_stack = jnp.stack([_pad_last(st['scale'][None, :], coutp, 1.0)
                             for st in params['stages']])
    shift_stack = jnp.stack([_pad_last(st['shift'][None, :], coutp, 0.0)
                             for st in params['stages']])

    stage_out = merged_stage_pointwise(x_stack, w_stack, scale_stack, shift_stack)

    # --- bilinear upsample (tiny matrix contractions, XLA glue) -> bf16 feats.
    stage_feats = []
    for i, s in enumerate(sizes):
        y = stage_out[i, :rows[i], :cout].reshape(B, s, s, cout)   # bf16
        mh = jnp.asarray(bilinear_matrix(H, s))
        mw = jnp.asarray(bilinear_matrix(W, s))
        up = jnp.einsum('hs,bstc,wt->bhwc', mh, y, mw)             # f32 compute
        stage_feats.append(up.astype(jnp.bfloat16))

    # --- bottleneck 3x3 conv + BN + ReLU (split-K over channel chunks).
    out = bottleneck_conv3x3_bn_relu(
        x.astype(jnp.bfloat16), stage_feats,
        params['bneck_w_hwio'], params['bneck_scale'], params['bneck_shift'])
    return jnp.transpose(out, (0, 3, 1, 2))                    # NHWC -> NCHW


def ppm_reference(x_nchw, params, pool_sizes):
    """Pure-JAX reference (same bf16-input / f32-accumulate numerics)."""
    x = jnp.transpose(x_nchw, (0, 2, 3, 1))
    B, H, W, cin = x.shape
    dn = ('NHWC', 'HWIO', 'NHWC')
    feats = [x]
    for i, size in enumerate(pool_sizes):
        p = params['stages'][i]
        s = max(size, 2)
        pooled = adaptive_avg_pool_nhwc(x, s)
        w = p['w'].reshape(1, 1, cin, -1)
        y = lax.conv_general_dilated(pooled.astype(jnp.bfloat16),
                                     w.astype(jnp.bfloat16),
                                     (1, 1), 'VALID', dimension_numbers=dn,
                                     preferred_element_type=jnp.float32)
        y = y * p['scale'].reshape(1, 1, 1, -1) + p['shift'].reshape(1, 1, 1, -1)
        y = jnp.maximum(y, 0.0)
        # mirror the kernel path's bf16 stage-feature storage
        y = y.astype(jnp.bfloat16).astype(jnp.float32)
        mh = jnp.asarray(bilinear_matrix(H, s))
        mw = jnp.asarray(bilinear_matrix(W, s))
        feats.append(jnp.einsum('hs,bstc,wt->bhwc', mh, y, mw))
    cat = jnp.concatenate(feats, axis=-1).astype(jnp.bfloat16)
    y = lax.conv_general_dilated(cat, params['bneck_w_hwio'].astype(jnp.bfloat16),
                                 (1, 1), ((1, 1), (1, 1)), dimension_numbers=dn,
                                 preferred_element_type=jnp.float32)
    y = y * params['bneck_scale'].reshape(1, 1, 1, -1) \
        + params['bneck_shift'].reshape(1, 1, 1, -1)
    y = jnp.maximum(y, 0.0)
    return jnp.transpose(y, (0, 3, 1, 2))


if __name__ == "__main__":
    B, Cin, H, W = 2, 4, 16, 16
    Cout = 8
    pool_sizes = (1, 2, 4)

    key = jax.random.PRNGKey(0)
    kx, kp = jax.random.split(key)
    x = jax.random.normal(kx, (B, Cin, H, W), jnp.float32)
    params = init_params(kp, Cin, Cout, pool_sizes)

    fwd = jax.jit(lambda xi: ppm_forward(xi, params, pool_sizes))
    out = jax.block_until_ready(fwd(x))

    assert out.shape == (B, Cout, H, W), out.shape
    ref = jax.block_until_ready(ppm_reference(x, params, pool_sizes))
    np.testing.assert_allclose(np.asarray(out), np.asarray(ref),
                               rtol=1e-2, atol=1e-2)
    print("KERNEL_OK")
</pallas_src>

<mosaic_0001>
module attributes {stable_mosaic.version = 11 : i64} {
  func.func @_stage_pointwise_kernel(%arg0: i32, %arg1: memref<1x32x4xbf16, #tpu.memory_space<vmem>>, %arg2: memref<1x4x128xbf16, #tpu.memory_space<vmem>>, %arg3: memref<1x1x128xf32, #tpu.memory_space<vmem>>, %arg4: memref<1x1x128xf32, #tpu.memory_space<vmem>>, %arg5: memref<1x32x128xbf16, #tpu.memory_space<vmem>>) attributes {dimension_semantics = [#tpu.dimension_semantics<parallel>], iteration_bounds = array<i64: 3>, scalar_prefetch = 0 : i64, scratch_operands = 0 : i64, tpu.core_type = #tpu.core_type<tc>, window_params = [{transform_indices = @transform_0, window_bounds = array<i64: 1, 32, 4>}, {transform_indices = @transform_1, window_bounds = array<i64: 1, 4, 128>}, {transform_indices = @transform_2, window_bounds = array<i64: 1, 1, 128>}, {transform_indices = @transform_3, window_bounds = array<i64: 1, 1, 128>}, {transform_indices = @transform_4, window_bounds = array<i64: 1, 32, 128>}]} {
    %c0 = arith.constant 0 : index
    %c0_0 = arith.constant 0 : index
    %c0_1 = arith.constant 0 : index
    %0 = vector.load %arg1[%c0, %c0_0, %c0_1] : memref<1x32x4xbf16, #tpu.memory_space<vmem>>, vector<1x32x4xbf16>
    %1 = vector.shape_cast %0 : vector<1x32x4xbf16> to vector<32x4xbf16>
    %c0_2 = arith.constant 0 : index
    %c0_3 = arith.constant 0 : index
    %c0_4 = arith.constant 0 : index
    %2 = vector.load %arg2[%c0_2, %c0_3, %c0_4] : memref<1x4x128xbf16, #tpu.memory_space<vmem>>, vector<1x4x128xbf16>
    %3 = vector.shape_cast %2 : vector<1x4x128xbf16> to vector<4x128xbf16>
    %cst = arith.constant dense<0.000000e+00> : vector<32x128xf32>
    %4 = tpu.matmul %1, %3, %cst {dimension_numbers = #tpu.dot_dimension_numbers<[1], [0], [0], [1], [0, 0, 1, 1], [], []>} : vector<32x4xbf16>, vector<4x128xbf16>, vector<32x128xf32> -> vector<32x128xf32>
    %c0_5 = arith.constant 0 : index
    %c0_6 = arith.constant 0 : index
    %c0_7 = arith.constant 0 : index
    %5 = vector.load %arg3[%c0_5, %c0_6, %c0_7] : memref<1x1x128xf32, #tpu.memory_space<vmem>>, vector<1x1x128xf32>
    %6 = vector.shape_cast %5 : vector<1x1x128xf32> to vector<1x128xf32>
    %7 = vector.broadcast %6 : vector<1x128xf32> to vector<32x128xf32>
    %8 = arith.mulf %4, %7 : vector<32x128xf32>
    %c0_8 = arith.constant 0 : index
    %c0_9 = arith.constant 0 : index
    %c0_10 = arith.constant 0 : index
    %9 = vector.load %arg4[%c0_8, %c0_9, %c0_10] : memref<1x1x128xf32, #tpu.memory_space<vmem>>, vector<1x1x128xf32>
    %10 = vector.shape_cast %9 : vector<1x1x128xf32> to vector<1x128xf32>
    %11 = vector.broadcast %10 : vector<1x128xf32> to vector<32x128xf32>
    %12 = arith.addf %8, %11 : vector<32x128xf32>
    %cst_11 = arith.constant 0.000000e+00 : f32
    %13 = vector.broadcast %cst_11 : f32 to vector<32x128xf32>
    %14 = arith.maximumf %12, %13 : vector<32x128xf32>
    %15 = arith.truncf %14 : vector<32x128xf32> to vector<32x128xbf16>
    %c0_12 = arith.constant 0 : index
    %c0_13 = arith.constant 0 : index
    %c0_14 = arith.constant 0 : index
    %16 = vector.load %arg5[%c0_12, %c0_13, %c0_14] : memref<1x32x128xbf16, #tpu.memory_space<vmem>>, vector<1x32x128xbf16>
    %17 = vector.shape_cast %16 : vector<1x32x128xbf16> to vector<32x128xbf16>
    %18 = vector.shape_cast %15 : vector<32x128xbf16> to vector<1x32x128xbf16>
    tpu.vector_store %arg5[%c0_12, %c0_13, %c0_14], %18 {strides = array<i32>} : memref<1x32x128xbf16, #tpu.memory_space<vmem>>, vector<1x32x128xbf16>,
    return
  }
  func.func @transform_0(%arg0: i32) -> (i32, i32, i32) {
    %c0_i32 = arith.constant 0 : i32
    %c0_i32_0 = arith.constant 0 : i32
    %c0_i32_1 = arith.constant 0 : i32
    return %arg0, %c0_i32, %c0_i32_0 : i32, i32, i32
  }
  func.func @transform_1(%arg0: i32) -> (i32, i32, i32) {
    %c0_i32 = arith.constant 0 : i32
    %c0_i32_0 = arith.constant 0 : i32
    %c0_i32_1 = arith.constant 0 : i32
    return %arg0, %c0_i32, %c0_i32_0 : i32, i32, i32
  }
  func.func @transform_2(%arg0: i32) -> (i32, i32, i32) {
    %c0_i32 = arith.constant 0 : i32
    %c0_i32_0 = arith.constant 0 : i32
    %c0_i32_1 = arith.constant 0 : i32
    return %arg0, %c0_i32, %c0_i32_0 : i32, i32, i32
  }
  func.func @transform_3(%arg0: i32) -> (i32, i32, i32) {
    %c0_i32 = arith.constant 0 : i32
    %c0_i32_0 = arith.constant 0 : i32
    %c0_i32_1 = arith.constant 0 : i32
    return %arg0, %c0_i32, %c0_i32_0 : i32, i32, i32
  }
  func.func @transform_4(%arg0: i32) -> (i32, i32, i32) {
    %c0_i32 = arith.constant 0 : i32
    %c0_i32_0 = arith.constant 0 : i32
    %c0_i32_1 = arith.constant 0 : i32
    return %arg0, %c0_i32, %c0_i32_0 : i32, i32, i32
  }
}

module attributes {stable_mosaic.version = 11 : i64} {
  func.func @_bneck_kernel(%arg0: i32, %arg1: i32, %arg2: i32, %arg3: i32, %arg4: memref<1x1x1x342x8xbf16, #tpu.memory_space<vmem>>, %arg5: memref<1x9x8x128xbf16, #tpu.memory_space<vmem>>, %arg6: memref<1x128xf32, #tpu.memory_space<vmem>>, %arg7: memref<1x128xf32, #tpu.memory_space<vmem>>, %arg8: memref<1x288x128xf32, #tpu.memory_space<vmem>>, %arg9: memref<288x128xf32, #tpu.memory_space<vmem>>) attributes {dimension_semantics = [#tpu.dimension_semantics<parallel>, #tpu.dimension_semantics<parallel>, #tpu.dimension_semantics<parallel>, #tpu.dimension_semantics<arbitrary>], iteration_bounds = array<i64: 2, 1, 1, 4>, scalar_prefetch = 0 : i64, scratch_operands = 1 : i64, tpu.core_type = #tpu.core_type<tc>, window_params = [{transform_indices = @transform_0, window_bounds = array<i64: 1, 1, 1, 342, 8>}, {transform_indices = @transform_1, window_bounds = array<i64: 1, 9, 8, 128>}, {transform_indices = @transform_2, window_bounds = array<i64: 1, 128>}, {transform_indices = @transform_3, window_bounds = array<i64: 1, 128>}, {transform_indices = @transform_4, window_bounds = array<i64: 1, 288, 128>}]} {
    %c0_i32 = arith.constant 0 : i32
    %0 = arith.cmpi eq, %arg3, %c0_i32 : i32
    %1 = arith.extui %0 : i1 to i32
    %c0_i32_0 = arith.constant 0 : i32
    %2 = arith.cmpi ne, %1, %c0_i32_0 : i32
    scf.if %2 {
      %cst_80 = arith.constant 0.000000e+00 : f32
      %62 = vector.broadcast %cst_80 : f32 to vector<288x128xf32>
      %c0_81 = arith.constant 0 : index
      %c0_82 = arith.constant 0 : index
      %63 = vector.load %arg9[%c0_81, %c0_82] : memref<288x128xf32, #tpu.memory_space<vmem>>, vector<288x128xf32>
      tpu.vector_store %arg9[%c0_81, %c0_82], %62 {strides = array<i32>} : memref<288x128xf32, #tpu.memory_space<vmem>>, vector<288x128xf32>,
    } else {
    }
    %c0 = arith.constant 0 : index
    %c0_1 = arith.constant 0 : index
    %c0_2 = arith.constant 0 : index
    %c0_3 = arith.constant 0 : index
    %c0_4 = arith.constant 0 : index
    %3 = vector.load %arg4[%c0, %c0_1, %c0_2, %c0_3, %c0_4] : memref<1x1x1x342x8xbf16, #tpu.memory_space<vmem>>, vector<1x1x1x288x8xbf16>
    %4 = vector.shape_cast %3 : vector<1x1x1x288x8xbf16> to vector<288x8xbf16>
    %c0_5 = arith.constant 0 : index
    %c0_6 = arith.constant 0 : index
    %c0_7 = arith.constant 0 : index
    %c0_8 = arith.constant 0 : index
    %5 = vector.load %arg5[%c0_5, %c0_6, %c0_7, %c0_8] : memref<1x9x8x128xbf16, #tpu.memory_space<vmem>>, vector<1x1x8x128xbf16>
    %6 = vector.shape_cast %5 : vector<1x1x8x128xbf16> to vector<8x128xbf16>
    %cst = arith.constant dense<0.000000e+00> : vector<288x128xf32>
    %7 = tpu.matmul %4, %6, %cst {dimension_numbers = #tpu.dot_dimension_numbers<[1], [0], [0], [1], [0, 0, 1, 1], [], []>} : vector<288x8xbf16>, vector<8x128xbf16>, vector<288x128xf32> -> vector<288x128xf32>
    %c0_9 = arith.constant 0 : index
    %c0_10 = arith.constant 0 : index
    %c0_11 = arith.constant 0 : index
    %c1 = arith.constant 1 : index
    %c0_12 = arith.constant 0 : index
    %8 = vector.load %arg4[%c0_9, %c0_10, %c0_11, %c1, %c0_12] : memref<1x1x1x342x8xbf16, #tpu.memory_space<vmem>>, vector<1x1x1x288x8xbf16>
    %9 = vector.shape_cast %8 : vector<1x1x1x288x8xbf16> to vector<288x8xbf16>
    %c0_13 = arith.constant 0 : index
    %c1_14 = arith.constant 1 : index
    %c0_15 = arith.constant 0 : index
    %c0_16 = arith.constant 0 : index
    %10 = vector.load %arg5[%c0_13, %c1_14, %c0_15, %c0_16] : memref<1x9x8x128xbf16, #tpu.memory_space<vmem>>, vector<1x1x8x128xbf16>
    %11 = vector.shape_cast %10 : vector<1x1x8x128xbf16> to vector<8x128xbf16>
    %cst_17 = arith.constant dense<0.000000e+00> : vector<288x128xf32>
    %12 = tpu.matmul %9, %11, %cst_17 {dimension_numbers = #tpu.dot_dimension_numbers<[1], [0], [0], [1], [0, 0, 1, 1], [], []>} : vector<288x8xbf16>, vector<8x128xbf16>, vector<288x128xf32> -> vector<288x128xf32>
    %13 = arith.addf %7, %12 : vector<288x128xf32>
    %c0_18 = arith.constant 0 : index
    %c0_19 = arith.constant 0 : index
    %c0_20 = arith.constant 0 : index
    %c2 = arith.constant 2 : index
    %c0_21 = arith.constant 0 : index
    %14 = vector.load %arg4[%c0_18, %c0_19, %c0_20, %c2, %c0_21] : memref<1x1x1x342x8xbf16, #tpu.memory_space<vmem>>, vector<1x1x1x288x8xbf16>
    %15 = vector.shape_cast %14 : vector<1x1x1x288x8xbf16> to vector<288x8xbf16>
    %c0_22 = arith.constant 0 : index
    %c2_23 = arith.constant 2 : index
    %c0_24 = arith.constant 0 : index
    %c0_25 = arith.constant 0 : index
    %16 = vector.load %arg5[%c0_22, %c2_23, %c0_24, %c0_25] : memref<1x9x8x128xbf16, #tpu.memory_space<vmem>>, vector<1x1x8x128xbf16>
    %17 = vector.shape_cast %16 : vector<1x1x8x128xbf16> to vector<8x128xbf16>
    %cst_26 = arith.constant dense<0.000000e+00> : vector<288x128xf32>
    %18 = tpu.matmul %15, %17, %cst_26 {dimension_numbers = #tpu.dot_dimension_numbers<[1], [0], [0], [1], [0, 0, 1, 1], [], []>} : vector<288x8xbf16>, vector<8x128xbf16>, vector<288x128xf32> -> vector<288x128xf32>
    %19 = arith.addf %13, %18 : vector<288x128xf32>
    %c0_27 = arith.constant 0 : index
    %c0_28 = arith.constant 0 : index
    %c0_29 = arith.constant 0 : index
    %c18 = arith.constant 18 : index
    %c0_30 = arith.constant 0 : index
    %20 = vector.load %arg4[%c0_27, %c0_28, %c0_29, %c18, %c0_30] : memref<1x1x1x342x8xbf16, #tpu.memory_space<vmem>>, vector<1x1x1x288x8xbf16>
    %21 = vector.shape_cast %20 : vector<1x1x1x288x8xbf16> to vector<288x8xbf16>
    %c0_31 = arith.constant 0 : index
    %c3 = arith.constant 3 : index
    %c0_32 = arith.constant 0 : index
    %c0_33 = arith.constant 0 : index
    %22 = vector.load %arg5[%c0_31, %c3, %c0_32, %c0_33] : memref<1x9x8x128xbf16, #tpu.memory_space<vmem>>, vector<1x1x8x128xbf16>
    %23 = vector.shape_cast %22 : vector<1x1x8x128xbf16> to vector<8x128xbf16>
    %cst_34 = arith.constant dense<0.000000e+00> : vector<288x128xf32>
    %24 = tpu.matmul %21, %23, %cst_34 {dimension_numbers = #tpu.dot_dimension_numbers<[1], [0], [0], [1], [0, 0, 1, 1], [], []>} : vector<288x8xbf16>, vector<8x128xbf16>, vector<288x128xf32> -> vector<288x128xf32>
    %25 = arith.addf %19, %24 : vector<288x128xf32>
    %c0_35 = arith.constant 0 : index
    %c0_36 = arith.constant 0 : index
    %c0_37 = arith.constant 0 : index
    %c19 = arith.constant 19 : index
    %c0_38 = arith.constant 0 : index
    %26 = vector.load %arg4[%c0_35, %c0_36, %c0_37, %c19, %c0_38] : memref<1x1x1x342x8xbf16, #tpu.memory_space<vmem>>, vector<1x1x1x288x8xbf16>
    %27 = vector.shape_cast %26 : vector<1x1x1x288x8xbf16> to vector<288x8xbf16>
    %c0_39 = arith.constant 0 : index
    %c4 = arith.constant 4 : index
    %c0_40 = arith.constant 0 : index
    %c0_41 = arith.constant 0 : index
    %28 = vector.load %arg5[%c0_39, %c4, %c0_40, %c0_41] : memref<1x9x8x128xbf16, #tpu.memory_space<vmem>>, vector<1x1x8x128xbf16>
    %29 = vector.shape_cast %28 : vector<1x1x8x128xbf16> to vector<8x128xbf16>
    %cst_42 = arith.constant dense<0.000000e+00> : vector<288x128xf32>
    %30 = tpu.matmul %27, %29, %cst_42 {dimension_numbers = #tpu.dot_dimension_numbers<[1], [0], [0], [1], [0, 0, 1, 1], [], []>} : vector<288x8xbf16>, vector<8x128xbf16>, vector<288x128xf32> -> vector<288x128xf32>
    %31 = arith.addf %25, %30 : vector<288x128xf32>
    %c0_43 = arith.constant 0 : index
    %c0_44 = arith.constant 0 : index
    %c0_45 = arith.constant 0 : index
    %c20 = arith.constant 20 : index
    %c0_46 = arith.constant 0 : index
    %32 = vector.load %arg4[%c0_43, %c0_44, %c0_45, %c20, %c0_46] : memref<1x1x1x342x8xbf16, #tpu.memory_space<vmem>>, vector<1x1x1x288x8xbf16>
    %33 = vector.shape_cast %32 : vector<1x1x1x288x8xbf16> to vector<288x8xbf16>
    %c0_47 = arith.constant 0 : index
    %c5 = arith.constant 5 : index
    %c0_48 = arith.constant 0 : index
    %c0_49 = arith.constant 0 : index
    %34 = vector.load %arg5[%c0_47, %c5, %c0_48, %c0_49] : memref<1x9x8x128xbf16, #tpu.memory_space<vmem>>, vector<1x1x8x128xbf16>
    %35 = vector.shape_cast %34 : vector<1x1x8x128xbf16> to vector<8x128xbf16>
    %cst_50 = arith.constant dense<0.000000e+00> : vector<288x128xf32>
    %36 = tpu.matmul %33, %35, %cst_50 {dimension_numbers = #tpu.dot_dimension_numbers<[1], [0], [0], [1], [0, 0, 1, 1], [], []>} : vector<288x8xbf16>, vector<8x128xbf16>, vector<288x128xf32> -> vector<288x128xf32>
    %37 = arith.addf %31, %36 : vector<288x128xf32>
    %c0_51 = arith.constant 0 : index
    %c0_52 = arith.constant 0 : index
    %c0_53 = arith.constant 0 : index
    %c36 = arith.constant 36 : index
    %c0_54 = arith.constant 0 : index
    %38 = vector.load %arg4[%c0_51, %c0_52, %c0_53, %c36, %c0_54] : memref<1x1x1x342x8xbf16, #tpu.memory_space<vmem>>, vector<1x1x1x288x8xbf16>
    %39 = vector.shape_cast %38 : vector<1x1x1x288x8xbf16> to vector<288x8xbf16>
    %c0_55 = arith.constant 0 : index
    %c6 = arith.constant 6 : index
    %c0_56 = arith.constant 0 : index
    %c0_57 = arith.constant 0 : index
    %40 = vector.load %arg5[%c0_55, %c6, %c0_56, %c0_57] : memref<1x9x8x128xbf16, #tpu.memory_space<vmem>>, vector<1x1x8x128xbf16>
    %41 = vector.shape_cast %40 : vector<1x1x8x128xbf16> to vector<8x128xbf16>
    %cst_58 = arith.constant dense<0.000000e+00> : vector<288x128xf32>
    %42 = tpu.matmul %39, %41, %cst_58 {dimension_numbers = #tpu.dot_dimension_numbers<[1], [0], [0], [1], [0, 0, 1, 1], [], []>} : vector<288x8xbf16>, vector<8x128xbf16>, vector<288x128xf32> -> vector<288x128xf32>
    %43 = arith.addf %37, %42 : vector<288x128xf32>
    %c0_59 = arith.constant 0 : index
    %c0_60 = arith.constant 0 : index
    %c0_61 = arith.constant 0 : index
    %c37 = arith.constant 37 : index
    %c0_62 = arith.constant 0 : index
    %44 = vector.load %arg4[%c0_59, %c0_60, %c0_61, %c37, %c0_62] : memref<1x1x1x342x8xbf16, #tpu.memory_space<vmem>>, vector<1x1x1x288x8xbf16>
    %45 = vector.shape_cast %44 : vector<1x1x1x288x8xbf16> to vector<288x8xbf16>
    %c0_63 = arith.constant 0 : index
    %c7 = arith.constant 7 : index
    %c0_64 = arith.constant 0 : index
    %c0_65 = arith.constant 0 : index
    %46 = vector.load %arg5[%c0_63, %c7, %c0_64, %c0_65] : memref<1x9x8x128xbf16, #tpu.memory_space<vmem>>, vector<1x1x8x128xbf16>
    %47 = vector.shape_cast %46 : vector<1x1x8x128xbf16> to vector<8x128xbf16>
    %cst_66 = arith.constant dense<0.000000e+00> : vector<288x128xf32>
    %48 = tpu.matmul %45, %47, %cst_66 {dimension_numbers = #tpu.dot_dimension_numbers<[1], [0], [0], [1], [0, 0, 1, 1], [], []>} : vector<288x8xbf16>, vector<8x128xbf16>, vector<288x128xf32> -> vector<288x128xf32>
    %49 = arith.addf %43, %48 : vector<288x128xf32>
    %c0_67 = arith.constant 0 : index
    %c0_68 = arith.constant 0 : index
    %c0_69 = arith.constant 0 : index
    %c38 = arith.constant 38 : index
    %c0_70 = arith.constant 0 : index
    %50 = vector.load %arg4[%c0_67, %c0_68, %c0_69, %c38, %c0_70] : memref<1x1x1x342x8xbf16, #tpu.memory_space<vmem>>, vector<1x1x1x288x8xbf16>
    %51 = vector.shape_cast %50 : vector<1x1x1x288x8xbf16> to vector<288x8xbf16>
    %c0_71 = arith.constant 0 : index
    %c8 = arith.constant 8 : index
    %c0_72 = arith.constant 0 : index
    %c0_73 = arith.constant 0 : index
    %52 = vector.load %arg5[%c0_71, %c8, %c0_72, %c0_73] : memref<1x9x8x128xbf16, #tpu.memory_space<vmem>>, vector<1x1x8x128xbf16>
    %53 = vector.shape_cast %52 : vector<1x1x8x128xbf16> to vector<8x128xbf16>
    %cst_74 = arith.constant dense<0.000000e+00> : vector<288x128xf32>
    %54 = tpu.matmul %51, %53, %cst_74 {dimension_numbers = #tpu.dot_dimension_numbers<[1], [0], [0], [1], [0, 0, 1, 1], [], []>} : vector<288x8xbf16>, vector<8x128xbf16>, vector<288x128xf32> -> vector<288x128xf32>
    %55 = arith.addf %49, %54 : vector<288x128xf32>
    %c0_75 = arith.constant 0 : index
    %c0_76 = arith.constant 0 : index
    %56 = vector.load %arg9[%c0_75, %c0_76] : memref<288x128xf32, #tpu.memory_space<vmem>>, vector<288x128xf32>
    %57 = arith.addf %56, %55 : vector<288x128xf32>
    %c0_77 = arith.constant 0 : index
    %c0_78 = arith.constant 0 : index
    %58 = vector.load %arg9[%c0_77, %c0_78] : memref<288x128xf32, #tpu.memory_space<vmem>>, vector<288x128xf32>
    tpu.vector_store %arg9[%c0_77, %c0_78], %57 {strides = array<i32>} : memref<288x128xf32, #tpu.memory_space<vmem>>, vector<288x128xf32>,
    %c3_i32 = arith.constant 3 : i32
    %59 = arith.cmpi eq, %arg3, %c3_i32 : i32
    %60 = arith.extui %59 : i1 to i32
    %c0_i32_79 = arith.constant 0 : i32
    %61 = arith.cmpi ne, %60, %c0_i32_79 : i32
    scf.if %61 {
      %c0_80 = arith.constant 0 : index
      %c0_81 = arith.constant 0 : index
      %62 = vector.load %arg9[%c0_80, %c0_81] : memref<288x128xf32, #tpu.memory_space<vmem>>, vector<288x128xf32>
      %c0_82 = arith.constant 0 : index
      %c0_83 = arith.constant 0 : index
      %63 = vector.load %arg6[%c0_82, %c0_83] : memref<1x128xf32, #tpu.memory_space<vmem>>, vector<1x128xf32>
      %64 = vector.broadcast %63 : vector<1x128xf32> to vector<288x128xf32>
      %65 = arith.mulf %62, %64 : vector<288x128xf32>
      %c0_84 = arith.constant 0 : index
      %c0_85 = arith.constant 0 : index
      %66 = vector.load %arg7[%c0_84, %c0_85] : memref<1x128xf32, #tpu.memory_space<vmem>>, vector<1x128xf32>
      %67 = vector.broadcast %66 : vector<1x128xf32> to vector<288x128xf32>
      %68 = arith.addf %65, %67 : vector<288x128xf32>
      %cst_86 = arith.constant 0.000000e+00 : f32
      %69 = vector.broadcast %cst_86 : f32 to vector<288x128xf32>
      %70 = arith.maximumf %68, %69 : vector<288x128xf32>
      %c0_87 = arith.constant 0 : index
      %c0_88 = arith.constant 0 : index
      %c0_89 = arith.constant 0 : index
      %71 = vector.load %arg8[%c0_87, %c0_88, %c0_89] : memref<1x288x128xf32, #tpu.memory_space<vmem>>, vector<1x288x128xf32>
      %72 = vector.shape_cast %71 : vector<1x288x128xf32> to vector<288x128xf32>
      %73 = vector.shape_cast %70 : vector<288x128xf32> to vector<1x288x128xf32>
      tpu.vector_store %arg8[%c0_87, %c0_88, %c0_89], %73 {strides = array<i32>} : memref<1x288x128xf32, #tpu.memory_space<vmem>>, vector<1x288x128xf32>,
    } else {
    }
    return
  }
  func.func @transform_0(%arg0: i32, %arg1: i32, %arg2: i32, %arg3: i32) -> (i32, i32, i32, i32, i32) {
    %c0_i32 = arith.constant 0 : i32
    %c0_i32_0 = arith.constant 0 : i32
    %c0_i32_1 = arith.constant 0 : i32
    return %arg3, %arg0, %arg1, %c0_i32, %c0_i32_0 : i32, i32, i32, i32, i32
  }
  func.func @transform_1(%arg0: i32, %arg1: i32, %arg2: i32, %arg3: i32) -> (i32, i32, i32, i32) {
    %c0_i32 = arith.constant 0 : i32
    %c0_i32_0 = arith.constant 0 : i32
    %c0_i32_1 = arith.constant 0 : i32
    return %arg3, %c0_i32, %c0_i32_0, %arg2 : i32, i32, i32, i32
  }
  func.func @transform_2(%arg0: i32, %arg1: i32, %arg2: i32, %arg3: i32) -> (i32, i32) {
    %c0_i32 = arith.constant 0 : i32
    %c0_i32_0 = arith.constant 0 : i32
    return %c0_i32, %arg2 : i32, i32
  }
  func.func @transform_3(%arg0: i32, %arg1: i32, %arg2: i32, %arg3: i32) -> (i32, i32) {
    %c0_i32 = arith.constant 0 : i32
    %c0_i32_0 = arith.constant 0 : i32
    return %c0_i32, %arg2 : i32, i32
  }
  func.func @transform_4(%arg0: i32, %arg1: i32, %arg2: i32, %arg3: i32) -> (i32, i32, i32) {
    %c0_i32 = arith.constant 0 : i32
    return %arg0, %arg1, %arg2 : i32, i32, i32
  }
}

</mosaic_0001>

<llo_original>
// kernel: _lambda_.2
$region0: #{_lambda_.2}
  #allocation0 [shape = 'u32[]', space=smem, size = 0x4, offset = 0x4, fixed_abs, tag = 'smem constant byte address 0x4 - core index']
  #allocation1 [shape = 'u32[72,128]{1,0:T(1,128)}', space=vmem, size = 0x9000, scoped, tag = 'internal scratch']
  %s0 = inlined_call_operand.vmem [shape: bf16[3,32,4], index: 0, kind: input, shape index: {}]
  %s1 = inlined_call_operand.vmem [shape: bf16[3,4,128], index: 1, kind: input, shape index: {}]
  %s2 = inlined_call_operand.vmem [shape: f32[3,1,128], index: 2, kind: input, shape index: {}]
  %s3 = inlined_call_operand.vmem [shape: f32[3,1,128], index: 3, kind: input, shape index: {}]
  %s4 = inlined_call_operand.vmem [shape: bf16[3,32,128], index: 4, kind: output, shape index: {}]
  %s5 = sld [smem:[#allocation0]]
  $region49: #{_lambda_.2} parent=0
    _
  %s7 = ssub.s32 1, %s5
  %s8 = scalar_select 0, %s7, %s5
  loop: start=0, step=1, limit=5
  $region2: #{_lambda_.2} parent=0 // loop_pre_header
    _
  $region3: #{_lambda_.2} parent=0 // loop_header
    %s10 = sphi 0, %s14
    %p11 = scmp.ge.s32.totalorder %s10, 5
    %s20 = sphi 0, %s22
    %s23 = sphi 0, %s20
    %s24 = sphi 0, %s23
    %s40 = sphi 0, %s24
    %s46 = sphi 0, %s48
    %s49 = sphi 0, %s46
    %s50 = sphi 0, %s49
    %s66 = sphi 0, %s50
    %s72 = sphi 0, %s74
    %s75 = sphi 0, %s72
    %s76 = sphi 0, %s75
    %s92 = sphi 0, %s76
    %s98 = sphi 0, %s100
    %s101 = sphi 0, %s98
    %s102 = sphi 0, %s101
    %s118 = sphi 0, %s102
    %s124 = sphi 0, %s126
    %s127 = sphi 0, %s124
    %s128 = sphi 0, %s127
    %s144 = sphi 0, %s128
  $region4: #{_lambda_.2} parent=0 // loop_header_branch
    %13 = sbr.rel (%p11) target = $region8
  $region5: #{_lambda_.2} parent=0 // loop_body
    %s15 = ssub.s32 %s10, 1
    %s16 = ssub.s32 %s10, 2
    %s17 = sadd.s32 %s10, 1
    %s18 = ssub.s32 %s10, %s17
    %p19 = scmp.eq.s32.totalorder %s18, 0
    %s21 = sadd.s32 %s20, 1
    %s22 = scalar_select %p19, %s20, %s21
    %p25 = pneg %p19
    %p26 = scmp.eq.s32.totalorder %s10, 2
    %p27 = por %p25, %p26
    %p28 = scmp.ne.s32.totalorder %s20, %s23
    %p29 = scmp.eq.s32.totalorder %s10, 0
    %p30 = por %p28, %p29
    %p31 = scmp.ne.s32.totalorder %s20, %s23
    %p32 = scmp.eq.s32.totalorder %s15, 2
    %p33 = por %p31, %p32
    %p34 = scmp.ne.s32.totalorder %s23, %s24
    %p35 = scmp.eq.s32.totalorder %s15, 0
    %p36 = por %p34, %p35
    %p37 = scmp.ne.s32.totalorder %s23, %s24
    %p38 = scmp.eq.s32.totalorder %s16, 2
    %p39 = por %p37, %p38
    %p41 = scmp.ne.s32.totalorder %s24, %s40
    %p42 = scmp.eq.s32.totalorder %s16, 0
    %p43 = por %p41, %p42
    %s44 = ssub.s32 %s10, %s17
    %p45 = scmp.eq.s32.totalorder %s44, 0
    %s47 = sadd.s32 %s46, 1
    %s48 = scalar_select %p45, %s46, %s47
    %p51 = pneg %p45
    %p52 = scmp.eq.s32.totalorder %s10, 2
    %p53 = por %p51, %p52
    %p54 = scmp.ne.s32.totalorder %s46, %s49
    %p55 = scmp.eq.s32.totalorder %s10, 0
    %p56 = por %p54, %p55
    %p57 = scmp.ne.s32.totalorder %s46, %s49
    %p58 = scmp.eq.s32.totalorder %s15, 2
    %p59 = por %p57, %p58
    %p60 = scmp.ne.s32.totalorder %s49, %s50
    %p61 = scmp.eq.s32.totalorder %s15, 0
    %p62 = por %p60, %p61
    %p63 = scmp.ne.s32.totalorder %s49, %s50
    %p64 = scmp.eq.s32.totalorder %s16, 2
    %p65 = por %p63, %p64
    %p67 = scmp.ne.s32.totalorder %s50, %s66
    %p68 = scmp.eq.s32.totalorder %s16, 0
    %p69 = por %p67, %p68
    %s70 = ssub.s32 %s10, %s17
    %p71 = scmp.eq.s32.totalorder %s70, 0
    %s73 = sadd.s32 %s72, 1
    %s74 = scalar_select %p71, %s72, %s73
    %p77 = pneg %p71
    %p78 = scmp.eq.s32.totalorder %s10, 2
    %p79 = por %p77, %p78
    %p80 = scmp.ne.s32.totalorder %s72, %s75
    %p81 = scmp.eq.s32.totalorder %s10, 0
    %p82 = por %p80, %p81
    %p83 = scmp.ne.s32.totalorder %s72, %s75
    %p84 = scmp.eq.s32.totalorder %s15, 2
    %p85 = por %p83, %p84
    %p86 = scmp.ne.s32.totalorder %s75, %s76
    %p87 = scmp.eq.s32.totalorder %s15, 0
    %p88 = por %p86, %p87
    %p89 = scmp.ne.s32.totalorder %s75, %s76
    %p90 = scmp.eq.s32.totalorder %s16, 2
    %p91 = por %p89, %p90
    %p93 = scmp.ne.s32.totalorder %s76, %s92
    %p94 = scmp.eq.s32.totalorder %s16, 0
    %p95 = por %p93, %p94
    %s96 = ssub.s32 %s10, %s17
    %p97 = scmp.eq.s32.totalorder %s96, 0
    %s99 = sadd.s32 %s98, 1
    %s100 = scalar_select %p97, %s98, %s99
    %p103 = pneg %p97
    %p104 = scmp.eq.s32.totalorder %s10, 2
    %p105 = por %p103, %p104
    %p106 = scmp.ne.s32.totalorder %s98, %s101
    %p107 = scmp.eq.s32.totalorder %s10, 0
    %p108 = por %p106, %p107
    %p109 = scmp.ne.s32.totalorder %s98, %s101
    %p110 = scmp.eq.s32.totalorder %s15, 2
    %p111 = por %p109, %p110
    %p112 = scmp.ne.s32.totalorder %s101, %s102
    %p113 = scmp.eq.s32.totalorder %s15, 0
    %p114 = por %p112, %p113
    %p115 = scmp.ne.s32.totalorder %s101, %s102
    %p116 = scmp.eq.s32.totalorder %s16, 2
    %p117 = por %p115, %p116
    %p119 = scmp.ne.s32.totalorder %s102, %s118
    %p120 = scmp.eq.s32.totalorder %s16, 0
    %p121 = por %p119, %p120
    %s122 = ssub.s32 %s10, %s17
    %p123 = scmp.eq.s32.totalorder %s122, 0
    %s125 = sadd.s32 %s124, 1
    %s126 = scalar_select %p123, %s124, %s125
    %p129 = pneg %p123
    %p130 = scmp.eq.s32.totalorder %s10, 2
    %p131 = por %p129, %p130
    %p132 = scmp.ne.s32.totalorder %s124, %s127
    %p133 = scmp.eq.s32.totalorder %s10, 0
    %p134 = por %p132, %p133
    %p135 = scmp.ne.s32.totalorder %s124, %s127
    %p136 = scmp.eq.s32.totalorder %s15, 2
    %p137 = por %p135, %p136
    %p138 = scmp.ne.s32.totalorder %s127, %s128
    %p139 = scmp.eq.s32.totalorder %s15, 0
    %p140 = por %p138, %p139
    %p141 = scmp.ne.s32.totalorder %s127, %s128
    %p142 = scmp.eq.s32.totalorder %s16, 2
    %p143 = por %p141, %p142
    %p145 = scmp.ne.s32.totalorder %s128, %s144
    %p146 = scmp.eq.s32.totalorder %s16, 0
    %p147 = por %p145, %p146
    %p148 = scmp.le.s32.totalorder 1, %s10
    %p149 = scmp.lt.s32.totalorder %s10, 4
    %p150 = pnand %p148, %p149
    %p151 = pneg %p150
    // Predicated region
    $region9: #{_lambda_.2} parent=5 // pred_check
      _
    $region10: #{_lambda_.2} parent=5 // pred_check_branch
      %153 = sbr.rel (%p150) target = $region12
    $region11: #{_lambda_.2} parent=5 // pred_region
      %s154 = ssub.s32 %s10, 1
    $region12: #{_lambda_.2} parent=5 // pred_fallthru
      _
    %p155 = scmp.lt.s32.totalorder %s10, 3
    // Predicated region
    $region13: #{_lambda_.2} parent=5 // pred_check
      %p156 = pneg %p155
    $region14: #{_lambda_.2} parent=5 // pred_check_branch
      %158 = sbr.rel (%p156) target = $region16
    $region15: #{_lambda_.2} parent=5 // pred_region
      // Predicated region
      $region17: #{_lambda_.2} parent=15 // pred_check
        %p159 = pneg %p30
      $region18: #{_lambda_.2} parent=15 // pred_check_branch
        %161 = sbr.rel (%p159) target = $region20
      $region19: #{_lambda_.2} parent=15 // pred_region
        %p162 = scmp.lt.s32.totalorder %s10, 2
        %s163 = scalar_select %p162, %s10, 2
        %s164 = smul.addr %s163, 4
        %s165 = smul.addr %s164, 4
        %s166 = scalar_lea.vmem %s0, %s165
      $region20: #{_lambda_.2} parent=15 // pred_fallthru
        _
      // Predicated region
      $region21: #{_lambda_.2} parent=15 // pred_check
        %p167 = pneg %p56
      $region22: #{_lambda_.2} parent=15 // pred_check_branch
        %169 = sbr.rel (%p167) target = $region24
      $region23: #{_lambda_.2} parent=15 // pred_region
        %p170 = scmp.lt.s32.totalorder %s10, 2
        %s171 = scalar_select %p170, %s10, 2
        %s172 = smul.addr %s171, 2
        %s173 = scalar_lea.vmem %s1, %s172
      $region24: #{_lambda_.2} parent=15 // pred_fallthru
        _
      // Predicated region
      $region25: #{_lambda_.2} parent=15 // pred_check
        %p174 = pneg %p82
      $region26: #{_lambda_.2} parent=15 // pred_check_branch
        %176 = sbr.rel (%p174) target = $region28
      $region27: #{_lambda_.2} parent=15 // pred_region
        %p177 = scmp.lt.s32.totalorder %s10, 2
        %s178 = scalar_select %p177, %s10, 2
        %s179 = scalar_lea.vmem %s2, %s178
      $region28: #{_lambda_.2} parent=15 // pred_fallthru
        _
      // Predicated region
      $region29: #{_lambda_.2} parent=15 // pred_check
        %p180 = pneg %p108
      $region30: #{_lambda_.2} parent=15 // pred_check_branch
        %182 = sbr.rel (%p180) target = $region32
      $region31: #{_lambda_.2} parent=15 // pred_region
        %p183 = scmp.lt.s32.totalorder %s10, 2
        %s184 = scalar_select %p183, %s10, 2
        %s185 = scalar_lea.vmem %s3, %s184
      $region32: #{_lambda_.2} parent=15 // pred_fallthru
        _
    $region16: #{_lambda_.2} parent=5 // pred_fallthru
      _
    %p186 = scmp.le.s32.totalorder 1, %s10
    %p187 = scmp.lt.s32.totalorder %s10, 4
    %p188 = pnand %p186, %p187
    %p189 = pneg %p188
    // Predicated region
    $region33: #{_lambda_.2} parent=5 // pred_check
      _
    $region34: #{_lambda_.2} parent=5 // pred_check_branch
      %191 = sbr.rel (%p188) target = $region36
    $region35: #{_lambda_.2} parent=5 // pred_region
      %s192 = ssub.s32 %s10, 1
      %p193 = scmp.lt.s32.totalorder %s15, 2
      %s194 = scalar_select %p193, %s15, 2
      %s195 = smul.addr %s194, 4
      %s196 = smul.addr %s195, 4
      %s197 = scalar_lea.vmem %s0, %s196
      %p198 = pneg %p36
      %p199 = pneg %p33
      %p200 = scmp.lt.s32.totalorder %s15, 2
      %s201 = scalar_select %p200, %s15, 2
      %s202 = smul.addr %s201, 2
      %s203 = scalar_lea.vmem %s1, %s202
      %p204 = pneg %p62
      %p205 = pneg %p59
      %p206 = scmp.lt.s32.totalorder %s15, 2
      %s207 = scalar_select %p206, %s15, 2
      %s208 = scalar_lea.vmem %s2, %s207
      %p209 = pneg %p88
      %p210 = pneg %p85
      %p211 = scmp.lt.s32.totalorder %s15, 2
      %s212 = scalar_select %p211, %s15, 2
      %s213 = scalar_lea.vmem %s3, %s212
      %p214 = pneg %p114
      %p215 = pneg %p111
      %p216 = pneg %p140
      %p217 = pneg %p137
      %p218 = scmp.lt.s32.totalorder %s15, 2
      %s219 = scalar_select %p218, %s15, 2
      %s220 = smul.addr %s219, 4
      %s221 = smul.addr %s220, 4
      %s222 = scalar_lea.vmem %s4, %s221
      %p223 = scmp.lt.s32.totalorder %s15, 2
      %s224 = scalar_select %p223, %s15, 2
      %s225 = smul.addr %s224, 4
      %s226 = smul.addr %s225, 4
      %s227 = scalar_lea.vmem %s0, %s226
      %p228 = scmp.lt.s32.totalorder %s15, 2
      %s229 = scalar_select %p228, %s15, 2
      %s230 = smul.addr %s229, 2
      %s231 = scalar_lea.vmem %s1, %s230
      %p232 = scmp.lt.s32.totalorder %s15, 2
      %s233 = scalar_select %p232, %s15, 2
      %s234 = scalar_lea.vmem %s2, %s233
      %p235 = scmp.lt.s32.totalorder %s15, 2
      %s236 = scalar_select %p235, %s15, 2
      %s237 = scalar_lea.vmem %s3, %s236
      %p238 = scmp.lt.s32.totalorder %s15, 2
      %s239 = scalar_select %p238, %s15, 2
      %s240 = smul.addr %s239, 4
      %s241 = smul.addr %s240, 4
      %s242 = scalar_lea.vmem %s4, %s241
      %v244 = vld [vmem:[%s227] sm:$0xf]
      %v245 = vld [vmem:[%s227 + $0x4] sm:$0xf]
      %v246 = vld [vmem:[%s227 + $0x8] sm:$0xf]
      %v247 = vld [vmem:[%s227 + $0xc] sm:$0xf]
      %v248 = vld [vmem:[%s231] sm:$0x3]
      %v253 = vunpack.c.l.b16 %v244
      %v254 = vunpack.c.l.b16 %v245
      %v255 = vunpack.c.l.b16 %v246
      %v256 = vunpack.c.l.b16 %v247
      %v257 = vpack.c.b16 %v254, %v253
      %v258 = vpack.c.b16 %v256, %v255
      %vm259 = vcmask 31744
      %v261 = vsel %vm259, %v257, 0
      %v264 = vsel %vm259, %v258, 0
      %vm266 = vcmask 1041408
      %v268 = vsel %vm266, %v248, 0
      %270 = vmatpush.bf16.msra.mxu0 0
      %271 = vmatpush.bf16.msra.mxu0 0
      %272 = vmatpush.bf16.msra.mxu0 0
      %273 = vmatpush.bf16.msra.mxu0 0
      %274 = vmatpush.bf16.msra.mxu0 0
      %275 = vmatpush.bf16.msra.mxu0 0
      %276 = vmatpush.bf16.msra.mxu0 0
      %277 = vmatpush.bf16.msra.mxu0 %v268
      %278 = vmatmul.bf16.gmra.mxu0 %v261
      %v279 = vpop.f32.mrf.mxu0
      %v280 = vadd.f32 0.0, %v279
      %v281 = vpop.f32.mrf.mxu0
      %v282 = vadd.f32 0.0, %v281
      %283 = vmatmul.bf16.gmra.mxu0 %v264
      %v284 = vpop.f32.mrf.mxu0
      %v285 = vadd.f32 0.0, %v284
      %v286 = vpop.f32.mrf.mxu0
      %v287 = vadd.f32 0.0, %v286
      %288 = vdwg.mxu0
      %v289 = vld [vmem:[%s234] sm:$0x1]
      %v291 = vperm.slane %v289, 0
      %v293 = vmul.f32 %v280, %v291
      %v294 = vmul.f32 %v282, %v291
      %v295 = vmul.f32 %v285, %v291
      %v296 = vmul.f32 %v287, %v291
      %v297 = vld [vmem:[%s237] sm:$0x1]
      %v299 = vperm.slane %v297, 0
      %v301 = vadd.f32 %v293, %v299
      %v302 = vadd.f32 %v294, %v299
      %v303 = vadd.f32 %v295, %v299
      %v304 = vadd.f32 %v296, %v299
      %v305 = vmax.f32 %v301, 0.0
      %v306 = vmax.f32 %v302, 0.0
      %v307 = vmax.f32 %v303, 0.0
      %v308 = vmax.f32 %v304, 0.0
      %v309 = vpack.c.bf16 %v305, %v305
      %v310 = vpack.c.bf16 %v306, %v306
      %v311 = vpack.c.bf16 %v307, %v307
      %v312 = vpack.c.bf16 %v308, %v308
      %313 = vst [vmem:[%s242] sm:$0xf] %v309
      %314 = vst [vmem:[%s242 + $0x4] sm:$0xf] %v310
      %315 = vst [vmem:[%s242 + $0x8] sm:$0xf] %v311
      %316 = vst [vmem:[%s242 + $0xc] sm:$0xf] %v312
      %p317 = scmp.lt.s32.totalorder %s15, 2
      %s318 = scalar_select %p317, %s15, 2
      %s319 = smul.addr %s318, 4
      %s320 = smul.addr %s319, 4
      %s321 = scalar_lea.vmem %s4, %s320
      // Predicated region
      $region37: #{_lambda_.2} parent=35 // pred_check
        %p322 = pneg %p137
      $region38: #{_lambda_.2} parent=35 // pred_check_branch
        %324 = sbr.rel (%p322) target = $region40
      $region39: #{_lambda_.2} parent=35 // pred_region
        _
      $region40: #{_lambda_.2} parent=35 // pred_fallthru
        _
    $region36: #{_lambda_.2} parent=5 // pred_fallthru
      _
    %p325 = scmp.le.s32.totalorder 2, %s10
    // Predicated region
    $region41: #{_lambda_.2} parent=5 // pred_check
      %p326 = pneg %p325
    $region42: #{_lambda_.2} parent=5 // pred_check_branch
      %328 = sbr.rel (%p326) target = $region44
    $region43: #{_lambda_.2} parent=5 // pred_region
      %s329 = ssub.s32 %s10, 2
      // Predicated region
      $region45: #{_lambda_.2} parent=43 // pred_check
        %p330 = pneg %p143
      $region46: #{_lambda_.2} parent=43 // pred_check_branch
        %332 = sbr.rel (%p330) target = $region48
      $region47: #{_lambda_.2} parent=43 // pred_region
        %p333 = scmp.lt.s32.totalorder %s16, 2
        %s334 = scalar_select %p333, %s16, 2
        %s335 = smul.addr %s334, 4
        %s336 = smul.addr %s335, 4
        %s337 = scalar_lea.vmem %s4, %s336
      $region48: #{_lambda_.2} parent=43 // pred_fallthru
        _
    $region44: #{_lambda_.2} parent=5 // pred_fallthru
      _
  $region6: #{_lambda_.2} parent=0 // loop_footer
    %s14 = sadd.s32 1, %s10
  $region7: #{_lambda_.2} parent=0 // loop_footer_branch
    %9 = sbr.rel target = $region3
  $region8: #{_lambda_.2} parent=0 // loop_exit
    _

// kernel: _lambda_.3
$region0: #{_lambda_.3}
  #allocation0 [shape = 'u32[]', space=smem, size = 0x4, offset = 0x4, fixed_abs, tag = 'smem constant byte address 0x4 - core index']
  #allocation1 [shape = 'u32[72,128]{1,0:T(1,128)}', space=vmem, size = 0x9000, scoped, tag = 'internal scratch']
  #allocation2 [shape = 'f32[288,128]{1,0:T(8,128)}', space=vmem, size = 0x24000, scoped, tag = 'scratch operand']
  %s0 = inlined_call_operand.vmem [shape: bf16[4,2,1,342,8], index: 0, kind: input, shape index: {}]
  %s1 = inlined_call_operand.vmem [shape: bf16[4,9,8,128], index: 1, kind: input, shape index: {}]
  %s2 = inlined_call_operand.vmem [shape: f32[1,128], index: 2, kind: input, shape index: {}]
  %s3 = inlined_call_operand.vmem [shape: f32[1,128], index: 3, kind: input, shape index: {}]
  %s4 = inlined_call_operand.vmem [shape: f32[2,288,128], index: 4, kind: output, shape index: {}]
  %s5 = sld [smem:[#allocation0]]
  $region57: #{_lambda_.3} parent=0
    _
  %s7 = ssub.s32 1, %s5
  %s8 = scalar_select 0, %s7, %s5
  loop: start=0, step=1, limit=10
  $region2: #{_lambda_.3} parent=0 // loop_pre_header
    _
  $region3: #{_lambda_.3} parent=0 // loop_header
    %s10 = sphi 0, %s14
    %p11 = scmp.ge.s32.totalorder %s10, 10
    %s17 = sphi 0, %s43
    %s18 = sphi 0, %s39
    %s19 = sphi 0, %s35
    %s20 = sphi 0, %s31
    %s21 = sphi 0, %s17
    %s22 = sphi 0, %s18
    %s23 = sphi 0, %s19
    %s24 = sphi 0, %s20
    %s25 = sphi 0, %s21
    %s26 = sphi 0, %s22
    %s27 = sphi 0, %s23
    %s28 = sphi 0, %s24
    %s50 = sphi 0, %s52
    %s53 = sphi 0, %s50
    %s54 = sphi 0, %s53
    %s70 = sphi 0, %s54
    %s78 = sphi 0, %s80
    %s81 = sphi 0, %s78
    %s82 = sphi 0, %s81
    %s98 = sphi 0, %s82
    %s104 = sphi 0, %s106
    %s107 = sphi 0, %s104
    %s108 = sphi 0, %s107
    %s124 = sphi 0, %s108
    %s130 = sphi 0, %s132
    %s133 = sphi 0, %s130
    %s134 = sphi 0, %s133
    %s150 = sphi 0, %s134
    %s160 = sphi 0, %s162
    %s163 = sphi 0, %s160
    %s164 = sphi 0, %s163
    %s180 = sphi 0, %s164
  $region4: #{_lambda_.3} parent=0 // loop_header_branch
    %13 = sbr.rel (%p11) target = $region8
  $region5: #{_lambda_.3} parent=0 // loop_body
    %s15 = ssub.s32 %s10, 1
    %s16 = ssub.s32 %s10, 2
    %s29 = sadd.s32 1, %s20
    %p30 = scmp.ge.s32.totalorder %s29, 4
    %s31 = scalar_select %p30, 0, %s29
    %s32 = sadd.s32 1, %s19
    %s33 = scalar_select %p30, %s32, %s19
    %p34 = scmp.ge.s32.totalorder %s33, 1
    %s35 = scalar_select %p34, 0, %s33
    %s36 = sadd.s32 1, %s18
    %s37 = scalar_select %p34, %s36, %s18
    %p38 = scmp.ge.s32.totalorder %s37, 1
    %s39 = scalar_select %p38, 0, %s37
    %s40 = sadd.s32 1, %s17
    %s41 = scalar_select %p38, %s40, %s17
    %p42 = scmp.ge.s32.totalorder %s41, 2
    %s43 = scalar_select %p42, 0, %s41
    %s44 = ssub.s32 %s20, %s31
    %s45 = ssub.s32 %s17, %s43
    %s46 = sor.u32 %s44, %s45
    %s47 = ssub.s32 %s18, %s39
    %s48 = sor.u32 %s46, %s47
    %p49 = scmp.eq.s32.totalorder %s48, 0
    %s51 = sadd.s32 %s50, 1
    %s52 = scalar_select %p49, %s50, %s51
    %p55 = pneg %p49
    %p56 = scmp.eq.s32.totalorder %s10, 7
    %p57 = por %p55, %p56
    %p58 = scmp.ne.s32.totalorder %s50, %s53
    %p59 = scmp.eq.s32.totalorder %s10, 0
    %p60 = por %p58, %p59
    %p61 = scmp.ne.s32.totalorder %s50, %s53
    %p62 = scmp.eq.s32.totalorder %s15, 7
    %p63 = por %p61, %p62
    %p64 = scmp.ne.s32.totalorder %s53, %s54
    %p65 = scmp.eq.s32.totalorder %s15, 0
    %p66 = por %p64, %p65
    %p67 = scmp.ne.s32.totalorder %s53, %s54
    %p68 = scmp.eq.s32.totalorder %s16, 7
    %p69 = por %p67, %p68
    %p71 = scmp.ne.s32.totalorder %s54, %s70
    %p72 = scmp.eq.s32.totalorder %s16, 0
    %p73 = por %p71, %p72
    %s74 = ssub.s32 %s20, %s31
    %s75 = ssub.s32 %s19, %s35
    %s76 = sor.u32 %s74, %s75
    %p77 = scmp.eq.s32.totalorder %s76, 0
    %s79 = sadd.s32 %s78, 1
    %s80 = scalar_select %p77, %s78, %s79
    %p83 = pneg %p77
    %p84 = scmp.eq.s32.totalorder %s10, 7
    %p85 = por %p83, %p84
    %p86 = scmp.ne.s32.totalorder %s78, %s81
    %p87 = scmp.eq.s32.totalorder %s10, 0
    %p88 = por %p86, %p87
    %p89 = scmp.ne.s32.totalorder %s78, %s81
    %p90 = scmp.eq.s32.totalorder %s15, 7
    %p91 = por %p89, %p90
    %p92 = scmp.ne.s32.totalorder %s81, %s82
    %p93 = scmp.eq.s32.totalorder %s15, 0
    %p94 = por %p92, %p93
    %p95 = scmp.ne.s32.totalorder %s81, %s82
    %p96 = scmp.eq.s32.totalorder %s16, 7
    %p97 = por %p95, %p96
    %p99 = scmp.ne.s32.totalorder %s82, %s98
    %p100 = scmp.eq.s32.totalorder %s16, 0
    %p101 = por %p99, %p100
    %s102 = ssub.s32 %s19, %s35
    %p103 = scmp.eq.s32.totalorder %s102, 0
    %s105 = sadd.s32 %s104, 1
    %s106 = scalar_select %p103, %s104, %s105
    %p109 = pneg %p103
    %p110 = scmp.eq.s32.totalorder %s10, 7
    %p111 = por %p109, %p110
    %p112 = scmp.ne.s32.totalorder %s104, %s107
    %p113 = scmp.eq.s32.totalorder %s10, 0
    %p114 = por %p112, %p113
    %p115 = scmp.ne.s32.totalorder %s104, %s107
    %p116 = scmp.eq.s32.totalorder %s15, 7
    %p117 = por %p115, %p116
    %p118 = scmp.ne.s32.totalorder %s107, %s108
    %p119 = scmp.eq.s32.totalorder %s15, 0
    %p120 = por %p118, %p119
    %p121 = scmp.ne.s32.totalorder %s107, %s108
    %p122 = scmp.eq.s32.totalorder %s16, 7
    %p123 = por %p121, %p122
    %p125 = scmp.ne.s32.totalorder %s108, %s124
    %p126 = scmp.eq.s32.totalorder %s16, 0
    %p127 = por %p125, %p126
    %s128 = ssub.s32 %s19, %s35
    %p129 = scmp.eq.s32.totalorder %s128, 0
    %s131 = sadd.s32 %s130, 1
    %s132 = scalar_select %p129, %s130, %s131
    %p135 = pneg %p129
    %p136 = scmp.eq.s32.totalorder %s10, 7
    %p137 = por %p135, %p136
    %p138 = scmp.ne.s32.totalorder %s130, %s133
    %p139 = scmp.eq.s32.totalorder %s10, 0
    %p140 = por %p138, %p139
    %p141 = scmp.ne.s32.totalorder %s130, %s133
    %p142 = scmp.eq.s32.totalorder %s15, 7
    %p143 = por %p141, %p142
    %p144 = scmp.ne.s32.totalorder %s133, %s134
    %p145 = scmp.eq.s32.totalorder %s15, 0
    %p146 = por %p144, %p145
    %p147 = scmp.ne.s32.totalorder %s133, %s134
    %p148 = scmp.eq.s32.totalorder %s16, 7
    %p149 = por %p147, %p148
    %p151 = scmp.ne.s32.totalorder %s134, %s150
    %p152 = scmp.eq.s32.totalorder %s16, 0
    %p153 = por %p151, %p152
    %s154 = ssub.s32 %s17, %s43
    %s155 = ssub.s32 %s18, %s39
    %s156 = sor.u32 %s154, %s155
    %s157 = ssub.s32 %s19, %s35
    %s158 = sor.u32 %s156, %s157
    %p159 = scmp.eq.s32.totalorder %s158, 0
    %s161 = sadd.s32 %s160, 1
    %s162 = scalar_select %p159, %s160, %s161
    %p165 = pneg %p159
    %p166 = scmp.eq.s32.totalorder %s10, 7
    %p167 = por %p165, %p166
    %p168 = scmp.ne.s32.totalorder %s160, %s163
    %p169 = scmp.eq.s32.totalorder %s10, 0
    %p170 = por %p168, %p169
    %p171 = scmp.ne.s32.totalorder %s160, %s163
    %p172 = scmp.eq.s32.totalorder %s15, 7
    %p173 = por %p171, %p172
    %p174 = scmp.ne.s32.totalorder %s163, %s164
    %p175 = scmp.eq.s32.totalorder %s15, 0
    %p176 = por %p174, %p175
    %p177 = scmp.ne.s32.totalorder %s163, %s164
    %p178 = scmp.eq.s32.totalorder %s16, 7
    %p179 = por %p177, %p178
    %p181 = scmp.ne.s32.totalorder %s164, %s180
    %p182 = scmp.eq.s32.totalorder %s16, 0
    %p183 = por %p181, %p182
    %p184 = scmp.le.s32.totalorder 1, %s10
    %p185 = scmp.lt.s32.totalorder %s10, 9
    %p186 = pnand %p184, %p185
    %p187 = pneg %p186
    // Predicated region
    $region9: #{_lambda_.3} parent=5 // pred_check
      _
    $region10: #{_lambda_.3} parent=5 // pred_check_branch
      %189 = sbr.rel (%p186) target = $region12
    $region11: #{_lambda_.3} parent=5 // pred_region
      %s190 = ssub.s32 %s10, 1
      // Predicated region
      $region13: #{_lambda_.3} parent=11 // pred_check
        %p191 = pneg %p120
      $region14: #{_lambda_.3} parent=11 // pred_check_branch
        %193 = sbr.rel (%p191) target = $region16
      $region15: #{_lambda_.3} parent=11 // pred_region
        %p194 = scmp.lt.s32.totalorder %s23, 0
        %s195 = scalar_select %p194, %s23, 0
        %s196 = scalar_lea.vmem %s2, %s195
      $region16: #{_lambda_.3} parent=11 // pred_fallthru
        _
      // Predicated region
      $region17: #{_lambda_.3} parent=11 // pred_check
        %p197 = pneg %p146
      $region18: #{_lambda_.3} parent=11 // pred_check_branch
        %199 = sbr.rel (%p197) target = $region20
      $region19: #{_lambda_.3} parent=11 // pred_region
        %p200 = scmp.lt.s32.totalorder %s23, 0
        %s201 = scalar_select %p200, %s23, 0
        %s202 = scalar_lea.vmem %s3, %s201
      $region20: #{_lambda_.3} parent=11 // pred_fallthru
        _
    $region12: #{_lambda_.3} parent=5 // pred_fallthru
      _
    %p203 = scmp.lt.s32.totalorder %s10, 8
    // Predicated region
    $region21: #{_lambda_.3} parent=5 // pred_check
      %p204 = pneg %p203
    $region22: #{_lambda_.3} parent=5 // pred_check_branch
      %206 = sbr.rel (%p204) target = $region24
    $region23: #{_lambda_.3} parent=5 // pred_region
      // Predicated region
      $region25: #{_lambda_.3} parent=23 // pred_check
        %p207 = pneg %p60
      $region26: #{_lambda_.3} parent=23 // pred_check_branch
        %209 = sbr.rel (%p207) target = $region28
      $region27: #{_lambda_.3} parent=23 // pred_region
        %p210 = scmp.lt.s32.totalorder %s20, 3
        %s211 = scalar_select %p210, %s20, 3
        %p212 = scmp.lt.s32.totalorder %s17, 1
        %s213 = scalar_select %p212, %s17, 1
        %p214 = scmp.lt.s32.totalorder %s18, 0
        %s215 = scalar_select %p214, %s18, 0
        %s216 = smul.addr %s215, 43
        %s217 = smul.addr %s213, 43
        %s218 = sadd.s32 %s216, %s217
        %s219 = smul.addr %s211, 86
        %s220 = sadd.s32 %s218, %s219
        %s221 = smul.addr %s220, 4
        %s222 = scalar_lea.vmem %s0, %s221
      $region28: #{_lambda_.3} parent=23 // pred_fallthru
        _
      // Predicated region
      $region29: #{_lambda_.3} parent=23 // pred_check
        %p223 = pneg %p88
      $region30: #{_lambda_.3} parent=23 // pred_check_branch
        %225 = sbr.rel (%p223) target = $region32
      $region31: #{_lambda_.3} parent=23 // pred_region
        %p226 = scmp.lt.s32.totalorder %s20, 3
        %s227 = scalar_select %p226, %s20, 3
        %p228 = scmp.lt.s32.totalorder %s19, 0
        %s229 = scalar_select %p228, %s19, 0
        %s230 = smul.addr %s227, 9
        %s231 = sadd.s32 %s229, %s230
        %s232 = smul.addr %s231, 4
        %s233 = scalar_lea.vmem %s1, %s232
      $region32: #{_lambda_.3} parent=23 // pred_fallthru
        _
    $region24: #{_lambda_.3} parent=5 // pred_fallthru
      _
    %p234 = scmp.le.s32.totalorder 1, %s10
    %p235 = scmp.lt.s32.totalorder %s10, 9
    %p236 = pnand %p234, %p235
    %p237 = pneg %p236
    // Predicated region
    $region33: #{_lambda_.3} parent=5 // pred_check
      _
    $region34: #{_lambda_.3} parent=5 // pred_check_branch
      %239 = sbr.rel (%p236) target = $region36
    $region35: #{_lambda_.3} parent=5 // pred_region
      %s240 = ssub.s32 %s10, 1
      %p241 = scmp.lt.s32.totalorder %s24, 3
      %s242 = scalar_select %p241, %s24, 3
      %p243 = scmp.lt.s32.totalorder %s21, 1
      %s244 = scalar_select %p243, %s21, 1
      %p245 = scmp.lt.s32.totalorder %s22, 0
      %s246 = scalar_select %p245, %s22, 0
      %s247 = smul.addr %s246, 43
      %s248 = smul.addr %s244, 43
      %s249 = sadd.s32 %s247, %s248
      %s250 = smul.addr %s242, 86
      %s251 = sadd.s32 %s249, %s250
      %s252 = smul.addr %s251, 4
      %s253 = scalar_lea.vmem %s0, %s252
      %p254 = pneg %p66
      %p255 = pneg %p63
      %p256 = scmp.lt.s32.totalorder %s24, 3
      %s257 = scalar_select %p256, %s24, 3
      %p258 = scmp.lt.s32.totalorder %s23, 0
      %s259 = scalar_select %p258, %s23, 0
      %s260 = smul.addr %s257, 9
      %s261 = sadd.s32 %s259, %s260
      %s262 = smul.addr %s261, 4
      %s263 = scalar_lea.vmem %s1, %s262
      %p264 = pneg %p94
      %p265 = pneg %p91
      %p266 = scmp.lt.s32.totalorder %s23, 0
      %s267 = scalar_select %p266, %s23, 0
      %s268 = scalar_lea.vmem %s2, %s267
      %p269 = pneg %p120
      %p270 = pneg %p117
      %p271 = scmp.lt.s32.totalorder %s23, 0
      %s272 = scalar_select %p271, %s23, 0
      %s273 = scalar_lea.vmem %s3, %s272
      %p274 = pneg %p146
      %p275 = pneg %p143
      %p276 = pneg %p176
      %p277 = pneg %p173
      %s278 = smul.u32 36, %s22
      %p279 = scmp.lt.s32.totalorder %s21, 1
      %s280 = scalar_select %p279, %s21, 1
      %p281 = scmp.lt.s32.totalorder %s278, 35
      %s282 = scalar_select %p281, %s278, 35
      %p283 = scmp.lt.s32.totalorder %s23, 0
      %s284 = scalar_select %p283, %s23, 0
      %s285 = sadd.s32 %s284, %s282
      %s286 = smul.addr %s280, 36
      %s287 = sadd.s32 %s285, %s286
      %s288 = smul.addr %s287, 8
      %s289 = scalar_lea.vmem %s4, %s288
      %p290 = scmp.lt.s32.totalorder %s24, 3
      %s291 = scalar_select %p290, %s24, 3
      %p292 = scmp.lt.s32.totalorder %s21, 1
      %s293 = scalar_select %p292, %s21, 1
      %p294 = scmp.lt.s32.totalorder %s22, 0
      %s295 = scalar_select %p294, %s22, 0
      %s296 = smul.addr %s295, 43
      %s297 = smul.addr %s293, 43
      %s298 = sadd.s32 %s296, %s297
      %s299 = smul.addr %s291, 86
      %s300 = sadd.s32 %s298, %s299
      %s301 = smul.addr %s300, 4
      %s302 = scalar_lea.vmem %s0, %s301
      %p303 = scmp.lt.s32.totalorder %s24, 3
      %s304 = scalar_select %p303, %s24, 3
      %p305 = scmp.lt.s32.totalorder %s23, 0
      %s306 = scalar_select %p305, %s23, 0
      %s307 = smul.addr %s304, 9
      %s308 = sadd.s32 %s306, %s307
      %s309 = smul.addr %s308, 4
      %s310 = scalar_lea.vmem %s1, %s309
      %p311 = scmp.lt.s32.totalorder %s23, 0
      %s312 = scalar_select %p311, %s23, 0
      %s313 = scalar_lea.vmem %s2, %s312
      %p314 = scmp.lt.s32.totalorder %s23, 0
      %s315 = scalar_select %p314, %s23, 0
      %s316 = scalar_lea.vmem %s3, %s315
      %s317 = smul.u32 36, %s22
      %p318 = scmp.lt.s32.totalorder %s21, 1
      %s319 = scalar_select %p318, %s21, 1
      %p320 = scmp.lt.s32.totalorder %s317, 35
      %s321 = scalar_select %p320, %s317, 35
      %p322 = scmp.lt.s32.totalorder %s23, 0
      %s323 = scalar_select %p322, %s23, 0
      %s324 = sadd.s32 %s323, %s321
      %s325 = smul.addr %s319, 36
      %s326 = sadd.s32 %s324, %s325
      %s327 = smul.addr %s326, 8
      %s328 = scalar_lea.vmem %s4, %s327
      %s329 = smul.u32 36, %s22
      %p331 = scmp.eq.s32.totalorder %s24, 0
      // Predicated region
      $region37: #{_lambda_.3} parent=35 // pred_check
        %p332 = pneg %p331
      $region38: #{_lambda_.3} parent=35 // pred_check_branch
        %334 = sbr.rel (%p332) target = $region40
      $region39: #{_lambda_.3} parent=35 // pred_region
        %335 = vst [vmem:[#allocation2] sm:$0xff] 0.0
        %336 = vst [vmem:[#allocation2 + $0x8] sm:$0xff] 0.0
        %337 = vst [vmem:[#allocation2 + $0x10] sm:$0xff] 0.0
        %338 = vst [vmem:[#allocation2 + $0x18] sm:$0xff] 0.0
        %339 = vst [vmem:[#allocation2 + $0x20] sm:$0xff] 0.0
        %340 = vst [vmem:[#allocation2 + $0x28] sm:$0xff] 0.0
        %341 = vst [vmem:[#allocation2 + $0x30] sm:$0xff] 0.0
        %342 = vst [vmem:[#allocation2 + $0x38] sm:$0xff] 0.0
        %343 = vst [vmem:[#allocation2 + $0x40] sm:$0xff] 0.0
        %344 = vst [vmem:[#allocation2 + $0x48] sm:$0xff] 0.0
        %345 = vst [vmem:[#allocation2 + $0x50] sm:$0xff] 0.0
        %346 = vst [vmem:[#allocation2 + $0x58] sm:$0xff] 0.0
        %347 = vst [vmem:[#allocation2 + $0x60] sm:$0xff] 0.0
        %348 = vst [vmem:[#allocation2 + $0x68] sm:$0xff] 0.0
        %349 = vst [vmem:[#allocation2 + $0x70] sm:$0xff] 0.0
        %350 = vst [vmem:[#allocation2 + $0x78] sm:$0xff] 0.0
        %351 = vst [vmem:[#allocation2 + $0x80] sm:$0xff] 0.0
        %352 = vst [vmem:[#allocation2 + $0x88] sm:$0xff] 0.0
        %353 = vst [vmem:[#allocation2 + $0x90] sm:$0xff] 0.0
        %354 = vst [vmem:[#allocation2 + $0x98] sm:$0xff] 0.0
        %355 = vst [vmem:[#allocation2 + $0xa0] sm:$0xff] 0.0
        %356 = vst [vmem:[#allocation2 + $0xa8] sm:$0xff] 0.0
        %357 = vst [vmem:[#allocation2 + $0xb0] sm:$0xff] 0.0
        %358 = vst [vmem:[#allocation2 + $0xb8] sm:$0xff] 0.0
        %359 = vst [vmem:[#allocation2 + $0xc0] sm:$0xff] 0.0
        %360 = vst [vmem:[#allocation2 + $0xc8] sm:$0xff] 0.0
        %361 = vst [vmem:[#allocation2 + $0xd0] sm:$0xff] 0.0
        %362 = vst [vmem:[#allocation2 + $0xd8] sm:$0xff] 0.0
        %363 = vst [vmem:[#allocation2 + $0xe0] sm:$0xff] 0.0
        %364 = vst [vmem:[#allocation2 + $0xe8] sm:$0xff] 0.0
        %365 = vst [vmem:[#allocation2 + $0xf0] sm:$0xff] 0.0
        %366 = vst [vmem:[#allocation2 + $0xf8] sm:$0xff] 0.0
        %367 = vst [vmem:[#allocation2 + $0x100] sm:$0xff] 0.0
        %368 = vst [vmem:[#allocation2 + $0x108] sm:$0xff] 0.0
        %369 = vst [vmem:[#allocation2 + $0x110] sm:$0xff] 0.0
        %370 = vst [vmem:[#allocation2 + $0x118] sm:$0xff] 0.0
      $region40: #{_lambda_.3} parent=35 // pred_fallthru
        _
      %v371 = vld [vmem:[%s302] sm:$0xf]
      %v372 = vld [vmem:[%s302 + $0x4] sm:$0xf]
      %v373 = vld [vmem:[%s302 + $0x8] sm:$0xf]
      %v374 = vld [vmem:[%s302 + $0xc] sm:$0xf]
      %v375 = vld [vmem:[%s302 + $0x10] sm:$0xf]
      %v376 = vld [vmem:[%s302 + $0x14] sm:$0xf]
      %v377 = vld [vmem:[%s302 + $0x18] sm:$0xf]
      %v378 = vld [vmem:[%s302 + $0x1c] sm:$0xf]
      %v379 = vld [vmem:[%s302 + $0x20] sm:$0xf]
      %v380 = vld [vmem:[%s302 + $0x24] sm:$0xf]
      %v381 = vld [vmem:[%s302 + $0x28] sm:$0xf]
      %v382 = vld [vmem:[%s302 + $0x2c] sm:$0xf]
      %v383 = vld [vmem:[%s302 + $0x30] sm:$0xf]
      %v384 = vld [vmem:[%s302 + $0x34] sm:$0xf]
      %v385 = vld [vmem:[%s302 + $0x38] sm:$0xf]
      %v386 = vld [vmem:[%s302 + $0x3c] sm:$0xf]
      %v387 = vld [vmem:[%s302 + $0x40] sm:$0xf]
      %v388 = vld [vmem:[%s302 + $0x44] sm:$0xf]
      %v389 = vld [vmem:[%s302 + $0x48] sm:$0xf]
      %v390 = vld [vmem:[%s302 + $0x4c] sm:$0xf]
      %v391 = vld [vmem:[%s302 + $0x50] sm:$0xf]
      %v392 = vld [vmem:[%s302 + $0x54] sm:$0xf]
      %v393 = vld [vmem:[%s302 + $0x58] sm:$0xf]
      %v394 = vld [vmem:[%s302 + $0x5c] sm:$0xf]
      %v395 = vld [vmem:[%s302 + $0x60] sm:$0xf]
      %v396 = vld [vmem:[%s302 + $0x64] sm:$0xf]
      %v397 = vld [vmem:[%s302 + $0x68] sm:$0xf]
      %v398 = vld [vmem:[%s302 + $0x6c] sm:$0xf]
      %v399 = vld [vmem:[%s302 + $0x70] sm:$0xf]
      %v400 = vld [vmem:[%s302 + $0x74] sm:$0xf]
      %v401 = vld [vmem:[%s302 + $0x78] sm:$0xf]
      %v402 = vld [vmem:[%s302 + $0x7c] sm:$0xf]
      %v403 = vld [vmem:[%s302 + $0x80] sm:$0xf]
      %v404 = vld [vmem:[%s302 + $0x84] sm:$0xf]
      %v405 = vld [vmem:[%s302 + $0x88] sm:$0xf]
      %v406 = vld [vmem:[%s302 + $0x8c] sm:$0xf]
      %v407 = vld [vmem:[%s310] sm:$0xf]
      %v408 = vld [vmem:[%s302 + $0x90] sm:$0x1]
      %s409 = scalar_lea.vmem %s310, 4
      %v410 = vld [vmem:[%s409] sm:$0xf]
      %v448 = vunpack.c.l.b16 %v371
      %v449 = vunpack.c.l.b16 %v372
      %v450 = vunpack.c.l.b16 %v373
      %v451 = vunpack.c.l.b16 %v374
      %v452 = vunpack.c.l.b16 %v375
      %v453 = vunpack.c.l.b16 %v376
      %v454 = vunpack.c.l.b16 %v377
      %v455 = vunpack.c.l.b16 %v378
      %v456 = vunpack.c.l.b16 %v379
      %v457 = vunpack.c.l.b16 %v380
      %v458 = vunpack.c.l.b16 %v381
      %v459 = vunpack.c.l.b16 %v382
      %v460 = vunpack.c.l.b16 %v383
      %v461 = vunpack.c.l.b16 %v384
      %v462 = vunpack.c.l.b16 %v385
      %v463 = vunpack.c.l.b16 %v386
      %v464 = vunpack.c.l.b16 %v387
      %v465 = vunpack.c.l.b16 %v388
      %v466 = vunpack.c.l.b16 %v389
      %v467 = vunpack.c.l.b16 %v390
      %v468 = vunpack.c.l.b16 %v391
      %v469 = vunpack.c.l.b16 %v392
      %v470 = vunpack.c.l.b16 %v393
      %v471 = vunpack.c.l.b16 %v394
      %v472 = vunpack.c.l.b16 %v395
      %v473 = vunpack.c.l.b16 %v396
      %v474 = vunpack.c.l.b16 %v397
      %v475 = vunpack.c.l.b16 %v398
      %v476 = vunpack.c.l.b16 %v399
      %v477 = vunpack.c.l.b16 %v400
      %v478 = vunpack.c.l.b16 %v401
      %v479 = vunpack.c.l.b16 %v402
      %v480 = vunpack.c.l.b16 %v403
      %v481 = vunpack.c.l.b16 %v404
      %v482 = vunpack.c.l.b16 %v405
      %v483 = vunpack.c.l.b16 %v406
      %v484 = vunpack.c.l.b16 %v408
      %v485 = vpack.c.b16 %v449, %v448
      %v486 = vpack.c.b16 %v451, %v450
      %v487 = vpack.c.b16 %v453, %v452
      %v488 = vpack.c.b16 %v455, %v454
      %v489 = vpack.c.b16 %v457, %v456
      %v490 = vpack.c.b16 %v459, %v458
      %v491 = vpack.c.b16 %v461, %v460
      %v492 = vpack.c.b16 %v463, %v462
      %v493 = vpack.c.b16 %v465, %v464
      %v494 = vpack.c.b16 %v467, %v466
      %v495 = vpack.c.b16 %v469, %v468
      %v496 = vpack.c.b16 %v471, %v470
      %v497 = vpack.c.b16 %v473, %v472
      %v498 = vpack.c.b16 %v475, %v474
      %v499 = vpack.c.b16 %v477, %v476
      %v500 = vpack.c.b16 %v479, %v478
      %v501 = vpack.c.b16 %v481, %v480
      %v502 = vpack.c.b16 %v483, %v482
      %v503 = vpack.c.b16 %v484, %v484
      %vm504 = vsmask.f32 7424
      %v506 = vshrl.u32 %v485, 16
      %v508 = vshll.u32 %v485, 16
      %v510 = vrot.slane %v508, 1
      %v511 = vor.u32 %v506, %v510
      %v513 = vshll.u32 %v486, 16
      %v515 = vrot.slane %v513, 1
      %v516 = vsel %vm504, %v511, %v515
      %v517 = vshrl.u32 %v486, 16
      %v519 = vor.u32 %v517, %v515
      %v521 = vshll.u32 %v487, 16
      %v523 = vrot.slane %v521, 1
      %v524 = vsel %vm504, %v519, %v523
      %v525 = vshrl.u32 %v487, 16
      %v527 = vor.u32 %v525, %v523
      %v529 = vshll.u32 %v488, 16
      %v531 = vrot.slane %v529, 1
      %v532 = vsel %vm504, %v527, %v531
      %v533 = vshrl.u32 %v488, 16
      %v535 = vor.u32 %v533, %v531
      %v537 = vshll.u32 %v489, 16
      %v539 = vrot.slane %v537, 1
      %v540 = vsel %vm504, %v535, %v539
      %v541 = vshrl.u32 %v489, 16
      %v543 = vor.u32 %v541, %v539
      %v545 = vshll.u32 %v490, 16
      %v547 = vrot.slane %v545, 1
      %v548 = vsel %vm504, %v543, %v547
      %v549 = vshrl.u32 %v490, 16
      %v551 = vor.u32 %v549, %v547
      %v553 = vshll.u32 %v491, 16
      %v555 = vrot.slane %v553, 1
      %v556 = vsel %vm504, %v551, %v555
      %v557 = vshrl.u32 %v491, 16
      %v559 = vor.u32 %v557, %v555
      %v561 = vshll.u32 %v492, 16
      %v563 = vrot.slane %v561, 1
      %v564 = vsel %vm504, %v559, %v563
      %v565 = vshrl.u32 %v492, 16
      %v567 = vor.u32 %v565, %v563
      %v569 = vshll.u32 %v493, 16
      %v571 = vrot.slane %v569, 1
      %v572 = vsel %vm504, %v567, %v571
      %v573 = vshrl.u32 %v493, 16
      %v575 = vor.u32 %v573, %v571
      %v577 = vshll.u32 %v494, 16
      %v579 = vrot.slane %v577, 1
      %v580 = vsel %vm504, %v575, %v579
      %v581 = vshrl.u32 %v494, 16
      %v583 = vor.u32 %v581, %v579
      %v585 = vshll.u32 %v495, 16
      %v587 = vrot.slane %v585, 1
      %v588 = vsel %vm504, %v583, %v587
      %v589 = vshrl.u32 %v495, 16
      %v591 = vor.u32 %v589, %v587
      %v593 = vshll.u32 %v496, 16
      %v595 = vrot.slane %v593, 1
      %v596 = vsel %vm504, %v591, %v595
      %v597 = vshrl.u32 %v496, 16
      %v599 = vor.u32 %v597, %v595
      %v601 = vshll.u32 %v497, 16
      %v603 = vrot.slane %v601, 1
      %v604 = vsel %vm504, %v599, %v603
      %v605 = vshrl.u32 %v497, 16
      %v607 = vor.u32 %v605, %v603
      %v609 = vshll.u32 %v498, 16
      %v611 = vrot.slane %v609, 1
      %v612 = vsel %vm504, %v607, %v611
      %v613 = vshrl.u32 %v498, 16
      %v615 = vor.u32 %v613, %v611
      %v617 = vshll.u32 %v499, 16
      %v619 = vrot.slane %v617, 1
      %v620 = vsel %vm504, %v615, %v619
      %v621 = vshrl.u32 %v499, 16
      %v623 = vor.u32 %v621, %v619
      %v625 = vshll.u32 %v500, 16
      %v627 = vrot.slane %v625, 1
      %v628 = vsel %vm504, %v623, %v627
      %v629 = vshrl.u32 %v500, 16
      %v631 = vor.u32 %v629, %v627
      %v633 = vshll.u32 %v501, 16
      %v635 = vrot.slane %v633, 1
      %v636 = vsel %vm504, %v631, %v635
      %v637 = vshrl.u32 %v501, 16
      %v639 = vor.u32 %v637, %v635
      %v641 = vshll.u32 %v502, 16
      %v643 = vrot.slane %v641, 1
      %v644 = vsel %vm504, %v639, %v643
      %v645 = vshrl.u32 %v502, 16
      %v647 = vor.u32 %v645, %v643
      %v649 = vshll.u32 %v503, 16
      %v651 = vrot.slane %v649, 1
      %v652 = vsel %vm504, %v647, %v651
      %vm653 = vcmask 64512
      %v655 = vsel %vm653, %v516, 0
      %v658 = vsel %vm653, %v524, 0
      %v661 = vsel %vm653, %v532, 0
      %v664 = vsel %vm653, %v540, 0
      %v667 = vsel %vm653, %v548, 0
      %v670 = vsel %vm653, %v556, 0
      %v673 = vsel %vm653, %v564, 0
      %v676 = vsel %vm653, %v572, 0
      %v679 = vsel %vm653, %v580, 0
      %v682 = vsel %vm653, %v588, 0
      %v685 = vsel %vm653, %v596, 0
      %v688 = vsel %vm653, %v604, 0
      %v691 = vsel %vm653, %v612, 0
      %v694 = vsel %vm653, %v620, 0
      %v697 = vsel %vm653, %v628, 0
      %v700 = vsel %vm653, %v636, 0
      %v703 = vsel %vm653, %v644, 0
      %v706 = vsel %vm653, %v652, 0
      %vm708 = vcmask 1043456
      %v710 = vsel %vm708, %v410, 0
      %712 = vmatpush.bf16.msra.mxu0 0
      %713 = vmatpush.bf16.msra.mxu0 0
      %714 = vmatpush.bf16.msra.mxu0 0
      %715 = vmatpush.bf16.msra.mxu0 0
      %716 = vmatpush.bf16.msra.mxu0 0
      %717 = vmatpush.bf16.msra.mxu0 0
      %718 = vmatpush.bf16.msra.mxu0 0
      %719 = vmatpush.bf16.msra.mxu0 %v710
      %720 = vmatmul.bf16.gmra.mxu0 %v655
      %v721 = vpop.f32.mrf.mxu0
      %v722 = vadd.f32 0.0, %v721
      %v723 = vpop.f32.mrf.mxu0
      %v724 = vadd.f32 0.0, %v723
      %725 = vmatmul.bf16.gmra.mxu0 %v658
      %v726 = vpop.f32.mrf.mxu0
      %v727 = vadd.f32 0.0, %v726
      %v728 = vpop.f32.mrf.mxu0
      %v729 = vadd.f32 0.0, %v728
      %730 = vmatmul.bf16.gmra.mxu0 %v661
      %v731 = vpop.f32.mrf.mxu0
      %v732 = vadd.f32 0.0, %v731
      %v733 = vpop.f32.mrf.mxu0
      %v734 = vadd.f32 0.0, %v733
      %735 = vmatmul.bf16.gmra.mxu0 %v664
      %v736 = vpop.f32.mrf.mxu0
      %v737 = vadd.f32 0.0, %v736
      %v738 = vpop.f32.mrf.mxu0
      %v739 = vadd.f32 0.0, %v738
      %740 = vmatmul.bf16.gmra.mxu0 %v667
      %v741 = vpop.f32.mrf.mxu0
      %v742 = vadd.f32 0.0, %v741
      %v743 = vpop.f32.mrf.mxu0
      %v744 = vadd.f32 0.0, %v743
      %745 = vmatmul.bf16.gmra.mxu0 %v670
      %v746 = vpop.f32.mrf.mxu0
      %v747 = vadd.f32 0.0, %v746
      %v748 = vpop.f32.mrf.mxu0
      %v749 = vadd.f32 0.0, %v748
      %750 = vmatmul.bf16.gmra.mxu0 %v673
      %v751 = vpop.f32.mrf.mxu0
      %v752 = vadd.f32 0.0, %v751
      %v753 = vpop.f32.mrf.mxu0
      %v754 = vadd.f32 0.0, %v753
      %755 = vmatmul.bf16.gmra.mxu0 %v676
      %v756 = vpop.f32.mrf.mxu0
      %v757 = vadd.f32 0.0, %v756
      %v758 = vpop.f32.mrf.mxu0
      %v759 = vadd.f32 0.0, %v758
      %760 = vmatmul.bf16.gmra.mxu0 %v679
      %v761 = vpop.f32.mrf.mxu0
      %v762 = vadd.f32 0.0, %v761
      %v763 = vpop.f32.mrf.mxu0
      %v764 = vadd.f32 0.0, %v763
      %765 = vmatmul.bf16.gmra.mxu0 %v682
      %v766 = vpop.f32.mrf.mxu0
      %v767 = vadd.f32 0.0, %v766
      %v768 = vpop.f32.mrf.mxu0
      %v769 = vadd.f32 0.0, %v768
      %770 = vmatmul.bf16.gmra.mxu0 %v685
      %v771 = vpop.f32.mrf.mxu0
      %v772 = vadd.f32 0.0, %v771
      %v773 = vpop.f32.mrf.mxu0
      %v774 = vadd.f32 0.0, %v773
      %775 = vmatmul.bf16.gmra.mxu0 %v688
      %v776 = vpop.f32.mrf.mxu0
      %v777 = vadd.f32 0.0, %v776
      %v778 = vpop.f32.mrf.mxu0
      %v779 = vadd.f32 0.0, %v778
      %780 = vmatmul.bf16.gmra.mxu0 %v691
      %v781 = vpop.f32.mrf.mxu0
      %v782 = vadd.f32 0.0, %v781
      %v783 = vpop.f32.mrf.mxu0
      %v784 = vadd.f32 0.0, %v783
      %785 = vmatmul.bf16.gmra.mxu0 %v694
      %v786 = vpop.f32.mrf.mxu0
      %v787 = vadd.f32 0.0, %v786
      %v788 = vpop.f32.mrf.mxu0
      %v789 = vadd.f32 0.0, %v788
      %790 = vmatmul.bf16.gmra.mxu0 %v697
      %v791 = vpop.f32.mrf.mxu0
      %v792 = vadd.f32 0.0, %v791
      %v793 = vpop.f32.mrf.mxu0
      %v794 = vadd.f32 0.0, %v793
      %795 = vmatmul.bf16.gmra.mxu0 %v700
      %v796 = vpop.f32.mrf.mxu0
      %v797 = vadd.f32 0.0, %v796
      %v798 = vpop.f32.mrf.mxu0
      %v799 = vadd.f32 0.0, %v798
      %800 = vmatmul.bf16.gmra.mxu0 %v703
      %v801 = vpop.f32.mrf.mxu0
      %v802 = vadd.f32 0.0, %v801
      %v803 = vpop.f32.mrf.mxu0
      %v804 = vadd.f32 0.0, %v803
      %805 = vmatmul.bf16.gmra.mxu0 %v706
      %v806 = vpop.f32.mrf.mxu0
      %v807 = vadd.f32 0.0, %v806
      %v808 = vpop.f32.mrf.mxu0
      %v809 = vadd.f32 0.0, %v808
      %810 = vdwg.mxu0
      %v811 = vsel %vm653, %v485, 0
      %v813 = vsel %vm653, %v486, 0
      %v815 = vsel %vm653, %v487, 0
      %v817 = vsel %vm653, %v488, 0
      %v819 = vsel %vm653, %v489, 0
      %v821 = vsel %vm653, %v490, 0
      %v823 = vsel %vm653, %v491, 0
      %v825 = vsel %vm653, %v492, 0
      %v827 = vsel %vm653, %v493, 0
      %v829 = vsel %vm653, %v494, 0
      %v831 = vsel %vm653, %v495, 0
      %v833 = vsel %vm653, %v496, 0
      %v835 = vsel %vm653, %v497, 0
      %v837 = vsel %vm653, %v498, 0
      %v839 = vsel %vm653, %v499, 0
      %v841 = vsel %vm653, %v500, 0
      %v843 = vsel %vm653, %v501, 0
      %v845 = vsel %vm653, %v502, 0
      %v848 = vsel %vm708, %v407, 0
      %850 = vmatpush.bf16.msra.mxu0 0
      %851 = vmatpush.bf16.msra.mxu0 0
      %852 = vmatpush.bf16.msra.mxu0 0
      %853 = vmatpush.bf16.msra.mxu0 0
      %854 = vmatpush.bf16.msra.mxu0 0
      %855 = vmatpush.bf16.msra.mxu0 0
      %856 = vmatpush.bf16.msra.mxu0 0
      %857 = vmatpush.bf16.msra.mxu0 %v848
      %858 = vmatmul.bf16.gmra.mxu0 %v811
      %v859 = vpop.f32.mrf.mxu0
      %v860 = vadd.f32 %v722, %v859
      %v861 = vpop.f32.mrf.mxu0
      %v862 = vadd.f32 %v724, %v861
      %863 = vmatmul.bf16.gmra.mxu0 %v813
      %v864 = vpop.f32.mrf.mxu0
      %v865 = vadd.f32 %v727, %v864
      %v866 = vpop.f32.mrf.mxu0
      %v867 = vadd.f32 %v729, %v866
      %868 = vmatmul.bf16.gmra.mxu0 %v815
      %v869 = vpop.f32.mrf.mxu0
      %v870 = vadd.f32 %v732, %v869
      %v871 = vpop.f32.mrf.mxu0
      %v872 = vadd.f32 %v734, %v871
      %873 = vmatmul.bf16.gmra.mxu0 %v817
      %v874 = vpop.f32.mrf.mxu0
      %v875 = vadd.f32 %v737, %v874
      %v876 = vpop.f32.mrf.mxu0
      %v877 = vadd.f32 %v739, %v876
      %878 = vmatmul.bf16.gmra.mxu0 %v819
      %v879 = vpop.f32.mrf.mxu0
      %v880 = vadd.f32 %v742, %v879
      %v881 = vpop.f32.mrf.mxu0
      %v882 = vadd.f32 %v744, %v881
      %883 = vmatmul.bf16.gmra.mxu0 %v821
      %v884 = vpop.f32.mrf.mxu0
      %v885 = vadd.f32 %v747, %v884
      %v886 = vpop.f32.mrf.mxu0
      %v887 = vadd.f32 %v749, %v886
      %888 = vmatmul.bf16.gmra.mxu0 %v823
      %v889 = vpop.f32.mrf.mxu0
      %v890 = vadd.f32 %v752, %v889
      %v891 = vpop.f32.mrf.mxu0
      %v892 = vadd.f32 %v754, %v891
      %893 = vmatmul.bf16.gmra.mxu0 %v825
      %v894 = vpop.f32.mrf.mxu0
      %v895 = vadd.f32 %v757, %v894
      %v896 = vpop.f32.mrf.mxu0
      %v897 = vadd.f32 %v759, %v896
      %898 = vmatmul.bf16.gmra.mxu0 %v827
      %v899 = vpop.f32.mrf.mxu0
      %v900 = vadd.f32 %v762, %v899
      %v901 = vpop.f32.mrf.mxu0
      %v902 = vadd.f32 %v764, %v901
      %903 = vmatmul.bf16.gmra.mxu0 %v829
      %v904 = vpop.f32.mrf.mxu0
      %v905 = vadd.f32 %v767, %v904
      %v906 = vpop.f32.mrf.mxu0
      %v907 = vadd.f32 %v769, %v906
      %908 = vmatmul.bf16.gmra.mxu0 %v831
      %v909 = vpop.f32.mrf.mxu0
      %v910 = vadd.f32 %v772, %v909
      %v911 = vpop.f32.mrf.mxu0
      %v912 = vadd.f32 %v774, %v911
      %913 = vmatmul.bf16.gmra.mxu0 %v833
      %v914 = vpop.f32.mrf.mxu0
      %v915 = vadd.f32 %v777, %v914
      %v916 = vpop.f32.mrf.mxu0
      %v917 = vadd.f32 %v779, %v916
      %918 = vmatmul.bf16.gmra.mxu0 %v835
      %v919 = vpop.f32.mrf.mxu0
      %v920 = vadd.f32 %v782, %v919
      %v921 = vpop.f32.mrf.mxu0
      %v922 = vadd.f32 %v784, %v921
      %923 = vmatmul.bf16.gmra.mxu0 %v837
      %v924 = vpop.f32.mrf.mxu0
      %v925 = vadd.f32 %v787, %v924
      %v926 = vpop.f32.mrf.mxu0
      %v927 = vadd.f32 %v789, %v926
      %928 = vmatmul.bf16.gmra.mxu0 %v839
      %v929 = vpop.f32.mrf.mxu0
      %v930 = vadd.f32 %v792, %v929
      %v931 = vpop.f32.mrf.mxu0
      %v932 = vadd.f32 %v794, %v931
      %933 = vmatmul.bf16.gmra.mxu0 %v841
      %v934 = vpop.f32.mrf.mxu0
      %v935 = vadd.f32 %v797, %v934
      %v936 = vpop.f32.mrf.mxu0
      %v937 = vadd.f32 %v799, %v936
      %938 = vmatmul.bf16.gmra.mxu0 %v843
      %v939 = vpop.f32.mrf.mxu0
      %v940 = vadd.f32 %v802, %v939
      %v941 = vpop.f32.mrf.mxu0
      %v942 = vadd.f32 %v804, %v941
      %943 = vmatmul.bf16.gmra.mxu0 %v845
      %v944 = vpop.f32.mrf.mxu0
      %v945 = vadd.f32 %v807, %v944
      %v946 = vpop.f32.mrf.mxu0
      %v947 = vadd.f32 %v809, %v946
      %948 = vdwg.mxu0
      %v949 = vld [vmem:[%s302] sm:$0xe]
      %s950 = scalar_lea.vmem %s310, 8
      %v951 = vld [vmem:[%s950] sm:$0xf]
      %v953 = vunpack.c.l.b16 %v949
      %v954 = vpack.c.b16 %v449, %v953
      %vm955 = vcmask 1046528
      %v956 = vrot.slane %v954, 1
      %v957 = vrot.slane %v486, 1
      %v958 = vsel %vm955, %v956, %v957
      %v959 = vrot.slane %v487, 1
      %v960 = vsel %vm955, %v957, %v959
      %v961 = vrot.slane %v488, 1
      %v962 = vsel %vm955, %v959, %v961
      %v963 = vrot.slane %v489, 1
      %v964 = vsel %vm955, %v961, %v963
      %v965 = vrot.slane %v490, 1
      %v966 = vsel %vm955, %v963, %v965
      %v967 = vrot.slane %v491, 1
      %v968 = vsel %vm955, %v965, %v967
      %v969 = vrot.slane %v492, 1
      %v970 = vsel %vm955, %v967, %v969
      %v971 = vrot.slane %v493, 1
      %v972 = vsel %vm955, %v969, %v971
      %v973 = vrot.slane %v494, 1
      %v974 = vsel %vm955, %v971, %v973
      %v975 = vrot.slane %v495, 1
      %v976 = vsel %vm955, %v973, %v975
      %v977 = vrot.slane %v496, 1
      %v978 = vsel %vm955, %v975, %v977
      %v979 = vrot.slane %v497, 1
      %v980 = vsel %vm955, %v977, %v979
      %v981 = vrot.slane %v498, 1
      %v982 = vsel %vm955, %v979, %v981
      %v983 = vrot.slane %v499, 1
      %v984 = vsel %vm955, %v981, %v983
      %v985 = vrot.slane %v500, 1
      %v986 = vsel %vm955, %v983, %v985
      %v987 = vrot.slane %v501, 1
      %v988 = vsel %vm955, %v985, %v987
      %v989 = vrot.slane %v502, 1
      %v990 = vsel %vm955, %v987, %v989
      %v991 = vrot.slane %v503, 1
      %v992 = vsel %vm955, %v989, %v991
      %v994 = vsel %vm653, %v958, 0
      %v997 = vsel %vm653, %v960, 0
      %v1000 = vsel %vm653, %v962, 0
      %v1003 = vsel %vm653, %v964, 0
      %v1006 = vsel %vm653, %v966, 0
      %v1009 = vsel %vm653, %v968, 0
      %v1012 = vsel %vm653, %v970, 0
      %v1015 = vsel %vm653, %v972, 0
      %v1018 = vsel %vm653, %v974, 0
      %v1021 = vsel %vm653, %v976, 0
      %v1024 = vsel %vm653, %v978, 0
      %v1027 = vsel %vm653, %v980, 0
      %v1030 = vsel %vm653, %v982, 0
      %v1033 = vsel %vm653, %v984, 0
      %v1036 = vsel %vm653, %v986, 0
      %v1039 = vsel %vm653, %v988, 0
      %v1042 = vsel %vm653, %v990, 0
      %v1045 = vsel %vm653, %v992, 0
      %v1048 = vsel %vm708, %v951, 0
      %1050 = vmatpush.bf16.msra.mxu0 0
      %1051 = vmatpush.bf16.msra.mxu0 0
      %1052 = vmatpush.bf16.msra.mxu0 0
      %1053 = vmatpush.bf16.msra.mxu0 0
      %1054 = vmatpush.bf16.msra.mxu0 0
      %1055 = vmatpush.bf16.msra.mxu0 0
      %1056 = vmatpush.bf16.msra.mxu0 0
      %1057 = vmatpush.bf16.msra.mxu0 %v1048
      %1058 = vmatmul.bf16.gmra.mxu0 %v994
      %v1059 = vpop.f32.mrf.mxu0
      %v1060 = vadd.f32 0.0, %v1059
      %v1061 = vpop.f32.mrf.mxu0
      %v1062 = vadd.f32 0.0, %v1061
      %1063 = vmatmul.bf16.gmra.mxu0 %v997
      %v1064 = vpop.f32.mrf.mxu0
      %v1065 = vadd.f32 0.0, %v1064
      %v1066 = vpop.f32.mrf.mxu0
      %v1067 = vadd.f32 0.0, %v1066
      %1068 = vmatmul.bf16.gmra.mxu0 %v1000
      %v1069 = vpop.f32.mrf.mxu0
      %v1070 = vadd.f32 0.0, %v1069
      %v1071 = vpop.f32.mrf.mxu0
      %v1072 = vadd.f32 0.0, %v1071
      %1073 = vmatmul.bf16.gmra.mxu0 %v1003
      %v1074 = vpop.f32.mrf.mxu0
      %v1075 = vadd.f32 0.0, %v1074
      %v1076 = vpop.f32.mrf.mxu0
      %v1077 = vadd.f32 0.0, %v1076
      %1078 = vmatmul.bf16.gmra.mxu0 %v1006
      %v1079 = vpop.f32.mrf.mxu0
      %v1080 = vadd.f32 0.0, %v1079
      %v1081 = vpop.f32.mrf.mxu0
      %v1082 = vadd.f32 0.0, %v1081
      %1083 = vmatmul.bf16.gmra.mxu0 %v1009
      %v1084 = vpop.f32.mrf.mxu0
      %v1085 = vadd.f32 0.0, %v1084
      %v1086 = vpop.f32.mrf.mxu0
      %v1087 = vadd.f32 0.0, %v1086
      %1088 = vmatmul.bf16.gmra.mxu0 %v1012
      %v1089 = vpop.f32.mrf.mxu0
      %v1090 = vadd.f32 0.0, %v1089
      %v1091 = vpop.f32.mrf.mxu0
      %v1092 = vadd.f32 0.0, %v1091
      %1093 = vmatmul.bf16.gmra.mxu0 %v1015
      %v1094 = vpop.f32.mrf.mxu0
      %v1095 = vadd.f32 0.0, %v1094
      %v1096 = vpop.f32.mrf.mxu0
      %v1097 = vadd.f32 0.0, %v1096
      %1098 = vmatmul.bf16.gmra.mxu0 %v1018
      %v1099 = vpop.f32.mrf.mxu0
      %v1100 = vadd.f32 0.0, %v1099
      %v1101 = vpop.f32.mrf.mxu0
      %v1102 = vadd.f32 0.0, %v1101
      %1103 = vmatmul.bf16.gmra.mxu0 %v1021
      %v1104 = vpop.f32.mrf.mxu0
      %v1105 = vadd.f32 0.0, %v1104
      %v1106 = vpop.f32.mrf.mxu0
      %v1107 = vadd.f32 0.0, %v1106
      %1108 = vmatmul.bf16.gmra.mxu0 %v1024
      %v1109 = vpop.f32.mrf.mxu0
      %v1110 = vadd.f32 0.0, %v1109
      %v1111 = vpop.f32.mrf.mxu0
      %v1112 = vadd.f32 0.0, %v1111
      %1113 = vmatmul.bf16.gmra.mxu0 %v1027
      %v1114 = vpop.f32.mrf.mxu0
      %v1115 = vadd.f32 0.0, %v1114
      %v1116 = vpop.f32.mrf.mxu0
      %v1117 = vadd.f32 0.0, %v1116
      %1118 = vmatmul.bf16.gmra.mxu0 %v1030
      %v1119 = vpop.f32.mrf.mxu0
      %v1120 = vadd.f32 0.0, %v1119
      %v1121 = vpop.f32.mrf.mxu0
      %v1122 = vadd.f32 0.0, %v1121
      %1123 = vmatmul.bf16.gmra.mxu0 %v1033
      %v1124 = vpop.f32.mrf.mxu0
      %v1125 = vadd.f32 0.0, %v1124
      %v1126 = vpop.f32.mrf.mxu0
      %v1127 = vadd.f32 0.0, %v1126
      %1128 = vmatmul.bf16.gmra.mxu0 %v1036
      %v1129 = vpop.f32.mrf.mxu0
      %v1130 = vadd.f32 0.0, %v1129
      %v1131 = vpop.f32.mrf.mxu0
      %v1132 = vadd.f32 0.0, %v1131
      %1133 = vmatmul.bf16.gmra.mxu0 %v1039
      %v1134 = vpop.f32.mrf.mxu0
      %v1135 = vadd.f32 0.0, %v1134
      %v1136 = vpop.f32.mrf.mxu0
      %v1137 = vadd.f32 0.0, %v1136
      %1138 = vmatmul.bf16.gmra.mxu0 %v1042
      %v1139 = vpop.f32.mrf.mxu0
      %v1140 = vadd.f32 0.0, %v1139
      %v1141 = vpop.f32.mrf.mxu0
      %v1142 = vadd.f32 0.0, %v1141
      %1143 = vmatmul.bf16.gmra.mxu0 %v1045
      %v1144 = vpop.f32.mrf.mxu0
      %v1145 = vadd.f32 0.0, %v1144
      %v1146 = vpop.f32.mrf.mxu0
      %v1147 = vadd.f32 0.0, %v1146
      %1148 = vdwg.mxu0
      %v1149 = vadd.f32 %v860, %v1060
      %v1150 = vadd.f32 %v862, %v1062
      %v1151 = vadd.f32 %v865, %v1065
      %v1152 = vadd.f32 %v867, %v1067
      %v1153 = vadd.f32 %v870, %v1070
      %v1154 = vadd.f32 %v872, %v1072
      %v1155 = vadd.f32 %v875, %v1075
      %v1156 = vadd.f32 %v877, %v1077
      %v1157 = vadd.f32 %v880, %v1080
      %v1158 = vadd.f32 %v882, %v1082
      %v1159 = vadd.f32 %v885, %v1085
      %v1160 = vadd.f32 %v887, %v1087
      %v1161 = vadd.f32 %v890, %v1090
      %v1162 = vadd.f32 %v892, %v1092
      %v1163 = vadd.f32 %v895, %v1095
      %v1164 = vadd.f32 %v897, %v1097
      %v1165 = vadd.f32 %v900, %v1100
      %v1166 = vadd.f32 %v902, %v1102
      %v1167 = vadd.f32 %v905, %v1105
      %v1168 = vadd.f32 %v907, %v1107
      %v1169 = vadd.f32 %v910, %v1110
      %v1170 = vadd.f32 %v912, %v1112
      %v1171 = vadd.f32 %v915, %v1115
      %v1172 = vadd.f32 %v917, %v1117
      %v1173 = vadd.f32 %v920, %v1120
      %v1174 = vadd.f32 %v922, %v1122
      %v1175 = vadd.f32 %v925, %v1125
      %v1176 = vadd.f32 %v927, %v1127
      %v1177 = vadd.f32 %v930, %v1130
      %v1178 = vadd.f32 %v932, %v1132
      %v1179 = vadd.f32 %v935, %v1135
      %v1180 = vadd.f32 %v937, %v1137
      %v1181 = vadd.f32 %v940, %v1140
      %v1182 = vadd.f32 %v942, %v1142
      %v1183 = vadd.f32 %v945, %v1145
      %v1184 = vadd.f32 %v947, %v1147
      %v1185 = vld [vmem:[%s302 + $0x8] sm:$0xe]
      %v1186 = vld [vmem:[%s302 + $0xc] sm:$0xf]
      %v1187 = vld [vmem:[%s302 + $0x10] sm:$0xf]
      %v1188 = vld [vmem:[%s302 + $0x14] sm:$0xf]
      %v1189 = vld [vmem:[%s302 + $0x18] sm:$0xf]
      %v1190 = vld [vmem:[%s302 + $0x1c] sm:$0xf]
      %v1191 = vld [vmem:[%s302 + $0x20] sm:$0xf]
      %v1192 = vld [vmem:[%s302 + $0x24] sm:$0xf]
      %v1193 = vld [vmem:[%s302 + $0x28] sm:$0xf]
      %v1194 = vld [vmem:[%s302 + $0x2c] sm:$0xf]
      %v1195 = vld [vmem:[%s302 + $0x30] sm:$0xf]
      %v1196 = vld [vmem:[%s302 + $0x34] sm:$0xf]
      %v1197 = vld [vmem:[%s302 + $0x38] sm:$0xf]
      %v1198 = vld [vmem:[%s302 + $0x3c] sm:$0xf]
      %v1199 = vld [vmem:[%s302 + $0x40] sm:$0xf]
      %v1200 = vld [vmem:[%s302 + $0x44] sm:$0xf]
      %v1201 = vld [vmem:[%s302 + $0x48] sm:$0xf]
      %v1202 = vld [vmem:[%s302 + $0x4c] sm:$0xf]
      %v1203 = vld [vmem:[%s302 + $0x50] sm:$0xf]
      %v1204 = vld [vmem:[%s302 + $0x54] sm:$0xf]
      %v1205 = vld [vmem:[%s302 + $0x58] sm:$0xf]
      %v1206 = vld [vmem:[%s302 + $0x5c] sm:$0xf]
      %v1207 = vld [vmem:[%s302 + $0x60] sm:$0xf]
      %v1208 = vld [vmem:[%s302 + $0x64] sm:$0xf]
      %v1209 = vld [vmem:[%s302 + $0x68] sm:$0xf]
      %v1210 = vld [vmem:[%s302 + $0x6c] sm:$0xf]
      %v1211 = vld [vmem:[%s302 + $0x70] sm:$0xf]
      %v1212 = vld [vmem:[%s302 + $0x74] sm:$0xf]
      %v1213 = vld [vmem:[%s302 + $0x78] sm:$0xf]
      %v1214 = vld [vmem:[%s302 + $0x7c] sm:$0xf]
      %v1215 = vld [vmem:[%s302 + $0x80] sm:$0xf]
      %v1216 = vld [vmem:[%s302 + $0x84] sm:$0xf]
      %v1217 = vld [vmem:[%s302 + $0x88] sm:$0xf]
      %v1218 = vld [vmem:[%s302 + $0x8c] sm:$0xf]
      %v1219 = vld [vmem:[%s302 + $0x90] sm:$0xf]
      %v1220 = vld [vmem:[%s302 + $0x94] sm:$0xf]
      %v1221 = vld [vmem:[%s302 + $0x98] sm:$0x1]
      %s1222 = scalar_lea.vmem %s310, 12
      %v1223 = vld [vmem:[%s1222] sm:$0xf]
      %v1261 = vunpack.c.l.b16 %v1185
      %v1262 = vunpack.c.l.b16 %v1186
      %v1263 = vunpack.c.l.b16 %v1187
      %v1264 = vunpack.c.l.b16 %v1188
      %v1265 = vunpack.c.l.b16 %v1189
      %v1266 = vunpack.c.l.b16 %v1190
      %v1267 = vunpack.c.l.b16 %v1191
      %v1268 = vunpack.c.l.b16 %v1192
      %v1269 = vunpack.c.l.b16 %v1193
      %v1270 = vunpack.c.l.b16 %v1194
      %v1271 = vunpack.c.l.b16 %v1195
      %v1272 = vunpack.c.l.b16 %v1196
      %v1273 = vunpack.c.l.b16 %v1197
      %v1274 = vunpack.c.l.b16 %v1198
      %v1275 = vunpack.c.l.b16 %v1199
      %v1276 = vunpack.c.l.b16 %v1200
      %v1277 = vunpack.c.l.b16 %v1201
      %v1278 = vunpack.c.l.b16 %v1202
      %v1279 = vunpack.c.l.b16 %v1203
      %v1280 = vunpack.c.l.b16 %v1204
      %v1281 = vunpack.c.l.b16 %v1205
      %v1282 = vunpack.c.l.b16 %v1206
      %v1283 = vunpack.c.l.b16 %v1207
      %v1284 = vunpack.c.l.b16 %v1208
      %v1285 = vunpack.c.l.b16 %v1209
      %v1286 = vunpack.c.l.b16 %v1210
      %v1287 = vunpack.c.l.b16 %v1211
      %v1288 = vunpack.c.l.b16 %v1212
      %v1289 = vunpack.c.l.b16 %v1213
      %v1290 = vunpack.c.l.b16 %v1214
      %v1291 = vunpack.c.l.b16 %v1215
      %v1292 = vunpack.c.l.b16 %v1216
      %v1293 = vunpack.c.l.b16 %v1217
      %v1294 = vunpack.c.l.b16 %v1218
      %v1295 = vunpack.c.l.b16 %v1219
      %v1296 = vunpack.c.l.b16 %v1220
      %v1297 = vunpack.c.l.b16 %v1221
      %v1298 = vpack.c.b16 %v1262, %v1261
      %v1299 = vpack.c.b16 %v1264, %v1263
      %v1300 = vpack.c.b16 %v1266, %v1265
      %v1301 = vpack.c.b16 %v1268, %v1267
      %v1302 = vpack.c.b16 %v1270, %v1269
      %v1303 = vpack.c.b16 %v1272, %v1271
      %v1304 = vpack.c.b16 %v1274, %v1273
      %v1305 = vpack.c.b16 %v1276, %v1275
      %v1306 = vpack.c.b16 %v1278, %v1277
      %v1307 = vpack.c.b16 %v1280, %v1279
      %v1308 = vpack.c.b16 %v1282, %v1281
      %v1309 = vpack.c.b16 %v1284, %v1283
      %v1310 = vpack.c.b16 %v1286, %v1285
      %v1311 = vpack.c.b16 %v1288, %v1287
      %v1312 = vpack.c.b16 %v1290, %v1289
      %v1313 = vpack.c.b16 %v1292, %v1291
      %v1314 = vpack.c.b16 %v1294, %v1293
      %v1315 = vpack.c.b16 %v1296, %v1295
      %v1316 = vpack.c.b16 %v1297, %v1297
      %v1317 = vrot.slane %v1298, 1
      %v1318 = vrot.slane %v1299, 1
      %v1319 = vsel %vm955, %v1317, %v1318
      %v1320 = vrot.slane %v1300, 1
      %v1321 = vsel %vm955, %v1318, %v1320
      %v1322 = vrot.slane %v1301, 1
      %v1323 = vsel %vm955, %v1320, %v1322
      %v1324 = vrot.slane %v1302, 1
      %v1325 = vsel %vm955, %v1322, %v1324
      %v1326 = vrot.slane %v1303, 1
      %v1327 = vsel %vm955, %v1324, %v1326
      %v1328 = vrot.slane %v1304, 1
      %v1329 = vsel %vm955, %v1326, %v1328
      %v1330 = vrot.slane %v1305, 1
      %v1331 = vsel %vm955, %v1328, %v1330
      %v1332 = vrot.slane %v1306, 1
      %v1333 = vsel %vm955, %v1330, %v1332
      %v1334 = vrot.slane %v1307, 1
      %v1335 = vsel %vm955, %v1332, %v1334
      %v1336 = vrot.slane %v1308, 1
      %v1337 = vsel %vm955, %v1334, %v1336
      %v1338 = vrot.slane %v1309, 1
      %v1339 = vsel %vm955, %v1336, %v1338
      %v1340 = vrot.slane %v1310, 1
      %v1341 = vsel %vm955, %v1338, %v1340
      %v1342 = vrot.slane %v1311, 1
      %v1343 = vsel %vm955, %v1340, %v1342
      %v1344 = vrot.slane %v1312, 1
      %v1345 = vsel %vm955, %v1342, %v1344
      %v1346 = vrot.slane %v1313, 1
      %v1347 = vsel %vm955, %v1344, %v1346
      %v1348 = vrot.slane %v1314, 1
      %v1349 = vsel %vm955, %v1346, %v1348
      %v1350 = vrot.slane %v1315, 1
      %v1351 = vsel %vm955, %v1348, %v1350
      %v1352 = vrot.slane %v1316, 1
      %v1353 = vsel %vm955, %v1350, %v1352
      %v1355 = vsel %vm653, %v1319, 0
      %v1358 = vsel %vm653, %v1321, 0
      %v1361 = vsel %vm653, %v1323, 0
      %v1364 = vsel %vm653, %v1325, 0
      %v1367 = vsel %vm653, %v1327, 0
      %v1370 = vsel %vm653, %v1329, 0
      %v1373 = vsel %vm653, %v1331, 0
      %v1376 = vsel %vm653, %v1333, 0
      %v1379 = vsel %vm653, %v1335, 0
      %v1382 = vsel %vm653, %v1337, 0
      %v1385 = vsel %vm653, %v1339, 0
      %v1388 = vsel %vm653, %v1341, 0
      %v1391 = vsel %vm653, %v1343, 0
      %v1394 = vsel %vm653, %v1345, 0
      %v1397 = vsel %vm653, %v1347, 0
      %v1400 = vsel %vm653, %v1349, 0
      %v1403 = vsel %vm653, %v1351, 0
      %v1406 = vsel %vm653, %v1353, 0
      %v1409 = vsel %vm708, %v1223, 0
      %1411 = vmatpush.bf16.msra.mxu0 0
      %1412 = vmatpush.bf16.msra.mxu0 0
      %1413 = vmatpush.bf16.msra.mxu0 0
      %1414 = vmatpush.bf16.msra.mxu0 0
      %1415 = vmatpush.bf16.msra.mxu0 0
      %1416 = vmatpush.bf16.msra.mxu0 0
      %1417 = vmatpush.bf16.msra.mxu0 0
      %1418 = vmatpush.bf16.msra.mxu0 %v1409
      %1419 = vmatmul.bf16.gmra.mxu0 %v1355
      %v1420 = vpop.f32.mrf.mxu0
      %v1421 = vadd.f32 0.0, %v1420
      %v1422 = vpop.f32.mrf.mxu0
      %v1423 = vadd.f32 0.0, %v1422
      %1424 = vmatmul.bf16.gmra.mxu0 %v1358
      %v1425 = vpop.f32.mrf.mxu0
      %v1426 = vadd.f32 0.0, %v1425
      %v1427 = vpop.f32.mrf.mxu0
      %v1428 = vadd.f32 0.0, %v1427
      %1429 = vmatmul.bf16.gmra.mxu0 %v1361
      %v1430 = vpop.f32.mrf.mxu0
      %v1431 = vadd.f32 0.0, %v1430
      %v1432 = vpop.f32.mrf.mxu0
      %v1433 = vadd.f32 0.0, %v1432
      %1434 = vmatmul.bf16.gmra.mxu0 %v1364
      %v1435 = vpop.f32.mrf.mxu0
      %v1436 = vadd.f32 0.0, %v1435
      %v1437 = vpop.f32.mrf.mxu0
      %v1438 = vadd.f32 0.0, %v1437
      %1439 = vmatmul.bf16.gmra.mxu0 %v1367
      %v1440 = vpop.f32.mrf.mxu0
      %v1441 = vadd.f32 0.0, %v1440
      %v1442 = vpop.f32.mrf.mxu0
      %v1443 = vadd.f32 0.0, %v1442
      %1444 = vmatmul.bf16.gmra.mxu0 %v1370
      %v1445 = vpop.f32.mrf.mxu0
      %v1446 = vadd.f32 0.0, %v1445
      %v1447 = vpop.f32.mrf.mxu0
      %v1448 = vadd.f32 0.0, %v1447
      %1449 = vmatmul.bf16.gmra.mxu0 %v1373
      %v1450 = vpop.f32.mrf.mxu0
      %v1451 = vadd.f32 0.0, %v1450
      %v1452 = vpop.f32.mrf.mxu0
      %v1453 = vadd.f32 0.0, %v1452
      %1454 = vmatmul.bf16.gmra.mxu0 %v1376
      %v1455 = vpop.f32.mrf.mxu0
      %v1456 = vadd.f32 0.0, %v1455
      %v1457 = vpop.f32.mrf.mxu0
      %v1458 = vadd.f32 0.0, %v1457
      %1459 = vmatmul.bf16.gmra.mxu0 %v1379
      %v1460 = vpop.f32.mrf.mxu0
      %v1461 = vadd.f32 0.0, %v1460
      %v1462 = vpop.f32.mrf.mxu0
      %v1463 = vadd.f32 0.0, %v1462
      %1464 = vmatmul.bf16.gmra.mxu0 %v1382
      %v1465 = vpop.f32.mrf.mxu0
      %v1466 = vadd.f32 0.0, %v1465
      %v1467 = vpop.f32.mrf.mxu0
      %v1468 = vadd.f32 0.0, %v1467
      %1469 = vmatmul.bf16.gmra.mxu0 %v1385
      %v1470 = vpop.f32.mrf.mxu0
      %v1471 = vadd.f32 0.0, %v1470
      %v1472 = vpop.f32.mrf.mxu0
      %v1473 = vadd.f32 0.0, %v1472
      %1474 = vmatmul.bf16.gmra.mxu0 %v1388
      %v1475 = vpop.f32.mrf.mxu0
      %v1476 = vadd.f32 0.0, %v1475
      %v1477 = vpop.f32.mrf.mxu0
      %v1478 = vadd.f32 0.0, %v1477
      %1479 = vmatmul.bf16.gmra.mxu0 %v1391
      %v1480 = vpop.f32.mrf.mxu0
      %v1481 = vadd.f32 0.0, %v1480
      %v1482 = vpop.f32.mrf.mxu0
      %v1483 = vadd.f32 0.0, %v1482
      %1484 = vmatmul.bf16.gmra.mxu0 %v1394
      %v1485 = vpop.f32.mrf.mxu0
      %v1486 = vadd.f32 0.0, %v1485
      %v1487 = vpop.f32.mrf.mxu0
      %v1488 = vadd.f32 0.0, %v1487
      %1489 = vmatmul.bf16.gmra.mxu0 %v1397
      %v1490 = vpop.f32.mrf.mxu0
      %v1491 = vadd.f32 0.0, %v1490
      %v1492 = vpop.f32.mrf.mxu0
      %v1493 = vadd.f32 0.0, %v1492
      %1494 = vmatmul.bf16.gmra.mxu0 %v1400
      %v1495 = vpop.f32.mrf.mxu0
      %v1496 = vadd.f32 0.0, %v1495
      %v1497 = vpop.f32.mrf.mxu0
      %v1498 = vadd.f32 0.0, %v1497
      %1499 = vmatmul.bf16.gmra.mxu0 %v1403
      %v1500 = vpop.f32.mrf.mxu0
      %v1501 = vadd.f32 0.0, %v1500
      %v1502 = vpop.f32.mrf.mxu0
      %v1503 = vadd.f32 0.0, %v1502
      %1504 = vmatmul.bf16.gmra.mxu0 %v1406
      %v1505 = vpop.f32.mrf.mxu0
      %v1506 = vadd.f32 0.0, %v1505
      %v1507 = vpop.f32.mrf.mxu0
      %v1508 = vadd.f32 0.0, %v1507
      %1509 = vdwg.mxu0
      %v1510 = vadd.f32 %v1149, %v1421
      %v1511 = vadd.f32 %v1150, %v1423
      %v1512 = vadd.f32 %v1151, %v1426
      %v1513 = vadd.f32 %v1152, %v1428
      %v1514 = vadd.f32 %v1153, %v1431
      %v1515 = vadd.f32 %v1154, %v1433
      %v1516 = vadd.f32 %v1155, %v1436
      %v1517 = vadd.f32 %v1156, %v1438
      %v1518 = vadd.f32 %v1157, %v1441
      %v1519 = vadd.f32 %v1158, %v1443
      %v1520 = vadd.f32 %v1159, %v1446
      %v1521 = vadd.f32 %v1160, %v1448
      %v1522 = vadd.f32 %v1161, %v1451
      %v1523 = vadd.f32 %v1162, %v1453
      %v1524 = vadd.f32 %v1163, %v1456
      %v1525 = vadd.f32 %v1164, %v1458
      %v1526 = vadd.f32 %v1165, %v1461
      %v1527 = vadd.f32 %v1166, %v1463
      %v1528 = vadd.f32 %v1167, %v1466
      %v1529 = vadd.f32 %v1168, %v1468
      %v1530 = vadd.f32 %v1169, %v1471
      %v1531 = vadd.f32 %v1170, %v1473
      %v1532 = vadd.f32 %v1171, %v1476
      %v1533 = vadd.f32 %v1172, %v1478
      %v1534 = vadd.f32 %v1173, %v1481
      %v1535 = vadd.f32 %v1174, %v1483
      %v1536 = vadd.f32 %v1175, %v1486
      %v1537 = vadd.f32 %v1176, %v1488
      %v1538 = vadd.f32 %v1177, %v1491
      %v1539 = vadd.f32 %v1178, %v1493
      %v1540 = vadd.f32 %v1179, %v1496
      %v1541 = vadd.f32 %v1180, %v1498
      %v1542 = vadd.f32 %v1181, %v1501
      %v1543 = vadd.f32 %v1182, %v1503
      %v1544 = vadd.f32 %v1183, %v1506
      %v1545 = vadd.f32 %v1184, %v1508
      %v1546 = vld [vmem:[%s302 + $0x98] sm:$0x3]
      %s1547 = scalar_lea.vmem %s310, 16
      %v1548 = vld [vmem:[%s1547] sm:$0xf]
      %v1550 = vunpack.c.l.b16 %v1546
      %v1551 = vpack.c.b16 %v1550, %v1550
      %vm1552 = vsmask.f32 6400
      %v1554 = vshrl.u32 %v1298, 16
      %v1556 = vrot.slane %v1554, 1
      %v1557 = vshll.u32 %v1298, 16
      %v1559 = vrot.slane %v1557, 2
      %v1560 = vor.u32 %v1556, %v1559
      %v1562 = vshrl.u32 %v1299, 16
      %v1564 = vrot.slane %v1562, 1
      %v1565 = vshll.u32 %v1299, 16
      %v1567 = vrot.slane %v1565, 2
      %v1568 = vor.u32 %v1564, %v1567
      %v1569 = vsel %vm1552, %v1560, %v1568
      %v1571 = vshrl.u32 %v1300, 16
      %v1573 = vrot.slane %v1571, 1
      %v1574 = vshll.u32 %v1300, 16
      %v1576 = vrot.slane %v1574, 2
      %v1577 = vor.u32 %v1573, %v1576
      %v1578 = vsel %vm1552, %v1568, %v1577
      %v1580 = vshrl.u32 %v1301, 16
      %v1582 = vrot.slane %v1580, 1
      %v1583 = vshll.u32 %v1301, 16
      %v1585 = vrot.slane %v1583, 2
      %v1586 = vor.u32 %v1582, %v1585
      %v1587 = vsel %vm1552, %v1577, %v1586
      %v1589 = vshrl.u32 %v1302, 16
      %v1591 = vrot.slane %v1589, 1
      %v1592 = vshll.u32 %v1302, 16
      %v1594 = vrot.slane %v1592, 2
      %v1595 = vor.u32 %v1591, %v1594
      %v1596 = vsel %vm1552, %v1586, %v1595
      %v1598 = vshrl.u32 %v1303, 16
      %v1600 = vrot.slane %v1598, 1
      %v1601 = vshll.u32 %v1303, 16
      %v1603 = vrot.slane %v1601, 2
      %v1604 = vor.u32 %v1600, %v1603
      %v1605 = vsel %vm1552, %v1595, %v1604
      %v1607 = vshrl.u32 %v1304, 16
      %v1609 = vrot.slane %v1607, 1
      %v1610 = vshll.u32 %v1304, 16
      %v1612 = vrot.slane %v1610, 2
      %v1613 = vor.u32 %v1609, %v1612
      %v1614 = vsel %vm1552, %v1604, %v1613
      %v1616 = vshrl.u32 %v1305, 16
      %v1618 = vrot.slane %v1616, 1
      %v1619 = vshll.u32 %v1305, 16
      %v1621 = vrot.slane %v1619, 2
      %v1622 = vor.u32 %v1618, %v1621
      %v1623 = vsel %vm1552, %v1613, %v1622
      %v1625 = vshrl.u32 %v1306, 16
      %v1627 = vrot.slane %v1625, 1
      %v1628 = vshll.u32 %v1306, 16
      %v1630 = vrot.slane %v1628, 2
      %v1631 = vor.u32 %v1627, %v1630
      %v1632 = vsel %vm1552, %v1622, %v1631
      %v1634 = vshrl.u32 %v1307, 16
      %v1636 = vrot.slane %v1634, 1
      %v1637 = vshll.u32 %v1307, 16
      %v1639 = vrot.slane %v1637, 2
      %v1640 = vor.u32 %v1636, %v1639
      %v1641 = vsel %vm1552, %v1631, %v1640
      %v1643 = vshrl.u32 %v1308, 16
      %v1645 = vrot.slane %v1643, 1
      %v1646 = vshll.u32 %v1308, 16
      %v1648 = vrot.slane %v1646, 2
      %v1649 = vor.u32 %v1645, %v1648
      %v1650 = vsel %vm1552, %v1640, %v1649
      %v1652 = vshrl.u32 %v1309, 16
      %v1654 = vrot.slane %v1652, 1
      %v1655 = vshll.u32 %v1309, 16
      %v1657 = vrot.slane %v1655, 2
      %v1658 = vor.u32 %v1654, %v1657
      %v1659 = vsel %vm1552, %v1649, %v1658
      %v1661 = vshrl.u32 %v1310, 16
      %v1663 = vrot.slane %v1661, 1
      %v1664 = vshll.u32 %v1310, 16
      %v1666 = vrot.slane %v1664, 2
      %v1667 = vor.u32 %v1663, %v1666
      %v1668 = vsel %vm1552, %v1658, %v1667
      %v1670 = vshrl.u32 %v1311, 16
      %v1672 = vrot.slane %v1670, 1
      %v1673 = vshll.u32 %v1311, 16
      %v1675 = vrot.slane %v1673, 2
      %v1676 = vor.u32 %v1672, %v1675
      %v1677 = vsel %vm1552, %v1667, %v1676
      %v1679 = vshrl.u32 %v1312, 16
      %v1681 = vrot.slane %v1679, 1
      %v1682 = vshll.u32 %v1312, 16
      %v1684 = vrot.slane %v1682, 2
      %v1685 = vor.u32 %v1681, %v1684
      %v1686 = vsel %vm1552, %v1676, %v1685
      %v1688 = vshrl.u32 %v1313, 16
      %v1690 = vrot.slane %v1688, 1
      %v1691 = vshll.u32 %v1313, 16
      %v1693 = vrot.slane %v1691, 2
      %v1694 = vor.u32 %v1690, %v1693
      %v1695 = vsel %vm1552, %v1685, %v1694
      %v1697 = vshrl.u32 %v1314, 16
      %v1699 = vrot.slane %v1697, 1
      %v1700 = vshll.u32 %v1314, 16
      %v1702 = vrot.slane %v1700, 2
      %v1703 = vor.u32 %v1699, %v1702
      %v1704 = vsel %vm1552, %v1694, %v1703
      %v1706 = vshrl.u32 %v1315, 16
      %v1708 = vrot.slane %v1706, 1
      %v1709 = vshll.u32 %v1315, 16
      %v1711 = vrot.slane %v1709, 2
      %v1712 = vor.u32 %v1708, %v1711
      %v1713 = vsel %vm1552, %v1703, %v1712
      %v1715 = vshrl.u32 %v1551, 16
      %v1717 = vrot.slane %v1715, 1
      %v1718 = vshll.u32 %v1551, 16
      %v1720 = vrot.slane %v1718, 2
      %v1721 = vor.u32 %v1717, %v1720
      %v1722 = vsel %vm1552, %v1712, %v1721
      %v1724 = vsel %vm653, %v1569, 0
      %v1727 = vsel %vm653, %v1578, 0
      %v1730 = vsel %vm653, %v1587, 0
      %v1733 = vsel %vm653, %v1596, 0
      %v1736 = vsel %vm653, %v1605, 0
      %v1739 = vsel %vm653, %v1614, 0
      %v1742 = vsel %vm653, %v1623, 0
      %v1745 = vsel %vm653, %v1632, 0
      %v1748 = vsel %vm653, %v1641, 0
      %v1751 = vsel %vm653, %v1650, 0
      %v1754 = vsel %vm653, %v1659, 0
      %v1757 = vsel %vm653, %v1668, 0
      %v1760 = vsel %vm653, %v1677, 0
      %v1763 = vsel %vm653, %v1686, 0
      %v1766 = vsel %vm653, %v1695, 0
      %v1769 = vsel %vm653, %v1704, 0
      %v1772 = vsel %vm653, %v1713, 0
      %v1775 = vsel %vm653, %v1722, 0
      %v1778 = vsel %vm708, %v1548, 0
      %1780 = vmatpush.bf16.msra.mxu0 0
      %1781 = vmatpush.bf16.msra.mxu0 0
      %1782 = vmatpush.bf16.msra.mxu0 0
      %1783 = vmatpush.bf16.msra.mxu0 0
      %1784 = vmatpush.bf16.msra.mxu0 0
      %1785 = vmatpush.bf16.msra.mxu0 0
      %1786 = vmatpush.bf16.msra.mxu0 0
      %1787 = vmatpush.bf16.msra.mxu0 %v1778
      %1788 = vmatmul.bf16.gmra.mxu0 %v1724
      %v1789 = vpop.f32.mrf.mxu0
      %v1790 = vadd.f32 0.0, %v1789
      %v1791 = vpop.f32.mrf.mxu0
      %v1792 = vadd.f32 0.0, %v1791
      %1793 = vmatmul.bf16.gmra.mxu0 %v1727
      %v1794 = vpop.f32.mrf.mxu0
      %v1795 = vadd.f32 0.0, %v1794
      %v1796 = vpop.f32.mrf.mxu0
      %v1797 = vadd.f32 0.0, %v1796
      %1798 = vmatmul.bf16.gmra.mxu0 %v1730
      %v1799 = vpop.f32.mrf.mxu0
      %v1800 = vadd.f32 0.0, %v1799
      %v1801 = vpop.f32.mrf.mxu0
      %v1802 = vadd.f32 0.0, %v1801
      %1803 = vmatmul.bf16.gmra.mxu0 %v1733
      %v1804 = vpop.f32.mrf.mxu0
      %v1805 = vadd.f32 0.0, %v1804
      %v1806 = vpop.f32.mrf.mxu0
      %v1807 = vadd.f32 0.0, %v1806
      %1808 = vmatmul.bf16.gmra.mxu0 %v1736
      %v1809 = vpop.f32.mrf.mxu0
      %v1810 = vadd.f32 0.0, %v1809
      %v1811 = vpop.f32.mrf.mxu0
      %v1812 = vadd.f32 0.0, %v1811
      %1813 = vmatmul.bf16.gmra.mxu0 %v1739
      %v1814 = vpop.f32.mrf.mxu0
      %v1815 = vadd.f32 0.0, %v1814
      %v1816 = vpop.f32.mrf.mxu0
      %v1817 = vadd.f32 0.0, %v1816
      %1818 = vmatmul.bf16.gmra.mxu0 %v1742
      %v1819 = vpop.f32.mrf.mxu0
      %v1820 = vadd.f32 0.0, %v1819
      %v1821 = vpop.f32.mrf.mxu0
      %v1822 = vadd.f32 0.0, %v1821
      %1823 = vmatmul.bf16.gmra.mxu0 %v1745
      %v1824 = vpop.f32.mrf.mxu0
      %v1825 = vadd.f32 0.0, %v1824
      %v1826 = vpop.f32.mrf.mxu0
      %v1827 = vadd.f32 0.0, %v1826
      %1828 = vmatmul.bf16.gmra.mxu0 %v1748
      %v1829 = vpop.f32.mrf.mxu0
      %v1830 = vadd.f32 0.0, %v1829
      %v1831 = vpop.f32.mrf.mxu0
      %v1832 = vadd.f32 0.0, %v1831
      %1833 = vmatmul.bf16.gmra.mxu0 %v1751
      %v1834 = vpop.f32.mrf.mxu0
      %v1835 = vadd.f32 0.0, %v1834
      %v1836 = vpop.f32.mrf.mxu0
      %v1837 = vadd.f32 0.0, %v1836
      %1838 = vmatmul.bf16.gmra.mxu0 %v1754
      %v1839 = vpop.f32.mrf.mxu0
      %v1840 = vadd.f32 0.0, %v1839
      %v1841 = vpop.f32.mrf.mxu0
      %v1842 = vadd.f32 0.0, %v1841
      %1843 = vmatmul.bf16.gmra.mxu0 %v1757
      %v1844 = vpop.f32.mrf.mxu0
      %v1845 = vadd.f32 0.0, %v1844
      %v1846 = vpop.f32.mrf.mxu0
      %v1847 = vadd.f32 0.0, %v1846
      %1848 = vmatmul.bf16.gmra.mxu0 %v1760
      %v1849 = vpop.f32.mrf.mxu0
      %v1850 = vadd.f32 0.0, %v1849
      %v1851 = vpop.f32.mrf.mxu0
      %v1852 = vadd.f32 0.0, %v1851
      %1853 = vmatmul.bf16.gmra.mxu0 %v1763
      %v1854 = vpop.f32.mrf.mxu0
      %v1855 = vadd.f32 0.0, %v1854
      %v1856 = vpop.f32.mrf.mxu0
      %v1857 = vadd.f32 0.0, %v1856
      %1858 = vmatmul.bf16.gmra.mxu0 %v1766
      %v1859 = vpop.f32.mrf.mxu0
      %v1860 = vadd.f32 0.0, %v1859
      %v1861 = vpop.f32.mrf.mxu0
      %v1862 = vadd.f32 0.0, %v1861
      %1863 = vmatmul.bf16.gmra.mxu0 %v1769
      %v1864 = vpop.f32.mrf.mxu0
      %v1865 = vadd.f32 0.0, %v1864
      %v1866 = vpop.f32.mrf.mxu0
      %v1867 = vadd.f32 0.0, %v1866
      %1868 = vmatmul.bf16.gmra.mxu0 %v1772
      %v1869 = vpop.f32.mrf.mxu0
      %v1870 = vadd.f32 0.0, %v1869
      %v1871 = vpop.f32.mrf.mxu0
      %v1872 = vadd.f32 0.0, %v1871
      %1873 = vmatmul.bf16.gmra.mxu0 %v1775
      %v1874 = vpop.f32.mrf.mxu0
      %v1875 = vadd.f32 0.0, %v1874
      %v1876 = vpop.f32.mrf.mxu0
      %v1877 = vadd.f32 0.0, %v1876
      %1878 = vdwg.mxu0
      %v1879 = vadd.f32 %v1510, %v1790
      %v1880 = vadd.f32 %v1511, %v1792
      %v1881 = vadd.f32 %v1512, %v1795
      %v1882 = vadd.f32 %v1513, %v1797
      %v1883 = vadd.f32 %v1514, %v1800
      %v1884 = vadd.f32 %v1515, %v1802
      %v1885 = vadd.f32 %v1516, %v1805
      %v1886 = vadd.f32 %v1517, %v1807
      %v1887 = vadd.f32 %v1518, %v1810
      %v1888 = vadd.f32 %v1519, %v1812
      %v1889 = vadd.f32 %v1520, %v1815
      %v1890 = vadd.f32 %v1521, %v1817
      %v1891 = vadd.f32 %v1522, %v1820
      %v1892 = vadd.f32 %v1523, %v1822
      %v1893 = vadd.f32 %v1524, %v1825
      %v1894 = vadd.f32 %v1525, %v1827
      %v1895 = vadd.f32 %v1526, %v1830
      %v1896 = vadd.f32 %v1527, %v1832
      %v1897 = vadd.f32 %v1528, %v1835
      %v1898 = vadd.f32 %v1529, %v1837
      %v1899 = vadd.f32 %v1530, %v1840
      %v1900 = vadd.f32 %v1531, %v1842
      %v1901 = vadd.f32 %v1532, %v1845
      %v1902 = vadd.f32 %v1533, %v1847
      %v1903 = vadd.f32 %v1534, %v1850
      %v1904 = vadd.f32 %v1535, %v1852
      %v1905 = vadd.f32 %v1536, %v1855
      %v1906 = vadd.f32 %v1537, %v1857
      %v1907 = vadd.f32 %v1538, %v1860
      %v1908 = vadd.f32 %v1539, %v1862
      %v1909 = vadd.f32 %v1540, %v1865
      %v1910 = vadd.f32 %v1541, %v1867
      %v1911 = vadd.f32 %v1542, %v1870
      %v1912 = vadd.f32 %v1543, %v1872
      %v1913 = vadd.f32 %v1544, %v1875
      %v1914 = vadd.f32 %v1545, %v1877
      %v1915 = vld [vmem:[%s302 + $0x8] sm:$0xc]
      %s1916 = scalar_lea.vmem %s310, 20
      %v1917 = vld [vmem:[%s1916] sm:$0xf]
      %v1919 = vunpack.c.l.b16 %v1915
      %v1920 = vpack.c.b16 %v1262, %v1919
      %vm1921 = vcmask 1045504
      %v1922 = vrot.slane %v1920, 2
      %v1923 = vrot.slane %v1299, 2
      %v1924 = vsel %vm1921, %v1922, %v1923
      %v1925 = vrot.slane %v1300, 2
      %v1926 = vsel %vm1921, %v1923, %v1925
      %v1927 = vrot.slane %v1301, 2
      %v1928 = vsel %vm1921, %v1925, %v1927
      %v1929 = vrot.slane %v1302, 2
      %v1930 = vsel %vm1921, %v1927, %v1929
      %v1931 = vrot.slane %v1303, 2
      %v1932 = vsel %vm1921, %v1929, %v1931
      %v1933 = vrot.slane %v1304, 2
      %v1934 = vsel %vm1921, %v1931, %v1933
      %v1935 = vrot.slane %v1305, 2
      %v1936 = vsel %vm1921, %v1933, %v1935
      %v1937 = vrot.slane %v1306, 2
      %v1938 = vsel %vm1921, %v1935, %v1937
      %v1939 = vrot.slane %v1307, 2
      %v1940 = vsel %vm1921, %v1937, %v1939
      %v1941 = vrot.slane %v1308, 2
      %v1942 = vsel %vm1921, %v1939, %v1941
      %v1943 = vrot.slane %v1309, 2
      %v1944 = vsel %vm1921, %v1941, %v1943
      %v1945 = vrot.slane %v1310, 2
      %v1946 = vsel %vm1921, %v1943, %v1945
      %v1947 = vrot.slane %v1311, 2
      %v1948 = vsel %vm1921, %v1945, %v1947
      %v1949 = vrot.slane %v1312, 2
      %v1950 = vsel %vm1921, %v1947, %v1949
      %v1951 = vrot.slane %v1313, 2
      %v1952 = vsel %vm1921, %v1949, %v1951
      %v1953 = vrot.slane %v1314, 2
      %v1954 = vsel %vm1921, %v1951, %v1953
      %v1955 = vrot.slane %v1315, 2
      %v1956 = vsel %vm1921, %v1953, %v1955
      %v1957 = vrot.slane %v1551, 2
      %v1958 = vsel %vm1921, %v1955, %v1957
      %v1960 = vsel %vm653, %v1924, 0
      %v1963 = vsel %vm653, %v1926, 0
      %v1966 = vsel %vm653, %v1928, 0
      %v1969 = vsel %vm653, %v1930, 0
      %v1972 = vsel %vm653, %v1932, 0
      %v1975 = vsel %vm653, %v1934, 0
      %v1978 = vsel %vm653, %v1936, 0
      %v1981 = vsel %vm653, %v1938, 0
      %v1984 = vsel %vm653, %v1940, 0
      %v1987 = vsel %vm653, %v1942, 0
      %v1990 = vsel %vm653, %v1944, 0
      %v1993 = vsel %vm653, %v1946, 0
      %v1996 = vsel %vm653, %v1948, 0
      %v1999 = vsel %vm653, %v1950, 0
      %v2002 = vsel %vm653, %v1952, 0
      %v2005 = vsel %vm653, %v1954, 0
      %v2008 = vsel %vm653, %v1956, 0
      %v2011 = vsel %vm653, %v1958, 0
      %v2014 = vsel %vm708, %v1917, 0
      %2016 = vmatpush.bf16.msra.mxu0 0
      %2017 = vmatpush.bf16.msra.mxu0 0
      %2018 = vmatpush.bf16.msra.mxu0 0
      %2019 = vmatpush.bf16.msra.mxu0 0
      %2020 = vmatpush.bf16.msra.mxu0 0
      %2021 = vmatpush.bf16.msra.mxu0 0
      %2022 = vmatpush.bf16.msra.mxu0 0
      %2023 = vmatpush.bf16.msra.mxu0 %v2014
      %2024 = vmatmul.bf16.gmra.mxu0 %v1960
      %v2025 = vpop.f32.mrf.mxu0
      %v2026 = vadd.f32 0.0, %v2025
      %v2027 = vpop.f32.mrf.mxu0
      %v2028 = vadd.f32 0.0, %v2027
      %2029 = vmatmul.bf16.gmra.mxu0 %v1963
      %v2030 = vpop.f32.mrf.mxu0
      %v2031 = vadd.f32 0.0, %v2030
      %v2032 = vpop.f32.mrf.mxu0
      %v2033 = vadd.f32 0.0, %v2032
      %2034 = vmatmul.bf16.gmra.mxu0 %v1966
      %v2035 = vpop.f32.mrf.mxu0
      %v2036 = vadd.f32 0.0, %v2035
      %v2037 = vpop.f32.mrf.mxu0
      %v2038 = vadd.f32 0.0, %v2037
      %2039 = vmatmul.bf16.gmra.mxu0 %v1969
      %v2040 = vpop.f32.mrf.mxu0
      %v2041 = vadd.f32 0.0, %v2040
      %v2042 = vpop.f32.mrf.mxu0
      %v2043 = vadd.f32 0.0, %v2042
      %2044 = vmatmul.bf16.gmra.mxu0 %v1972
      %v2045 = vpop.f32.mrf.mxu0
      %v2046 = vadd.f32 0.0, %v2045
      %v2047 = vpop.f32.mrf.mxu0
      %v2048 = vadd.f32 0.0, %v2047
      %2049 = vmatmul.bf16.gmra.mxu0 %v1975
      %v2050 = vpop.f32.mrf.mxu0
      %v2051 = vadd.f32 0.0, %v2050
      %v2052 = vpop.f32.mrf.mxu0
      %v2053 = vadd.f32 0.0, %v2052
      %2054 = vmatmul.bf16.gmra.mxu0 %v1978
      %v2055 = vpop.f32.mrf.mxu0
      %v2056 = vadd.f32 0.0, %v2055
      %v2057 = vpop.f32.mrf.mxu0
      %v2058 = vadd.f32 0.0, %v2057
      %2059 = vmatmul.bf16.gmra.mxu0 %v1981
      %v2060 = vpop.f32.mrf.mxu0
      %v2061 = vadd.f32 0.0, %v2060
      %v2062 = vpop.f32.mrf.mxu0
      %v2063 = vadd.f32 0.0, %v2062
      %2064 = vmatmul.bf16.gmra.mxu0 %v1984
      %v2065 = vpop.f32.mrf.mxu0
      %v2066 = vadd.f32 0.0, %v2065
      %v2067 = vpop.f32.mrf.mxu0
      %v2068 = vadd.f32 0.0, %v2067
      %2069 = vmatmul.bf16.gmra.mxu0 %v1987
      %v2070 = vpop.f32.mrf.mxu0
      %v2071 = vadd.f32 0.0, %v2070
      %v2072 = vpop.f32.mrf.mxu0
      %v2073 = vadd.f32 0.0, %v2072
      %2074 = vmatmul.bf16.gmra.mxu0 %v1990
      %v2075 = vpop.f32.mrf.mxu0
      %v2076 = vadd.f32 0.0, %v2075
      %v2077 = vpop.f32.mrf.mxu0
      %v2078 = vadd.f32 0.0, %v2077
      %2079 = vmatmul.bf16.gmra.mxu0 %v1993
      %v2080 = vpop.f32.mrf.mxu0
      %v2081 = vadd.f32 0.0, %v2080
      %v2082 = vpop.f32.mrf.mxu0
      %v2083 = vadd.f32 0.0, %v2082
      %2084 = vmatmul.bf16.gmra.mxu0 %v1996
      %v2085 = vpop.f32.mrf.mxu0
      %v2086 = vadd.f32 0.0, %v2085
      %v2087 = vpop.f32.mrf.mxu0
      %v2088 = vadd.f32 0.0, %v2087
      %2089 = vmatmul.bf16.gmra.mxu0 %v1999
      %v2090 = vpop.f32.mrf.mxu0
      %v2091 = vadd.f32 0.0, %v2090
      %v2092 = vpop.f32.mrf.mxu0
      %v2093 = vadd.f32 0.0, %v2092
      %2094 = vmatmul.bf16.gmra.mxu0 %v2002
      %v2095 = vpop.f32.mrf.mxu0
      %v2096 = vadd.f32 0.0, %v2095
      %v2097 = vpop.f32.mrf.mxu0
      %v2098 = vadd.f32 0.0, %v2097
      %2099 = vmatmul.bf16.gmra.mxu0 %v2005
      %v2100 = vpop.f32.mrf.mxu0
      %v2101 = vadd.f32 0.0, %v2100
      %v2102 = vpop.f32.mrf.mxu0
      %v2103 = vadd.f32 0.0, %v2102
      %2104 = vmatmul.bf16.gmra.mxu0 %v2008
      %v2105 = vpop.f32.mrf.mxu0
      %v2106 = vadd.f32 0.0, %v2105
      %v2107 = vpop.f32.mrf.mxu0
      %v2108 = vadd.f32 0.0, %v2107
      %2109 = vmatmul.bf16.gmra.mxu0 %v2011
      %v2110 = vpop.f32.mrf.mxu0
      %v2111 = vadd.f32 0.0, %v2110
      %v2112 = vpop.f32.mrf.mxu0
      %v2113 = vadd.f32 0.0, %v2112
      %2114 = vdwg.mxu0
      %v2115 = vadd.f32 %v1879, %v2026
      %v2116 = vadd.f32 %v1880, %v2028
      %v2117 = vadd.f32 %v1881, %v2031
      %v2118 = vadd.f32 %v1882, %v2033
      %v2119 = vadd.f32 %v1883, %v2036
      %v2120 = vadd.f32 %v1884, %v2038
      %v2121 = vadd.f32 %v1885, %v2041
      %v2122 = vadd.f32 %v1886, %v2043
      %v2123 = vadd.f32 %v1887, %v2046
      %v2124 = vadd.f32 %v1888, %v2048
      %v2125 = vadd.f32 %v1889, %v2051
      %v2126 = vadd.f32 %v1890, %v2053
      %v2127 = vadd.f32 %v1891, %v2056
      %v2128 = vadd.f32 %v1892, %v2058
      %v2129 = vadd.f32 %v1893, %v2061
      %v2130 = vadd.f32 %v1894, %v2063
      %v2131 = vadd.f32 %v1895, %v2066
      %v2132 = vadd.f32 %v1896, %v2068
      %v2133 = vadd.f32 %v1897, %v2071
      %v2134 = vadd.f32 %v1898, %v2073
      %v2135 = vadd.f32 %v1899, %v2076
      %v2136 = vadd.f32 %v1900, %v2078
      %v2137 = vadd.f32 %v1901, %v2081
      %v2138 = vadd.f32 %v1902, %v2083
      %v2139 = vadd.f32 %v1903, %v2086
      %v2140 = vadd.f32 %v1904, %v2088
      %v2141 = vadd.f32 %v1905, %v2091
      %v2142 = vadd.f32 %v1906, %v2093
      %v2143 = vadd.f32 %v1907, %v2096
      %v2144 = vadd.f32 %v1908, %v2098
      %v2145 = vadd.f32 %v1909, %v2101
      %v2146 = vadd.f32 %v1910, %v2103
      %v2147 = vadd.f32 %v1911, %v2106
      %v2148 = vadd.f32 %v1912, %v2108
      %v2149 = vadd.f32 %v1913, %v2111
      %v2150 = vadd.f32 %v1914, %v2113
      %v2151 = vld [vmem:[%s302 + $0x10] sm:$0xc]
      %v2152 = vld [vmem:[%s302 + $0x14] sm:$0xf]
      %v2153 = vld [vmem:[%s302 + $0x18] sm:$0xf]
      %v2154 = vld [vmem:[%s302 + $0x1c] sm:$0xf]
      %v2155 = vld [vmem:[%s302 + $0x20] sm:$0xf]
      %v2156 = vld [vmem:[%s302 + $0x24] sm:$0xf]
      %v2157 = vld [vmem:[%s302 + $0x28] sm:$0xf]
      %v2158 = vld [vmem:[%s302 + $0x2c] sm:$0xf]
      %v2159 = vld [vmem:[%s302 + $0x30] sm:$0xf]
      %v2160 = vld [vmem:[%s302 + $0x34] sm:$0xf]
      %v2161 = vld [vmem:[%s302 + $0x38] sm:$0xf]
      %v2162 = vld [vmem:[%s302 + $0x3c] sm:$0xf]
      %v2163 = vld [vmem:[%s302 + $0x40] sm:$0xf]
      %v2164 = vld [vmem:[%s302 + $0x44] sm:$0xf]
      %v2165 = vld [vmem:[%s302 + $0x48] sm:$0xf]
      %v2166 = vld [vmem:[%s302 + $0x4c] sm:$0xf]
      %v2167 = vld [vmem:[%s302 + $0x50] sm:$0xf]
      %v2168 = vld [vmem:[%s302 + $0x54] sm:$0xf]
      %v2169 = vld [vmem:[%s302 + $0x58] sm:$0xf]
      %v2170 = vld [vmem:[%s302 + $0x5c] sm:$0xf]
      %v2171 = vld [vmem:[%s302 + $0x60] sm:$0xf]
      %v2172 = vld [vmem:[%s302 + $0x64] sm:$0xf]
      %v2173 = vld [vmem:[%s302 + $0x68] sm:$0xf]
      %v2174 = vld [vmem:[%s302 + $0x6c] sm:$0xf]
      %v2175 = vld [vmem:[%s302 + $0x70] sm:$0xf]
      %v2176 = vld [vmem:[%s302 + $0x74] sm:$0xf]
      %v2177 = vld [vmem:[%s302 + $0x78] sm:$0xf]
      %v2178 = vld [vmem:[%s302 + $0x7c] sm:$0xf]
      %v2179 = vld [vmem:[%s302 + $0x80] sm:$0xf]
      %v2180 = vld [vmem:[%s302 + $0x84] sm:$0xf]
      %v2181 = vld [vmem:[%s302 + $0x88] sm:$0xf]
      %v2182 = vld [vmem:[%s302 + $0x8c] sm:$0xf]
      %v2183 = vld [vmem:[%s302 + $0x90] sm:$0xf]
      %v2184 = vld [vmem:[%s302 + $0x94] sm:$0xf]
      %v2185 = vld [vmem:[%s302 + $0x98] sm:$0xf]
      %v2186 = vld [vmem:[%s302 + $0x9c] sm:$0xf]
      %v2187 = vld [vmem:[%s302 + $0xa0] sm:$0x3]
      %s2188 = scalar_lea.vmem %s310, 24
      %v2189 = vld [vmem:[%s2188] sm:$0xf]
      %v2227 = vunpack.c.l.b16 %v2151
      %v2228 = vunpack.c.l.b16 %v2152
      %v2229 = vunpack.c.l.b16 %v2153
      %v2230 = vunpack.c.l.b16 %v2154
      %v2231 = vunpack.c.l.b16 %v2155
      %v2232 = vunpack.c.l.b16 %v2156
      %v2233 = vunpack.c.l.b16 %v2157
      %v2234 = vunpack.c.l.b16 %v2158
      %v2235 = vunpack.c.l.b16 %v2159
      %v2236 = vunpack.c.l.b16 %v2160
      %v2237 = vunpack.c.l.b16 %v2161
      %v2238 = vunpack.c.l.b16 %v2162
      %v2239 = vunpack.c.l.b16 %v2163
      %v2240 = vunpack.c.l.b16 %v2164
      %v2241 = vunpack.c.l.b16 %v2165
      %v2242 = vunpack.c.l.b16 %v2166
      %v2243 = vunpack.c.l.b16 %v2167
      %v2244 = vunpack.c.l.b16 %v2168
      %v2245 = vunpack.c.l.b16 %v2169
      %v2246 = vunpack.c.l.b16 %v2170
      %v2247 = vunpack.c.l.b16 %v2171
      %v2248 = vunpack.c.l.b16 %v2172
      %v2249 = vunpack.c.l.b16 %v2173
      %v2250 = vunpack.c.l.b16 %v2174
      %v2251 = vunpack.c.l.b16 %v2175
      %v2252 = vunpack.c.l.b16 %v2176
      %v2253 = vunpack.c.l.b16 %v2177
      %v2254 = vunpack.c.l.b16 %v2178
      %v2255 = vunpack.c.l.b16 %v2179
      %v2256 = vunpack.c.l.b16 %v2180
      %v2257 = vunpack.c.l.b16 %v2181
      %v2258 = vunpack.c.l.b16 %v2182
      %v2259 = vunpack.c.l.b16 %v2183
      %v2260 = vunpack.c.l.b16 %v2184
      %v2261 = vunpack.c.l.b16 %v2185
      %v2262 = vunpack.c.l.b16 %v2186
      %v2263 = vunpack.c.l.b16 %v2187
      %v2264 = vpack.c.b16 %v2228, %v2227
      %v2265 = vpack.c.b16 %v2230, %v2229
      %v2266 = vpack.c.b16 %v2232, %v2231
      %v2267 = vpack.c.b16 %v2234, %v2233
      %v2268 = vpack.c.b16 %v2236, %v2235
      %v2269 = vpack.c.b16 %v2238, %v2237
      %v2270 = vpack.c.b16 %v2240, %v2239
      %v2271 = vpack.c.b16 %v2242, %v2241
      %v2272 = vpack.c.b16 %v2244, %v2243
      %v2273 = vpack.c.b16 %v2246, %v2245
      %v2274 = vpack.c.b16 %v2248, %v2247
      %v2275 = vpack.c.b16 %v2250, %v2249
      %v2276 = vpack.c.b16 %v2252, %v2251
      %v2277 = vpack.c.b16 %v2254, %v2253
      %v2278 = vpack.c.b16 %v2256, %v2255
      %v2279 = vpack.c.b16 %v2258, %v2257
      %v2280 = vpack.c.b16 %v2260, %v2259
      %v2281 = vpack.c.b16 %v2262, %v2261
      %v2282 = vpack.c.b16 %v2263, %v2263
      %v2283 = vrot.slane %v2264, 2
      %v2284 = vrot.slane %v2265, 2
      %v2285 = vsel %vm1921, %v2283, %v2284
      %v2286 = vrot.slane %v2266, 2
      %v2287 = vsel %vm1921, %v2284, %v2286
      %v2288 = vrot.slane %v2267, 2
      %v2289 = vsel %vm1921, %v2286, %v2288
      %v2290 = vrot.slane %v2268, 2
      %v2291 = vsel %vm1921, %v2288, %v2290
      %v2292 = vrot.slane %v2269, 2
      %v2293 = vsel %vm1921, %v2290, %v2292
      %v2294 = vrot.slane %v2270, 2
      %v2295 = vsel %vm1921, %v2292, %v2294
      %v2296 = vrot.slane %v2271, 2
      %v2297 = vsel %vm1921, %v2294, %v2296
      %v2298 = vrot.slane %v2272, 2
      %v2299 = vsel %vm1921, %v2296, %v2298
      %v2300 = vrot.slane %v2273, 2
      %v2301 = vsel %vm1921, %v2298, %v2300
      %v2302 = vrot.slane %v2274, 2
      %v2303 = vsel %vm1921, %v2300, %v2302
      %v2304 = vrot.slane %v2275, 2
      %v2305 = vsel %vm1921, %v2302, %v2304
      %v2306 = vrot.slane %v2276, 2
      %v2307 = vsel %vm1921, %v2304, %v2306
      %v2308 = vrot.slane %v2277, 2
      %v2309 = vsel %vm1921, %v2306, %v2308
      %v2310 = vrot.slane %v2278, 2
      %v2311 = vsel %vm1921, %v2308, %v2310
      %v2312 = vrot.slane %v2279, 2
      %v2313 = vsel %vm1921, %v2310, %v2312
      %v2314 = vrot.slane %v2280, 2
      %v2315 = vsel %vm1921, %v2312, %v2314
      %v2316 = vrot.slane %v2281, 2
      %v2317 = vsel %vm1921, %v2314, %v2316
      %v2318 = vrot.slane %v2282, 2
      %v2319 = vsel %vm1921, %v2316, %v2318
      %v2321 = vsel %vm653, %v2285, 0
      %v2324 = vsel %vm653, %v2287, 0
      %v2327 = vsel %vm653, %v2289, 0
      %v2330 = vsel %vm653, %v2291, 0
      %v2333 = vsel %vm653, %v2293, 0
      %v2336 = vsel %vm653, %v2295, 0
      %v2339 = vsel %vm653, %v2297, 0
      %v2342 = vsel %vm653, %v2299, 0
      %v2345 = vsel %vm653, %v2301, 0
      %v2348 = vsel %vm653, %v2303, 0
      %v2351 = vsel %vm653, %v2305, 0
      %v2354 = vsel %vm653, %v2307, 0
      %v2357 = vsel %vm653, %v2309, 0
      %v2360 = vsel %vm653, %v2311, 0
      %v2363 = vsel %vm653, %v2313, 0
      %v2366 = vsel %vm653, %v2315, 0
      %v2369 = vsel %vm653, %v2317, 0
      %v2372 = vsel %vm653, %v2319, 0
      %v2375 = vsel %vm708, %v2189, 0
      %2377 = vmatpush.bf16.msra.mxu0 0
      %2378 = vmatpush.bf16.msra.mxu0 0
      %2379 = vmatpush.bf16.msra.mxu0 0
      %2380 = vmatpush.bf16.msra.mxu0 0
      %2381 = vmatpush.bf16.msra.mxu0 0
      %2382 = vmatpush.bf16.msra.mxu0 0
      %2383 = vmatpush.bf16.msra.mxu0 0
      %2384 = vmatpush.bf16.msra.mxu0 %v2375
      %2385 = vmatmul.bf16.gmra.mxu0 %v2321
      %v2386 = vpop.f32.mrf.mxu0
      %v2387 = vadd.f32 0.0, %v2386
      %v2388 = vpop.f32.mrf.mxu0
      %v2389 = vadd.f32 0.0, %v2388
      %2390 = vmatmul.bf16.gmra.mxu0 %v2324
      %v2391 = vpop.f32.mrf.mxu0
      %v2392 = vadd.f32 0.0, %v2391
      %v2393 = vpop.f32.mrf.mxu0
      %v2394 = vadd.f32 0.0, %v2393
      %2395 = vmatmul.bf16.gmra.mxu0 %v2327
      %v2396 = vpop.f32.mrf.mxu0
      %v2397 = vadd.f32 0.0, %v2396
      %v2398 = vpop.f32.mrf.mxu0
      %v2399 = vadd.f32 0.0, %v2398
      %2400 = vmatmul.bf16.gmra.mxu0 %v2330
      %v2401 = vpop.f32.mrf.mxu0
      %v2402 = vadd.f32 0.0, %v2401
      %v2403 = vpop.f32.mrf.mxu0
      %v2404 = vadd.f32 0.0, %v2403
      %2405 = vmatmul.bf16.gmra.mxu0 %v2333
      %v2406 = vpop.f32.mrf.mxu0
      %v2407 = vadd.f32 0.0, %v2406
      %v2408 = vpop.f32.mrf.mxu0
      %v2409 = vadd.f32 0.0, %v2408
      %2410 = vmatmul.bf16.gmra.mxu0 %v2336
      %v2411 = vpop.f32.mrf.mxu0
      %v2412 = vadd.f32 0.0, %v2411
      %v2413 = vpop.f32.mrf.mxu0
      %v2414 = vadd.f32 0.0, %v2413
      %2415 = vmatmul.bf16.gmra.mxu0 %v2339
      %v2416 = vpop.f32.mrf.mxu0
      %v2417 = vadd.f32 0.0, %v2416
      %v2418 = vpop.f32.mrf.mxu0
      %v2419 = vadd.f32 0.0, %v2418
      %2420 = vmatmul.bf16.gmra.mxu0 %v2342
      %v2421 = vpop.f32.mrf.mxu0
      %v2422 = vadd.f32 0.0, %v2421
      %v2423 = vpop.f32.mrf.mxu0
      %v2424 = vadd.f32 0.0, %v2423
      %2425 = vmatmul.bf16.gmra.mxu0 %v2345
      %v2426 = vpop.f32.mrf.mxu0
      %v2427 = vadd.f32 0.0, %v2426
      %v2428 = vpop.f32.mrf.mxu0
      %v2429 = vadd.f32 0.0, %v2428
      %2430 = vmatmul.bf16.gmra.mxu0 %v2348
      %v2431 = vpop.f32.mrf.mxu0
      %v2432 = vadd.f32 0.0, %v2431
      %v2433 = vpop.f32.mrf.mxu0
      %v2434 = vadd.f32 0.0, %v2433
      %2435 = vmatmul.bf16.gmra.mxu0 %v2351
      %v2436 = vpop.f32.mrf.mxu0
      %v2437 = vadd.f32 0.0, %v2436
      %v2438 = vpop.f32.mrf.mxu0
      %v2439 = vadd.f32 0.0, %v2438
      %2440 = vmatmul.bf16.gmra.mxu0 %v2354
      %v2441 = vpop.f32.mrf.mxu0
      %v2442 = vadd.f32 0.0, %v2441
      %v2443 = vpop.f32.mrf.mxu0
      %v2444 = vadd.f32 0.0, %v2443
      %2445 = vmatmul.bf16.gmra.mxu0 %v2357
      %v2446 = vpop.f32.mrf.mxu0
      %v2447 = vadd.f32 0.0, %v2446
      %v2448 = vpop.f32.mrf.mxu0
      %v2449 = vadd.f32 0.0, %v2448
      %2450 = vmatmul.bf16.gmra.mxu0 %v2360
      %v2451 = vpop.f32.mrf.mxu0
      %v2452 = vadd.f32 0.0, %v2451
      %v2453 = vpop.f32.mrf.mxu0
      %v2454 = vadd.f32 0.0, %v2453
      %2455 = vmatmul.bf16.gmra.mxu0 %v2363
      %v2456 = vpop.f32.mrf.mxu0
      %v2457 = vadd.f32 0.0, %v2456
      %v2458 = vpop.f32.mrf.mxu0
      %v2459 = vadd.f32 0.0, %v2458
      %2460 = vmatmul.bf16.gmra.mxu0 %v2366
      %v2461 = vpop.f32.mrf.mxu0
      %v2462 = vadd.f32 0.0, %v2461
      %v2463 = vpop.f32.mrf.mxu0
      %v2464 = vadd.f32 0.0, %v2463
      %2465 = vmatmul.bf16.gmra.mxu0 %v2369
      %v2466 = vpop.f32.mrf.mxu0
      %v2467 = vadd.f32 0.0, %v2466
      %v2468 = vpop.f32.mrf.mxu0
      %v2469 = vadd.f32 0.0, %v2468
      %2470 = vmatmul.bf16.gmra.mxu0 %v2372
      %v2471 = vpop.f32.mrf.mxu0
      %v2472 = vadd.f32 0.0, %v2471
      %v2473 = vpop.f32.mrf.mxu0
      %v2474 = vadd.f32 0.0, %v2473
      %2475 = vdwg.mxu0
      %v2476 = vadd.f32 %v2115, %v2387
      %v2477 = vadd.f32 %v2116, %v2389
      %v2478 = vadd.f32 %v2117, %v2392
      %v2479 = vadd.f32 %v2118, %v2394
      %v2480 = vadd.f32 %v2119, %v2397
      %v2481 = vadd.f32 %v2120, %v2399
      %v2482 = vadd.f32 %v2121, %v2402
      %v2483 = vadd.f32 %v2122, %v2404
      %v2484 = vadd.f32 %v2123, %v2407
      %v2485 = vadd.f32 %v2124, %v2409
      %v2486 = vadd.f32 %v2125, %v2412
      %v2487 = vadd.f32 %v2126, %v2414
      %v2488 = vadd.f32 %v2127, %v2417
      %v2489 = vadd.f32 %v2128, %v2419
      %v2490 = vadd.f32 %v2129, %v2422
      %v2491 = vadd.f32 %v2130, %v2424
      %v2492 = vadd.f32 %v2131, %v2427
      %v2493 = vadd.f32 %v2132, %v2429
      %v2494 = vadd.f32 %v2133, %v2432
      %v2495 = vadd.f32 %v2134, %v2434
      %v2496 = vadd.f32 %v2135, %v2437
      %v2497 = vadd.f32 %v2136, %v2439
      %v2498 = vadd.f32 %v2137, %v2442
      %v2499 = vadd.f32 %v2138, %v2444
      %v2500 = vadd.f32 %v2139, %v2447
      %v2501 = vadd.f32 %v2140, %v2449
      %v2502 = vadd.f32 %v2141, %v2452
      %v2503 = vadd.f32 %v2142, %v2454
      %v2504 = vadd.f32 %v2143, %v2457
      %v2505 = vadd.f32 %v2144, %v2459
      %v2506 = vadd.f32 %v2145, %v2462
      %v2507 = vadd.f32 %v2146, %v2464
      %v2508 = vadd.f32 %v2147, %v2467
      %v2509 = vadd.f32 %v2148, %v2469
      %v2510 = vadd.f32 %v2149, %v2472
      %v2511 = vadd.f32 %v2150, %v2474
      %v2512 = vld [vmem:[%s302 + $0xa0] sm:$0x7]
      %s2513 = scalar_lea.vmem %s310, 28
      %v2514 = vld [vmem:[%s2513] sm:$0xf]
      %v2516 = vunpack.c.l.b16 %v2512
      %v2517 = vpack.c.b16 %v2516, %v2516
      %vm2518 = vsmask.f32 5376
      %v2520 = vshrl.u32 %v2264, 16
      %v2522 = vrot.slane %v2520, 2
      %v2523 = vshll.u32 %v2264, 16
      %v2525 = vrot.slane %v2523, 3
      %v2526 = vor.u32 %v2522, %v2525
      %v2528 = vshrl.u32 %v2265, 16
      %v2530 = vrot.slane %v2528, 2
      %v2531 = vshll.u32 %v2265, 16
      %v2533 = vrot.slane %v2531, 3
      %v2534 = vor.u32 %v2530, %v2533
      %v2535 = vsel %vm2518, %v2526, %v2534
      %v2537 = vshrl.u32 %v2266, 16
      %v2539 = vrot.slane %v2537, 2
      %v2540 = vshll.u32 %v2266, 16
      %v2542 = vrot.slane %v2540, 3
      %v2543 = vor.u32 %v2539, %v2542
      %v2544 = vsel %vm2518, %v2534, %v2543
      %v2546 = vshrl.u32 %v2267, 16
      %v2548 = vrot.slane %v2546, 2
      %v2549 = vshll.u32 %v2267, 16
      %v2551 = vrot.slane %v2549, 3
      %v2552 = vor.u32 %v2548, %v2551
      %v2553 = vsel %vm2518, %v2543, %v2552
      %v2555 = vshrl.u32 %v2268, 16
      %v2557 = vrot.slane %v2555, 2
      %v2558 = vshll.u32 %v2268, 16
      %v2560 = vrot.slane %v2558, 3
      %v2561 = vor.u32 %v2557, %v2560
      %v2562 = vsel %vm2518, %v2552, %v2561
      %v2564 = vshrl.u32 %v2269, 16
      %v2566 = vrot.slane %v2564, 2
      %v2567 = vshll.u32 %v2269, 16
      %v2569 = vrot.slane %v2567, 3
      %v2570 = vor.u32 %v2566, %v2569
      %v2571 = vsel %vm2518, %v2561, %v2570
      %v2573 = vshrl.u32 %v2270, 16
      %v2575 = vrot.slane %v2573, 2
      %v2576 = vshll.u32 %v2270, 16
      %v2578 = vrot.slane %v2576, 3
      %v2579 = vor.u32 %v2575, %v2578
      %v2580 = vsel %vm2518, %v2570, %v2579
      %v2582 = vshrl.u32 %v2271, 16
      %v2584 = vrot.slane %v2582, 2
      %v2585 = vshll.u32 %v2271, 16
      %v2587 = vrot.slane %v2585, 3
      %v2588 = vor.u32 %v2584, %v2587
      %v2589 = vsel %vm2518, %v2579, %v2588
      %v2591 = vshrl.u32 %v2272, 16
      %v2593 = vrot.slane %v2591, 2
      %v2594 = vshll.u32 %v2272, 16
      %v2596 = vrot.slane %v2594, 3
      %v2597 = vor.u32 %v2593, %v2596
      %v2598 = vsel %vm2518, %v2588, %v2597
      %v2600 = vshrl.u32 %v2273, 16
      %v2602 = vrot.slane %v2600, 2
      %v2603 = vshll.u32 %v2273, 16
      %v2605 = vrot.slane %v2603, 3
      %v2606 = vor.u32 %v2602, %v2605
      %v2607 = vsel %vm2518, %v2597, %v2606
      %v2609 = vshrl.u32 %v2274, 16
      %v2611 = vrot.slane %v2609, 2
      %v2612 = vshll.u32 %v2274, 16
      %v2614 = vrot.slane %v2612, 3
      %v2615 = vor.u32 %v2611, %v2614
      %v2616 = vsel %vm2518, %v2606, %v2615
      %v2618 = vshrl.u32 %v2275, 16
      %v2620 = vrot.slane %v2618, 2
      %v2621 = vshll.u32 %v2275, 16
      %v2623 = vrot.slane %v2621, 3
      %v2624 = vor.u32 %v2620, %v2623
      %v2625 = vsel %vm2518, %v2615, %v2624
      %v2627 = vshrl.u32 %v2276, 16
      %v2629 = vrot.slane %v2627, 2
      %v2630 = vshll.u32 %v2276, 16
      %v2632 = vrot.slane %v2630, 3
      %v2633 = vor.u32 %v2629, %v2632
      %v2634 = vsel %vm2518, %v2624, %v2633
      %v2636 = vshrl.u32 %v2277, 16
      %v2638 = vrot.slane %v2636, 2
      %v2639 = vshll.u32 %v2277, 16
      %v2641 = vrot.slane %v2639, 3
      %v2642 = vor.u32 %v2638, %v2641
      %v2643 = vsel %vm2518, %v2633, %v2642
      %v2645 = vshrl.u32 %v2278, 16
      %v2647 = vrot.slane %v2645, 2
      %v2648 = vshll.u32 %v2278, 16
      %v2650 = vrot.slane %v2648, 3
      %v2651 = vor.u32 %v2647, %v2650
      %v2652 = vsel %vm2518, %v2642, %v2651
      %v2654 = vshrl.u32 %v2279, 16
      %v2656 = vrot.slane %v2654, 2
      %v2657 = vshll.u32 %v2279, 16
      %v2659 = vrot.slane %v2657, 3
      %v2660 = vor.u32 %v2656, %v2659
      %v2661 = vsel %vm2518, %v2651, %v2660
      %v2663 = vshrl.u32 %v2280, 16
      %v2665 = vrot.slane %v2663, 2
      %v2666 = vshll.u32 %v2280, 16
      %v2668 = vrot.slane %v2666, 3
      %v2669 = vor.u32 %v2665, %v2668
      %v2670 = vsel %vm2518, %v2660, %v2669
      %v2672 = vshrl.u32 %v2281, 16
      %v2674 = vrot.slane %v2672, 2
      %v2675 = vshll.u32 %v2281, 16
      %v2677 = vrot.slane %v2675, 3
      %v2678 = vor.u32 %v2674, %v2677
      %v2679 = vsel %vm2518, %v2669, %v2678
      %v2681 = vshrl.u32 %v2517, 16
      %v2683 = vrot.slane %v2681, 2
      %v2684 = vshll.u32 %v2517, 16
      %v2686 = vrot.slane %v2684, 3
      %v2687 = vor.u32 %v2683, %v2686
      %v2688 = vsel %vm2518, %v2678, %v2687
      %v2690 = vsel %vm653, %v2535, 0
      %v2693 = vsel %vm653, %v2544, 0
      %v2696 = vsel %vm653, %v2553, 0
      %v2699 = vsel %vm653, %v2562, 0
      %v2702 = vsel %vm653, %v2571, 0
      %v2705 = vsel %vm653, %v2580, 0
      %v2708 = vsel %vm653, %v2589, 0
      %v2711 = vsel %vm653, %v2598, 0
      %v2714 = vsel %vm653, %v2607, 0
      %v2717 = vsel %vm653, %v2616, 0
      %v2720 = vsel %vm653, %v2625, 0
      %v2723 = vsel %vm653, %v2634, 0
      %v2726 = vsel %vm653, %v2643, 0
      %v2729 = vsel %vm653, %v2652, 0
      %v2732 = vsel %vm653, %v2661, 0
      %v2735 = vsel %vm653, %v2670, 0
      %v2738 = vsel %vm653, %v2679, 0
      %v2741 = vsel %vm653, %v2688, 0
      %v2744 = vsel %vm708, %v2514, 0
      %2746 = vmatpush.bf16.msra.mxu0 0
      %2747 = vmatpush.bf16.msra.mxu0 0
      %2748 = vmatpush.bf16.msra.mxu0 0
      %2749 = vmatpush.bf16.msra.mxu0 0
      %2750 = vmatpush.bf16.msra.mxu0 0
      %2751 = vmatpush.bf16.msra.mxu0 0
      %2752 = vmatpush.bf16.msra.mxu0 0
      %2753 = vmatpush.bf16.msra.mxu0 %v2744
      %2754 = vmatmul.bf16.gmra.mxu0 %v2690
      %v2755 = vpop.f32.mrf.mxu0
      %v2756 = vadd.f32 0.0, %v2755
      %v2757 = vpop.f32.mrf.mxu0
      %v2758 = vadd.f32 0.0, %v2757
      %2759 = vmatmul.bf16.gmra.mxu0 %v2693
      %v2760 = vpop.f32.mrf.mxu0
      %v2761 = vadd.f32 0.0, %v2760
      %v2762 = vpop.f32.mrf.mxu0
      %v2763 = vadd.f32 0.0, %v2762
      %2764 = vmatmul.bf16.gmra.mxu0 %v2696
      %v2765 = vpop.f32.mrf.mxu0
      %v2766 = vadd.f32 0.0, %v2765
      %v2767 = vpop.f32.mrf.mxu0
      %v2768 = vadd.f32 0.0, %v2767
      %2769 = vmatmul.bf16.gmra.mxu0 %v2699
      %v2770 = vpop.f32.mrf.mxu0
      %v2771 = vadd.f32 0.0, %v2770
      %v2772 = vpop.f32.mrf.mxu0
      %v2773 = vadd.f32 0.0, %v2772
      %2774 = vmatmul.bf16.gmra.mxu0 %v2702
      %v2775 = vpop.f32.mrf.mxu0
      %v2776 = vadd.f32 0.0, %v2775
      %v2777 = vpop.f32.mrf.mxu0
      %v2778 = vadd.f32 0.0, %v2777
      %2779 = vmatmul.bf16.gmra.mxu0 %v2705
      %v2780 = vpop.f32.mrf.mxu0
      %v2781 = vadd.f32 0.0, %v2780
      %v2782 = vpop.f32.mrf.mxu0
      %v2783 = vadd.f32 0.0, %v2782
      %2784 = vmatmul.bf16.gmra.mxu0 %v2708
      %v2785 = vpop.f32.mrf.mxu0
      %v2786 = vadd.f32 0.0, %v2785
      %v2787 = vpop.f32.mrf.mxu0
      %v2788 = vadd.f32 0.0, %v2787
      %2789 = vmatmul.bf16.gmra.mxu0 %v2711
      %v2790 = vpop.f32.mrf.mxu0
      %v2791 = vadd.f32 0.0, %v2790
      %v2792 = vpop.f32.mrf.mxu0
      %v2793 = vadd.f32 0.0, %v2792
      %2794 = vmatmul.bf16.gmra.mxu0 %v2714
      %v2795 = vpop.f32.mrf.mxu0
      %v2796 = vadd.f32 0.0, %v2795
      %v2797 = vpop.f32.mrf.mxu0
      %v2798 = vadd.f32 0.0, %v2797
      %2799 = vmatmul.bf16.gmra.mxu0 %v2717
      %v2800 = vpop.f32.mrf.mxu0
      %v2801 = vadd.f32 0.0, %v2800
      %v2802 = vpop.f32.mrf.mxu0
      %v2803 = vadd.f32 0.0, %v2802
      %2804 = vmatmul.bf16.gmra.mxu0 %v2720
      %v2805 = vpop.f32.mrf.mxu0
      %v2806 = vadd.f32 0.0, %v2805
      %v2807 = vpop.f32.mrf.mxu0
      %v2808 = vadd.f32 0.0, %v2807
      %2809 = vmatmul.bf16.gmra.mxu0 %v2723
      %v2810 = vpop.f32.mrf.mxu0
      %v2811 = vadd.f32 0.0, %v2810
      %v2812 = vpop.f32.mrf.mxu0
      %v2813 = vadd.f32 0.0, %v2812
      %2814 = vmatmul.bf16.gmra.mxu0 %v2726
      %v2815 = vpop.f32.mrf.mxu0
      %v2816 = vadd.f32 0.0, %v2815
      %v2817 = vpop.f32.mrf.mxu0
      %v2818 = vadd.f32 0.0, %v2817
      %2819 = vmatmul.bf16.gmra.mxu0 %v2729
      %v2820 = vpop.f32.mrf.mxu0
      %v2821 = vadd.f32 0.0, %v2820
      %v2822 = vpop.f32.mrf.mxu0
      %v2823 = vadd.f32 0.0, %v2822
      %2824 = vmatmul.bf16.gmra.mxu0 %v2732
      %v2825 = vpop.f32.mrf.mxu0
      %v2826 = vadd.f32 0.0, %v2825
      %v2827 = vpop.f32.mrf.mxu0
      %v2828 = vadd.f32 0.0, %v2827
      %2829 = vmatmul.bf16.gmra.mxu0 %v2735
      %v2830 = vpop.f32.mrf.mxu0
      %v2831 = vadd.f32 0.0, %v2830
      %v2832 = vpop.f32.mrf.mxu0
      %v2833 = vadd.f32 0.0, %v2832
      %2834 = vmatmul.bf16.gmra.mxu0 %v2738
      %v2835 = vpop.f32.mrf.mxu0
      %v2836 = vadd.f32 0.0, %v2835
      %v2837 = vpop.f32.mrf.mxu0
      %v2838 = vadd.f32 0.0, %v2837
      %2839 = vmatmul.bf16.gmra.mxu0 %v2741
      %v2840 = vpop.f32.mrf.mxu0
      %v2841 = vadd.f32 0.0, %v2840
      %v2842 = vpop.f32.mrf.mxu0
      %v2843 = vadd.f32 0.0, %v2842
      %2844 = vdwg.mxu0
      %v2845 = vadd.f32 %v2476, %v2756
      %v2846 = vadd.f32 %v2477, %v2758
      %v2847 = vadd.f32 %v2478, %v2761
      %v2848 = vadd.f32 %v2479, %v2763
      %v2849 = vadd.f32 %v2480, %v2766
      %v2850 = vadd.f32 %v2481, %v2768
      %v2851 = vadd.f32 %v2482, %v2771
      %v2852 = vadd.f32 %v2483, %v2773
      %v2853 = vadd.f32 %v2484, %v2776
      %v2854 = vadd.f32 %v2485, %v2778
      %v2855 = vadd.f32 %v2486, %v2781
      %v2856 = vadd.f32 %v2487, %v2783
      %v2857 = vadd.f32 %v2488, %v2786
      %v2858 = vadd.f32 %v2489, %v2788
      %v2859 = vadd.f32 %v2490, %v2791
      %v2860 = vadd.f32 %v2491, %v2793
      %v2861 = vadd.f32 %v2492, %v2796
      %v2862 = vadd.f32 %v2493, %v2798
      %v2863 = vadd.f32 %v2494, %v2801
      %v2864 = vadd.f32 %v2495, %v2803
      %v2865 = vadd.f32 %v2496, %v2806
      %v2866 = vadd.f32 %v2497, %v2808
      %v2867 = vadd.f32 %v2498, %v2811
      %v2868 = vadd.f32 %v2499, %v2813
      %v2869 = vadd.f32 %v2500, %v2816
      %v2870 = vadd.f32 %v2501, %v2818
      %v2871 = vadd.f32 %v2502, %v2821
      %v2872 = vadd.f32 %v2503, %v2823
      %v2873 = vadd.f32 %v2504, %v2826
      %v2874 = vadd.f32 %v2505, %v2828
      %v2875 = vadd.f32 %v2506, %v2831
      %v2876 = vadd.f32 %v2507, %v2833
      %v2877 = vadd.f32 %v2508, %v2836
      %v2878 = vadd.f32 %v2509, %v2838
      %v2879 = vadd.f32 %v2510, %v2841
      %v2880 = vadd.f32 %v2511, %v2843
      %v2881 = vld [vmem:[%s302 + $0x10] sm:$0x8]
      %s2882 = scalar_lea.vmem %s310, 32
      %v2883 = vld [vmem:[%s2882] sm:$0xf]
      %v2885 = vunpack.c.l.b16 %v2881
      %v2886 = vpack.c.b16 %v2228, %v2885
      %vm2887 = vcmask 1044480
      %v2888 = vrot.slane %v2886, 3
      %v2889 = vrot.slane %v2265, 3
      %v2890 = vsel %vm2887, %v2888, %v2889
      %v2891 = vrot.slane %v2266, 3
      %v2892 = vsel %vm2887, %v2889, %v2891
      %v2893 = vrot.slane %v2267, 3
      %v2894 = vsel %vm2887, %v2891, %v2893
      %v2895 = vrot.slane %v2268, 3
      %v2896 = vsel %vm2887, %v2893, %v2895
      %v2897 = vrot.slane %v2269, 3
      %v2898 = vsel %vm2887, %v2895, %v2897
      %v2899 = vrot.slane %v2270, 3
      %v2900 = vsel %vm2887, %v2897, %v2899
      %v2901 = vrot.slane %v2271, 3
      %v2902 = vsel %vm2887, %v2899, %v2901
      %v2903 = vrot.slane %v2272, 3
      %v2904 = vsel %vm2887, %v2901, %v2903
      %v2905 = vrot.slane %v2273, 3
      %v2906 = vsel %vm2887, %v2903, %v2905
      %v2907 = vrot.slane %v2274, 3
      %v2908 = vsel %vm2887, %v2905, %v2907
      %v2909 = vrot.slane %v2275, 3
      %v2910 = vsel %vm2887, %v2907, %v2909
      %v2911 = vrot.slane %v2276, 3
      %v2912 = vsel %vm2887, %v2909, %v2911
      %v2913 = vrot.slane %v2277, 3
      %v2914 = vsel %vm2887, %v2911, %v2913
      %v2915 = vrot.slane %v2278, 3
      %v2916 = vsel %vm2887, %v2913, %v2915
      %v2917 = vrot.slane %v2279, 3
      %v2918 = vsel %vm2887, %v2915, %v2917
      %v2919 = vrot.slane %v2280, 3
      %v2920 = vsel %vm2887, %v2917, %v2919
      %v2921 = vrot.slane %v2281, 3
      %v2922 = vsel %vm2887, %v2919, %v2921
      %v2923 = vrot.slane %v2517, 3
      %v2924 = vsel %vm2887, %v2921, %v2923
      %v2926 = vsel %vm653, %v2890, 0
      %v2929 = vsel %vm653, %v2892, 0
      %v2932 = vsel %vm653, %v2894, 0
      %v2935 = vsel %vm653, %v2896, 0
      %v2938 = vsel %vm653, %v2898, 0
      %v2941 = vsel %vm653, %v2900, 0
      %v2944 = vsel %vm653, %v2902, 0
      %v2947 = vsel %vm653, %v2904, 0
      %v2950 = vsel %vm653, %v2906, 0
      %v2953 = vsel %vm653, %v2908, 0
      %v2956 = vsel %vm653, %v2910, 0
      %v2959 = vsel %vm653, %v2912, 0
      %v2962 = vsel %vm653, %v2914, 0
      %v2965 = vsel %vm653, %v2916, 0
      %v2968 = vsel %vm653, %v2918, 0
      %v2971 = vsel %vm653, %v2920, 0
      %v2974 = vsel %vm653, %v2922, 0
      %v2977 = vsel %vm653, %v2924, 0
      %v2980 = vsel %vm708, %v2883, 0
      %2982 = vmatpush.bf16.msra.mxu0 0
      %2983 = vmatpush.bf16.msra.mxu0 0
      %2984 = vmatpush.bf16.msra.mxu0 0
      %2985 = vmatpush.bf16.msra.mxu0 0
      %2986 = vmatpush.bf16.msra.mxu0 0
      %2987 = vmatpush.bf16.msra.mxu0 0
      %2988 = vmatpush.bf16.msra.mxu0 0
      %2989 = vmatpush.bf16.msra.mxu0 %v2980
      %2990 = vmatmul.bf16.gmra.mxu0 %v2926
      %v2991 = vpop.f32.mrf.mxu0
      %v2992 = vadd.f32 0.0, %v2991
      %v2993 = vpop.f32.mrf.mxu0
      %v2994 = vadd.f32 0.0, %v2993
      %2995 = vmatmul.bf16.gmra.mxu0 %v2929
      %v2996 = vpop.f32.mrf.mxu0
      %v2997 = vadd.f32 0.0, %v2996
      %v2998 = vpop.f32.mrf.mxu0
      %v2999 = vadd.f32 0.0, %v2998
      %3000 = vmatmul.bf16.gmra.mxu0 %v2932
      %v3001 = vpop.f32.mrf.mxu0
      %v3002 = vadd.f32 0.0, %v3001
      %v3003 = vpop.f32.mrf.mxu0
      %v3004 = vadd.f32 0.0, %v3003
      %3005 = vmatmul.bf16.gmra.mxu0 %v2935
      %v3006 = vpop.f32.mrf.mxu0
      %v3007 = vadd.f32 0.0, %v3006
      %v3008 = vpop.f32.mrf.mxu0
      %v3009 = vadd.f32 0.0, %v3008
      %3010 = vmatmul.bf16.gmra.mxu0 %v2938
      %v3011 = vpop.f32.mrf.mxu0
      %v3012 = vadd.f32 0.0, %v3011
      %v3013 = vpop.f32.mrf.mxu0
      %v3014 = vadd.f32 0.0, %v3013
      %3015 = vmatmul.bf16.gmra.mxu0 %v2941
      %v3016 = vpop.f32.mrf.mxu0
      %v3017 = vadd.f32 0.0, %v3016
      %v3018 = vpop.f32.mrf.mxu0
      %v3019 = vadd.f32 0.0, %v3018
      %3020 = vmatmul.bf16.gmra.mxu0 %v2944
      %v3021 = vpop.f32.mrf.mxu0
      %v3022 = vadd.f32 0.0, %v3021
      %v3023 = vpop.f32.mrf.mxu0
      %v3024 = vadd.f32 0.0, %v3023
      %3025 = vmatmul.bf16.gmra.mxu0 %v2947
      %v3026 = vpop.f32.mrf.mxu0
      %v3027 = vadd.f32 0.0, %v3026
      %v3028 = vpop.f32.mrf.mxu0
      %v3029 = vadd.f32 0.0, %v3028
      %3030 = vmatmul.bf16.gmra.mxu0 %v2950
      %v3031 = vpop.f32.mrf.mxu0
      %v3032 = vadd.f32 0.0, %v3031
      %v3033 = vpop.f32.mrf.mxu0
      %v3034 = vadd.f32 0.0, %v3033
      %3035 = vmatmul.bf16.gmra.mxu0 %v2953
      %v3036 = vpop.f32.mrf.mxu0
      %v3037 = vadd.f32 0.0, %v3036
      %v3038 = vpop.f32.mrf.mxu0
      %v3039 = vadd.f32 0.0, %v3038
      %3040 = vmatmul.bf16.gmra.mxu0 %v2956
      %v3041 = vpop.f32.mrf.mxu0
      %v3042 = vadd.f32 0.0, %v3041
      %v3043 = vpop.f32.mrf.mxu0
      %v3044 = vadd.f32 0.0, %v3043
      %3045 = vmatmul.bf16.gmra.mxu0 %v2959
      %v3046 = vpop.f32.mrf.mxu0
      %v3047 = vadd.f32 0.0, %v3046
      %v3048 = vpop.f32.mrf.mxu0
      %v3049 = vadd.f32 0.0, %v3048
      %3050 = vmatmul.bf16.gmra.mxu0 %v2962
      %v3051 = vpop.f32.mrf.mxu0
      %v3052 = vadd.f32 0.0, %v3051
      %v3053 = vpop.f32.mrf.mxu0
      %v3054 = vadd.f32 0.0, %v3053
      %3055 = vmatmul.bf16.gmra.mxu0 %v2965
      %v3056 = vpop.f32.mrf.mxu0
      %v3057 = vadd.f32 0.0, %v3056
      %v3058 = vpop.f32.mrf.mxu0
      %v3059 = vadd.f32 0.0, %v3058
      %3060 = vmatmul.bf16.gmra.mxu0 %v2968
      %v3061 = vpop.f32.mrf.mxu0
      %v3062 = vadd.f32 0.0, %v3061
      %v3063 = vpop.f32.mrf.mxu0
      %v3064 = vadd.f32 0.0, %v3063
      %3065 = vmatmul.bf16.gmra.mxu0 %v2971
      %v3066 = vpop.f32.mrf.mxu0
      %v3067 = vadd.f32 0.0, %v3066
      %v3068 = vpop.f32.mrf.mxu0
      %v3069 = vadd.f32 0.0, %v3068
      %3070 = vmatmul.bf16.gmra.mxu0 %v2974
      %v3071 = vpop.f32.mrf.mxu0
      %v3072 = vadd.f32 0.0, %v3071
      %v3073 = vpop.f32.mrf.mxu0
      %v3074 = vadd.f32 0.0, %v3073
      %3075 = vmatmul.bf16.gmra.mxu0 %v2977
      %v3076 = vpop.f32.mrf.mxu0
      %v3077 = vadd.f32 0.0, %v3076
      %v3078 = vpop.f32.mrf.mxu0
      %v3079 = vadd.f32 0.0, %v3078
      %3080 = vdwg.mxu0
      %v3081 = vadd.f32 %v2845, %v2992
      %v3082 = vadd.f32 %v2846, %v2994
      %v3083 = vadd.f32 %v2847, %v2997
      %v3084 = vadd.f32 %v2848, %v2999
      %v3085 = vadd.f32 %v2849, %v3002
      %v3086 = vadd.f32 %v2850, %v3004
      %v3087 = vadd.f32 %v2851, %v3007
      %v3088 = vadd.f32 %v2852, %v3009
      %v3089 = vadd.f32 %v2853, %v3012
      %v3090 = vadd.f32 %v2854, %v3014
      %v3091 = vadd.f32 %v2855, %v3017
      %v3092 = vadd.f32 %v2856, %v3019
      %v3093 = vadd.f32 %v2857, %v3022
      %v3094 = vadd.f32 %v2858, %v3024
      %v3095 = vadd.f32 %v2859, %v3027
      %v3096 = vadd.f32 %v2860, %v3029
      %v3097 = vadd.f32 %v2861, %v3032
      %v3098 = vadd.f32 %v2862, %v3034
      %v3099 = vadd.f32 %v2863, %v3037
      %v3100 = vadd.f32 %v2864, %v3039
      %v3101 = vadd.f32 %v2865, %v3042
      %v3102 = vadd.f32 %v2866, %v3044
      %v3103 = vadd.f32 %v2867, %v3047
      %v3104 = vadd.f32 %v2868, %v3049
      %v3105 = vadd.f32 %v2869, %v3052
      %v3106 = vadd.f32 %v2870, %v3054
      %v3107 = vadd.f32 %v2871, %v3057
      %v3108 = vadd.f32 %v2872, %v3059
      %v3109 = vadd.f32 %v2873, %v3062
      %v3110 = vadd.f32 %v2874, %v3064
      %v3111 = vadd.f32 %v2875, %v3067
      %v3112 = vadd.f32 %v2876, %v3069
      %v3113 = vadd.f32 %v2877, %v3072
      %v3114 = vadd.f32 %v2878, %v3074
      %v3115 = vadd.f32 %v2879, %v3077
      %v3116 = vadd.f32 %v2880, %v3079
      %v3117 = vld [vmem:[#allocation2] sm:$0xff]
      %v3118 = vld [vmem:[#allocation2 + $0x8] sm:$0xff]
      %v3119 = vld [vmem:[#allocation2 + $0x10] sm:$0xff]
      %v3120 = vld [vmem:[#allocation2 + $0x18] sm:$0xff]
      %v3121 = vld [vmem:[#allocation2 + $0x20] sm:$0xff]
      %v3122 = vld [vmem:[#allocation2 + $0x28] sm:$0xff]
      %v3123 = vld [vmem:[#allocation2 + $0x30] sm:$0xff]
      %v3124 = vld [vmem:[#allocation2 + $0x38] sm:$0xff]
      %v3125 = vld [vmem:[#allocation2 + $0x40] sm:$0xff]
      %v3126 = vld [vmem:[#allocation2 + $0x48] sm:$0xff]
      %v3127 = vld [vmem:[#allocation2 + $0x50] sm:$0xff]
      %v3128 = vld [vmem:[#allocation2 + $0x58] sm:$0xff]
      %v3129 = vld [vmem:[#allocation2 + $0x60] sm:$0xff]
      %v3130 = vld [vmem:[#allocation2 + $0x68] sm:$0xff]
      %v3131 = vld [vmem:[#allocation2 + $0x70] sm:$0xff]
      %v3132 = vld [vmem:[#allocation2 + $0x78] sm:$0xff]
      %v3133 = vld [vmem:[#allocation2 + $0x80] sm:$0xff]
      %v3134 = vld [vmem:[#allocation2 + $0x88] sm:$0xff]
      %v3135 = vld [vmem:[#allocation2 + $0x90] sm:$0xff]
      %v3136 = vld [vmem:[#allocation2 + $0x98] sm:$0xff]
      %v3137 = vld [vmem:[#allocation2 + $0xa0] sm:$0xff]
      %v3138 = vld [vmem:[#allocation2 + $0xa8] sm:$0xff]
      %v3139 = vld [vmem:[#allocation2 + $0xb0] sm:$0xff]
      %v3140 = vld [vmem:[#allocation2 + $0xb8] sm:$0xff]
      %v3141 = vld [vmem:[#allocation2 + $0xc0] sm:$0xff]
      %v3142 = vld [vmem:[#allocation2 + $0xc8] sm:$0xff]
      %v3143 = vld [vmem:[#allocation2 + $0xd0] sm:$0xff]
      %v3144 = vld [vmem:[#allocation2 + $0xd8] sm:$0xff]
      %v3145 = vld [vmem:[#allocation2 + $0xe0] sm:$0xff]
      %v3146 = vld [vmem:[#allocation2 + $0xe8] sm:$0xff]
      %v3147 = vld [vmem:[#allocation2 + $0xf0] sm:$0xff]
      %v3148 = vld [vmem:[#allocation2 + $0xf8] sm:$0xff]
      %v3149 = vld [vmem:[#allocation2 + $0x100] sm:$0xff]
      %v3150 = vld [vmem:[#allocation2 + $0x108] sm:$0xff]
      %v3151 = vld [vmem:[#allocation2 + $0x110] sm:$0xff]
      %v3152 = vld [vmem:[#allocation2 + $0x118] sm:$0xff]
      %v3153 = vadd.f32 %v3117, %v3081
      %v3154 = vadd.f32 %v3118, %v3082
      %v3155 = vadd.f32 %v3119, %v3083
      %v3156 = vadd.f32 %v3120, %v3084
      %v3157 = vadd.f32 %v3121, %v3085
      %v3158 = vadd.f32 %v3122, %v3086
      %v3159 = vadd.f32 %v3123, %v3087
      %v3160 = vadd.f32 %v3124, %v3088
      %v3161 = vadd.f32 %v3125, %v3089
      %v3162 = vadd.f32 %v3126, %v3090
      %v3163 = vadd.f32 %v3127, %v3091
      %v3164 = vadd.f32 %v3128, %v3092
      %v3165 = vadd.f32 %v3129, %v3093
      %v3166 = vadd.f32 %v3130, %v3094
      %v3167 = vadd.f32 %v3131, %v3095
      %v3168 = vadd.f32 %v3132, %v3096
      %v3169 = vadd.f32 %v3133, %v3097
      %v3170 = vadd.f32 %v3134, %v3098
      %v3171 = vadd.f32 %v3135, %v3099
      %v3172 = vadd.f32 %v3136, %v3100
      %v3173 = vadd.f32 %v3137, %v3101
      %v3174 = vadd.f32 %v3138, %v3102
      %v3175 = vadd.f32 %v3139, %v3103
      %v3176 = vadd.f32 %v3140, %v3104
      %v3177 = vadd.f32 %v3141, %v3105
      %v3178 = vadd.f32 %v3142, %v3106
      %v3179 = vadd.f32 %v3143, %v3107
      %v3180 = vadd.f32 %v3144, %v3108
      %v3181 = vadd.f32 %v3145, %v3109
      %v3182 = vadd.f32 %v3146, %v3110
      %v3183 = vadd.f32 %v3147, %v3111
      %v3184 = vadd.f32 %v3148, %v3112
      %v3185 = vadd.f32 %v3149, %v3113
      %v3186 = vadd.f32 %v3150, %v3114
      %v3187 = vadd.f32 %v3151, %v3115
      %v3188 = vadd.f32 %v3152, %v3116
      %3189 = vst [vmem:[#allocation2] sm:$0xff] %v3153
      %3190 = vst [vmem:[#allocation2 + $0x8] sm:$0xff] %v3154
      %3191 = vst [vmem:[#allocation2 + $0x10] sm:$0xff] %v3155
      %3192 = vst [vmem:[#allocation2 + $0x18] sm:$0xff] %v3156
      %3193 = vst [vmem:[#allocation2 + $0x20] sm:$0xff] %v3157
      %3194 = vst [vmem:[#allocation2 + $0x28] sm:$0xff] %v3158
      %3195 = vst [vmem:[#allocation2 + $0x30] sm:$0xff] %v3159
      %3196 = vst [vmem:[#allocation2 + $0x38] sm:$0xff] %v3160
      %3197 = vst [vmem:[#allocation2 + $0x40] sm:$0xff] %v3161
      %3198 = vst [vmem:[#allocation2 + $0x48] sm:$0xff] %v3162
      %3199 = vst [vmem:[#allocation2 + $0x50] sm:$0xff] %v3163
      %3200 = vst [vmem:[#allocation2 + $0x58] sm:$0xff] %v3164
      %3201 = vst [vmem:[#allocation2 + $0x60] sm:$0xff] %v3165
      %3202 = vst [vmem:[#allocation2 + $0x68] sm:$0xff] %v3166
      %3203 = vst [vmem:[#allocation2 + $0x70] sm:$0xff] %v3167
      %3204 = vst [vmem:[#allocation2 + $0x78] sm:$0xff] %v3168
      %3205 = vst [vmem:[#allocation2 + $0x80] sm:$0xff] %v3169
      %3206 = vst [vmem:[#allocation2 + $0x88] sm:$0xff] %v3170
      %3207 = vst [vmem:[#allocation2 + $0x90] sm:$0xff] %v3171
      %3208 = vst [vmem:[#allocation2 + $0x98] sm:$0xff] %v3172
      %3209 = vst [vmem:[#allocation2 + $0xa0] sm:$0xff] %v3173
      %3210 = vst [vmem:[#allocation2 + $0xa8] sm:$0xff] %v3174
      %3211 = vst [vmem:[#allocation2 + $0xb0] sm:$0xff] %v3175
      %3212 = vst [vmem:[#allocation2 + $0xb8] sm:$0xff] %v3176
      %3213 = vst [vmem:[#allocation2 + $0xc0] sm:$0xff] %v3177
      %3214 = vst [vmem:[#allocation2 + $0xc8] sm:$0xff] %v3178
      %3215 = vst [vmem:[#allocation2 + $0xd0] sm:$0xff] %v3179
      %3216 = vst [vmem:[#allocation2 + $0xd8] sm:$0xff] %v3180
      %3217 = vst [vmem:[#allocation2 + $0xe0] sm:$0xff] %v3181
      %3218 = vst [vmem:[#allocation2 + $0xe8] sm:$0xff] %v3182
      %3219 = vst [vmem:[#allocation2 + $0xf0] sm:$0xff] %v3183
      %3220 = vst [vmem:[#allocation2 + $0xf8] sm:$0xff] %v3184
      %3221 = vst [vmem:[#allocation2 + $0x100] sm:$0xff] %v3185
      %3222 = vst [vmem:[#allocation2 + $0x108] sm:$0xff] %v3186
      %3223 = vst [vmem:[#allocation2 + $0x110] sm:$0xff] %v3187
      %3224 = vst [vmem:[#allocation2 + $0x118] sm:$0xff] %v3188
      %p3225 = scmp.eq.s32.totalorder %s24, 3
      // Predicated region
      $region41: #{_lambda_.3} parent=35 // pred_check
        %p3226 = pneg %p3225
      $region42: #{_lambda_.3} parent=35 // pred_check_branch
        %3228 = sbr.rel (%p3226) target = $region44
      $region43: #{_lambda_.3} parent=35 // pred_region
        %v3229 = vld [vmem:[#allocation2] sm:$0xff]
        %v3230 = vld [vmem:[#allocation2 + $0x8] sm:$0xff]
        %v3231 = vld [vmem:[#allocation2 + $0x10] sm:$0xff]
        %v3232 = vld [vmem:[#allocation2 + $0x18] sm:$0xff]
        %v3233 = vld [vmem:[#allocation2 + $0x20] sm:$0xff]
        %v3234 = vld [vmem:[#allocation2 + $0x28] sm:$0xff]
        %v3235 = vld [vmem:[#allocation2 + $0x30] sm:$0xff]
        %v3236 = vld [vmem:[#allocation2 + $0x38] sm:$0xff]
        %v3237 = vld [vmem:[#allocation2 + $0x40] sm:$0xff]
        %v3238 = vld [vmem:[#allocation2 + $0x48] sm:$0xff]
        %v3239 = vld [vmem:[#allocation2 + $0x50] sm:$0xff]
        %v3240 = vld [vmem:[#allocation2 + $0x58] sm:$0xff]
        %v3241 = vld [vmem:[#allocation2 + $0x60] sm:$0xff]
        %v3242 = vld [vmem:[#allocation2 + $0x68] sm:$0xff]
        %v3243 = vld [vmem:[#allocation2 + $0x70] sm:$0xff]
        %v3244 = vld [vmem:[#allocation2 + $0x78] sm:$0xff]
        %v3245 = vld [vmem:[#allocation2 + $0x80] sm:$0xff]
        %v3246 = vld [vmem:[#allocation2 + $0x88] sm:$0xff]
        %v3247 = vld [vmem:[#allocation2 + $0x90] sm:$0xff]
        %v3248 = vld [vmem:[#allocation2 + $0x98] sm:$0xff]
        %v3249 = vld [vmem:[#allocation2 + $0xa0] sm:$0xff]
        %v3250 = vld [vmem:[#allocation2 + $0xa8] sm:$0xff]
        %v3251 = vld [vmem:[#allocation2 + $0xb0] sm:$0xff]
        %v3252 = vld [vmem:[#allocation2 + $0xb8] sm:$0xff]
        %v3253 = vld [vmem:[#allocation2 + $0xc0] sm:$0xff]
        %v3254 = vld [vmem:[#allocation2 + $0xc8] sm:$0xff]
        %v3255 = vld [vmem:[#allocation2 + $0xd0] sm:$0xff]
        %v3256 = vld [vmem:[#allocation2 + $0xd8] sm:$0xff]
        %v3257 = vld [vmem:[#allocation2 + $0xe0] sm:$0xff]
        %v3258 = vld [vmem:[#allocation2 + $0xe8] sm:$0xff]
        %v3259 = vld [vmem:[#allocation2 + $0xf0] sm:$0xff]
        %v3260 = vld [vmem:[#allocation2 + $0xf8] sm:$0xff]
        %v3261 = vld [vmem:[#allocation2 + $0x100] sm:$0xff]
        %v3262 = vld [vmem:[#allocation2 + $0x108] sm:$0xff]
        %v3263 = vld [vmem:[#allocation2 + $0x110] sm:$0xff]
        %v3264 = vld [vmem:[#allocation2 + $0x118] sm:$0xff]
        %v3265 = vld [vmem:[%s313] sm:$0x1]
        %v3267 = vperm.slane %v3265, 0
        %v3269 = vmul.f32 %v3229, %v3267
        %v3270 = vmul.f32 %v3230, %v3267
        %v3271 = vmul.f32 %v3231, %v3267
        %v3272 = vmul.f32 %v3232, %v3267
        %v3273 = vmul.f32 %v3233, %v3267
        %v3274 = vmul.f32 %v3234, %v3267
        %v3275 = vmul.f32 %v3235, %v3267
        %v3276 = vmul.f32 %v3236, %v3267
        %v3277 = vmul.f32 %v3237, %v3267
        %v3278 = vmul.f32 %v3238, %v3267
        %v3279 = vmul.f32 %v3239, %v3267
        %v3280 = vmul.f32 %v3240, %v3267
        %v3281 = vmul.f32 %v3241, %v3267
        %v3282 = vmul.f32 %v3242, %v3267
        %v3283 = vmul.f32 %v3243, %v3267
        %v3284 = vmul.f32 %v3244, %v3267
        %v3285 = vmul.f32 %v3245, %v3267
        %v3286 = vmul.f32 %v3246, %v3267
        %v3287 = vmul.f32 %v3247, %v3267
        %v3288 = vmul.f32 %v3248, %v3267
        %v3289 = vmul.f32 %v3249, %v3267
        %v3290 = vmul.f32 %v3250, %v3267
        %v3291 = vmul.f32 %v3251, %v3267
        %v3292 = vmul.f32 %v3252, %v3267
        %v3293 = vmul.f32 %v3253, %v3267
        %v3294 = vmul.f32 %v3254, %v3267
        %v3295 = vmul.f32 %v3255, %v3267
        %v3296 = vmul.f32 %v3256, %v3267
        %v3297 = vmul.f32 %v3257, %v3267
        %v3298 = vmul.f32 %v3258, %v3267
        %v3299 = vmul.f32 %v3259, %v3267
        %v3300 = vmul.f32 %v3260, %v3267
        %v3301 = vmul.f32 %v3261, %v3267
        %v3302 = vmul.f32 %v3262, %v3267
        %v3303 = vmul.f32 %v3263, %v3267
        %v3304 = vmul.f32 %v3264, %v3267
        %v3305 = vld [vmem:[%s316] sm:$0x1]
        %v3307 = vperm.slane %v3305, 0
        %v3309 = vadd.f32 %v3269, %v3307
        %v3310 = vadd.f32 %v3270, %v3307
        %v3311 = vadd.f32 %v3271, %v3307
        %v3312 = vadd.f32 %v3272, %v3307
        %v3313 = vadd.f32 %v3273, %v3307
        %v3314 = vadd.f32 %v3274, %v3307
        %v3315 = vadd.f32 %v3275, %v3307
        %v3316 = vadd.f32 %v3276, %v3307
        %v3317 = vadd.f32 %v3277, %v3307
        %v3318 = vadd.f32 %v3278, %v3307
        %v3319 = vadd.f32 %v3279, %v3307
        %v3320 = vadd.f32 %v3280, %v3307
        %v3321 = vadd.f32 %v3281, %v3307
        %v3322 = vadd.f32 %v3282, %v3307
        %v3323 = vadd.f32 %v3283, %v3307
        %v3324 = vadd.f32 %v3284, %v3307
        %v3325 = vadd.f32 %v3285, %v3307
        %v3326 = vadd.f32 %v3286, %v3307
        %v3327 = vadd.f32 %v3287, %v3307
        %v3328 = vadd.f32 %v3288, %v3307
        %v3329 = vadd.f32 %v3289, %v3307
        %v3330 = vadd.f32 %v3290, %v3307
        %v3331 = vadd.f32 %v3291, %v3307
        %v3332 = vadd.f32 %v3292, %v3307
        %v3333 = vadd.f32 %v3293, %v3307
        %v3334 = vadd.f32 %v3294, %v3307
        %v3335 = vadd.f32 %v3295, %v3307
        %v3336 = vadd.f32 %v3296, %v3307
        %v3337 = vadd.f32 %v3297, %v3307
        %v3338 = vadd.f32 %v3298, %v3307
        %v3339 = vadd.f32 %v3299, %v3307
        %v3340 = vadd.f32 %v3300, %v3307
        %v3341 = vadd.f32 %v3301, %v3307
        %v3342 = vadd.f32 %v3302, %v3307
        %v3343 = vadd.f32 %v3303, %v3307
        %v3344 = vadd.f32 %v3304, %v3307
        %v3345 = vmax.f32 %v3309, 0.0
        %v3346 = vmax.f32 %v3310, 0.0
        %v3347 = vmax.f32 %v3311, 0.0
        %v3348 = vmax.f32 %v3312, 0.0
        %v3349 = vmax.f32 %v3313, 0.0
        %v3350 = vmax.f32 %v3314, 0.0
        %v3351 = vmax.f32 %v3315, 0.0
        %v3352 = vmax.f32 %v3316, 0.0
        %v3353 = vmax.f32 %v3317, 0.0
        %v3354 = vmax.f32 %v3318, 0.0
        %v3355 = vmax.f32 %v3319, 0.0
        %v3356 = vmax.f32 %v3320, 0.0
        %v3357 = vmax.f32 %v3321, 0.0
        %v3358 = vmax.f32 %v3322, 0.0
        %v3359 = vmax.f32 %v3323, 0.0
        %v3360 = vmax.f32 %v3324, 0.0
        %v3361 = vmax.f32 %v3325, 0.0
        %v3362 = vmax.f32 %v3326, 0.0
        %v3363 = vmax.f32 %v3327, 0.0
        %v3364 = vmax.f32 %v3328, 0.0
        %v3365 = vmax.f32 %v3329, 0.0
        %v3366 = vmax.f32 %v3330, 0.0
        %v3367 = vmax.f32 %v3331, 0.0
        %v3368 = vmax.f32 %v3332, 0.0
        %v3369 = vmax.f32 %v3333, 0.0
        %v3370 = vmax.f32 %v3334, 0.0
        %v3371 = vmax.f32 %v3335, 0.0
        %v3372 = vmax.f32 %v3336, 0.0
        %v3373 = vmax.f32 %v3337, 0.0
        %v3374 = vmax.f32 %v3338, 0.0
        %v3375 = vmax.f32 %v3339, 0.0
        %v3376 = vmax.f32 %v3340, 0.0
        %v3377 = vmax.f32 %v3341, 0.0
        %v3378 = vmax.f32 %v3342, 0.0
        %v3379 = vmax.f32 %v3343, 0.0
        %v3380 = vmax.f32 %v3344, 0.0
        %3381 = vst [vmem:[%s328] sm:$0xff] %v3345
        %3382 = vst [vmem:[%s328 + $0x8] sm:$0xff] %v3346
        %3383 = vst [vmem:[%s328 + $0x10] sm:$0xff] %v3347
        %3384 = vst [vmem:[%s328 + $0x18] sm:$0xff] %v3348
        %3385 = vst [vmem:[%s328 + $0x20] sm:$0xff] %v3349
        %3386 = vst [vmem:[%s328 + $0x28] sm:$0xff] %v3350
        %3387 = vst [vmem:[%s328 + $0x30] sm:$0xff] %v3351
        %3388 = vst [vmem:[%s328 + $0x38] sm:$0xff] %v3352
        %3389 = vst [vmem:[%s328 + $0x40] sm:$0xff] %v3353
        %3390 = vst [vmem:[%s328 + $0x48] sm:$0xff] %v3354
        %3391 = vst [vmem:[%s328 + $0x50] sm:$0xff] %v3355
        %3392 = vst [vmem:[%s328 + $0x58] sm:$0xff] %v3356
        %3393 = vst [vmem:[%s328 + $0x60] sm:$0xff] %v3357
        %3394 = vst [vmem:[%s328 + $0x68] sm:$0xff] %v3358
        %3395 = vst [vmem:[%s328 + $0x70] sm:$0xff] %v3359
        %3396 = vst [vmem:[%s328 + $0x78] sm:$0xff] %v3360
        %3397 = vst [vmem:[%s328 + $0x80] sm:$0xff] %v3361
        %3398 = vst [vmem:[%s328 + $0x88] sm:$0xff] %v3362
        %3399 = vst [vmem:[%s328 + $0x90] sm:$0xff] %v3363
        %3400 = vst [vmem:[%s328 + $0x98] sm:$0xff] %v3364
        %3401 = vst [vmem:[%s328 + $0xa0] sm:$0xff] %v3365
        %3402 = vst [vmem:[%s328 + $0xa8] sm:$0xff] %v3366
        %3403 = vst [vmem:[%s328 + $0xb0] sm:$0xff] %v3367
        %3404 = vst [vmem:[%s328 + $0xb8] sm:$0xff] %v3368
        %3405 = vst [vmem:[%s328 + $0xc0] sm:$0xff] %v3369
        %3406 = vst [vmem:[%s328 + $0xc8] sm:$0xff] %v3370
        %3407 = vst [vmem:[%s328 + $0xd0] sm:$0xff] %v3371
        %3408 = vst [vmem:[%s328 + $0xd8] sm:$0xff] %v3372
        %3409 = vst [vmem:[%s328 + $0xe0] sm:$0xff] %v3373
        %3410 = vst [vmem:[%s328 + $0xe8] sm:$0xff] %v3374
        %3411 = vst [vmem:[%s328 + $0xf0] sm:$0xff] %v3375
        %3412 = vst [vmem:[%s328 + $0xf8] sm:$0xff] %v3376
        %3413 = vst [vmem:[%s328 + $0x100] sm:$0xff] %v3377
        %3414 = vst [vmem:[%s328 + $0x108] sm:$0xff] %v3378
        %3415 = vst [vmem:[%s328 + $0x110] sm:$0xff] %v3379
        %3416 = vst [vmem:[%s328 + $0x118] sm:$0xff] %v3380
      $region44: #{_lambda_.3} parent=35 // pred_fallthru
        _
      %s3417 = smul.u32 36, %s22
      %p3418 = scmp.lt.s32.totalorder %s21, 1
      %s3419 = scalar_select %p3418, %s21, 1
      %p3420 = scmp.lt.s32.totalorder %s3417, 35
      %s3421 = scalar_select %p3420, %s3417, 35
      %p3422 = scmp.lt.s32.totalorder %s23, 0
      %s3423 = scalar_select %p3422, %s23, 0
      %s3424 = sadd.s32 %s3423, %s3421
      %s3425 = smul.addr %s3419, 36
      %s3426 = sadd.s32 %s3424, %s3425
      %s3427 = smul.addr %s3426, 8
      %s3428 = scalar_lea.vmem %s4, %s3427
      // Predicated region
      $region45: #{_lambda_.3} parent=35 // pred_check
        %p3429 = pneg %p173
      $region46: #{_lambda_.3} parent=35 // pred_check_branch
        %3431 = sbr.rel (%p3429) target = $region48
      $region47: #{_lambda_.3} parent=35 // pred_region
        %s3432 = smul.u32 36, %s22
      $region48: #{_lambda_.3} parent=35 // pred_fallthru
        _
    $region36: #{_lambda_.3} parent=5 // pred_fallthru
      _
    %p3433 = scmp.le.s32.totalorder 2, %s10
    // Predicated region
    $region49: #{_lambda_.3} parent=5 // pred_check
      %p3434 = pneg %p3433
    $region50: #{_lambda_.3} parent=5 // pred_check_branch
      %3436 = sbr.rel (%p3434) target = $region52
    $region51: #{_lambda_.3} parent=5 // pred_region
      %s3437 = ssub.s32 %s10, 2
      // Predicated region
      $region53: #{_lambda_.3} parent=51 // pred_check
        %p3438 = pneg %p179
      $region54: #{_lambda_.3} parent=51 // pred_check_branch
        %3440 = sbr.rel (%p3438) target = $region56
      $region55: #{_lambda_.3} parent=51 // pred_region
        %s3441 = smul.u32 36, %s26
        %p3442 = scmp.lt.s32.totalorder %s25, 1
        %s3443 = scalar_select %p3442, %s25, 1
        %p3444 = scmp.lt.s32.totalorder %s3441, 35
        %s3445 = scalar_select %p3444, %s3441, 35
        %p3446 = scmp.lt.s32.totalorder %s27, 0
        %s3447 = scalar_select %p3446, %s27, 0
        %s3448 = sadd.s32 %s3447, %s3445
        %s3449 = smul.addr %s3443, 36
        %s3450 = sadd.s32 %s3448, %s3449
        %s3451 = smul.addr %s3450, 8
        %s3452 = scalar_lea.vmem %s4, %s3451
      $region56: #{_lambda_.3} parent=51 // pred_fallthru
        _
    $region52: #{_lambda_.3} parent=5 // pred_fallthru
      _
  $region6: #{_lambda_.3} parent=0 // loop_footer
    %s14 = sadd.s32 1, %s10
  $region7: #{_lambda_.3} parent=0 // loop_footer_branch
    %9 = sbr.rel target = $region3
  $region8: #{_lambda_.3} parent=0 // loop_exit
    _

</llo_original>
